<compile_context>
chip_gen: v7x
topology: tpu7x:2x2x1
jax: 0.10.0
libtpu: 0.0.40
codegen_flags: <defaults>
</compile_context>

<pallas_src>
import functools

import jax
import jax.numpy as jnp
from jax import lax
from jax.experimental import pallas as pl
from jax.experimental.pallas import tpu as pltpu


# ------------------------------ tiling helpers ------------------------------

_VMEM_LIMIT = 32 * 1024 * 1024  # scoped-VMEM budget safe on v5e / v6e / v7x


def _round_up(x, m):
    return ((x + m - 1) // m) * m


def _pick_tile(dim, max_tile):
    """Largest tile <= max_tile that is the full dim or a 128-multiple divisor."""
    if dim <= max_tile:
        return dim
    t = (max_tile // 128) * 128
    while t >= 128:
        if dim % t == 0:
            return t
        t -= 128
    # Non-128-divisible large dims (e.g. raw vocab) must be padded by the
    # caller; falling back to the full dim is only hit for small toy shapes.
    return dim


# --------------------------- fused matmul kernel ----------------------------


def _make_fused_kernel(*, has_ln, has_bias, has_res, activation):
    def kernel(*refs):
        idx = 0
        x_ref = refs[idx]; idx += 1
        g_ref = bln_ref = None
        if has_ln:
            g_ref = refs[idx]; bln_ref = refs[idx + 1]; idx += 2
        w_ref = refs[idx]; idx += 1
        b_ref = None
        if has_bias:
            b_ref = refs[idx]; idx += 1
        r_ref = None
        if has_res:
            r_ref = refs[idx]; idx += 1
        o_ref = refs[idx]; idx += 1
        xln_ref = refs[idx] if has_ln else None

        if has_ln:
            # LayerNorm is computed once per M-tile (j == 0) and cached in
            # VMEM scratch; every N-tile reuses it (N is the inner axis).
            @pl.when(pl.program_id(1) == 0)
            def _():
                xf = x_ref[...].astype(jnp.float32)
                mu = jnp.mean(xf, axis=-1, keepdims=True)
                var = jnp.mean(jnp.square(xf - mu), axis=-1, keepdims=True)
                xf = (xf - mu) * lax.rsqrt(var + 1e-5)
                xf = xf * g_ref[...] + bln_ref[...]
                xln_ref[...] = xf.astype(xln_ref.dtype)

            x = xln_ref[...]
        else:
            x = x_ref[...]

        y = jnp.dot(x, w_ref[...], preferred_element_type=jnp.float32)

        if has_bias:
            y = y + b_ref[...]
        if activation == "gelu":
            # GPT-2 "gelu_new" (tanh approximation), f32 epilogue (safe on v5e;
            # TODO(synk): use a bf16 tanh on v6e/v7x if the EUP becomes binding).
            c = 0.7978845608028654  # sqrt(2/pi)
            y = 0.5 * y * (1.0 + jnp.tanh(c * (y + 0.044715 * y * y * y)))
        if has_res:
            y = y + r_ref[...].astype(jnp.float32)
        o_ref[...] = y.astype(o_ref.dtype)

    return kernel


def fused_matmul(x, w, *, bias=None, ln_gamma=None, ln_beta=None,
                 residual=None, activation=None, out_dtype=jnp.bfloat16,
                 max_tm=512, max_tn=512):
    """[LN(x)] @ W [+ b] [GELU] [+ residual], tiled over (M, N).

    ln_gamma / ln_beta : (1, K) f32,  bias : (1, N) f32  (pre-formatted at init).
    """
    M, K = x.shape
    Kw, N = w.shape
    assert K == Kw
    tm = _pick_tile(M, max_tm)
    tn = _pick_tile(N, max_tn)
    grid = (M // tm, N // tn)
    has_ln = ln_gamma is not None

    in_specs = [pl.BlockSpec((tm, K), lambda i, j: (i, 0))]
    args = [x]
    if has_ln:
        in_specs += [pl.BlockSpec((1, K), lambda i, j: (0, 0)),
                     pl.BlockSpec((1, K), lambda i, j: (0, 0))]
        args += [ln_gamma, ln_beta]
    in_specs.append(pl.BlockSpec((K, tn), lambda i, j: (0, j)))
    args.append(w)
    if bias is not None:
        in_specs.append(pl.BlockSpec((1, tn), lambda i, j: (0, j)))
        args.append(bias)
    if residual is not None:
        in_specs.append(pl.BlockSpec((tm, tn), lambda i, j: (i, j)))
        args.append(residual)

    scratch = [pltpu.VMEM((tm, K), jnp.bfloat16)] if has_ln else []
    # With LN caching the N axis must be iterated per M-tile -> "arbitrary";
    # without LN both axes are independent -> both "parallel" (megacore).
    semantics = ("parallel", "arbitrary") if has_ln else ("parallel", "parallel")

    kern = _make_fused_kernel(has_ln=has_ln, has_bias=bias is not None,
                              has_res=residual is not None, activation=activation)

    return pl.pallas_call(
        kern,
        out_shape=jax.ShapeDtypeStruct((M, N), out_dtype),
        grid=grid,
        in_specs=in_specs,
        out_specs=pl.BlockSpec((tm, tn), lambda i, j: (i, j)),
        scratch_shapes=scratch,
        compiler_params=pltpu.CompilerParams(
            dimension_semantics=semantics,
            vmem_limit_bytes=_VMEM_LIMIT),
    )(*args)


# ---------------------- flash-style causal self-attention -------------------


def _flash_attn_kernel(q_ref, k_ref, v_ref, o_ref, m_sc, l_sc, acc_sc, *, scale):
    tq = q_ref.shape[2]
    tk = k_ref.shape[2]
    qi = pl.program_id(2)
    ki = pl.program_id(3)
    q_start = qi * tq
    k_start = ki * tk

    @pl.when(ki == 0)
    def _():
        m_sc[...] = jnp.full_like(m_sc, -1e30)
        l_sc[...] = jnp.zeros_like(l_sc)
        acc_sc[...] = jnp.zeros_like(acc_sc)

    # Skip KV tiles entirely above the causal diagonal (halves attention work).
    @pl.when(k_start <= q_start + tq - 1)
    def _():
        q = q_ref[0, 0]                       # (tq, hd) bf16
        k = k_ref[0, 0]                       # (tk, hd) bf16
        v = v_ref[0, 0]
        s = lax.dot_general(q, k, (((1,), (1,)), ((), ())),
                            preferred_element_type=jnp.float32) * scale  # (tq, tk)
        row = lax.broadcasted_iota(jnp.int32, (tq, tk), 0) + q_start
        col = lax.broadcasted_iota(jnp.int32, (tq, tk), 1) + k_start
        s = jnp.where(col <= row, s, -1e30)   # 2-D per-tile causal mask

        m_prev = m_sc[...]
        m_new = jnp.maximum(m_prev, jnp.max(s, axis=-1, keepdims=True))
        alpha = jnp.exp(m_prev - m_new)
        p = jnp.exp(s - m_new)
        l_sc[...] = alpha * l_sc[...] + jnp.sum(p, axis=-1, keepdims=True)
        acc_sc[...] = alpha * acc_sc[...] + jnp.dot(
            p.astype(v.dtype), v, preferred_element_type=jnp.float32)
        m_sc[...] = m_new

    @pl.when(ki == pl.num_programs(3) - 1)
    def _():
        # Output-side normalization: (tq, hd) multiplies instead of (tq, tk).
        o_ref[0, 0] = (acc_sc[...] *
                       pl.reciprocal(l_sc[...], approx=True)).astype(o_ref.dtype)


def causal_attention(q, k, v, scale, *, max_tq=256, max_tk=512):
    """q, k, v: (B, H, S, hd) bf16 -> (B, H, S, hd). Flash-style, tiled over S."""
    B, H, S, hd = q.shape
    tq = _pick_tile(S, max_tq)
    tk = _pick_tile(S, max_tk)
    grid = (B, H, S // tq, S // tk)
    kern = functools.partial(_flash_attn_kernel, scale=scale)
    return pl.pallas_call(
        kern,
        out_shape=jax.ShapeDtypeStruct((B, H, S, hd), q.dtype),
        grid=grid,
        in_specs=[
            pl.BlockSpec((1, 1, tq, hd), lambda b, h, qi, ki: (b, h, qi, 0)),
            pl.BlockSpec((1, 1, tk, hd), lambda b, h, qi, ki: (b, h, ki, 0)),
            pl.BlockSpec((1, 1, tk, hd), lambda b, h, qi, ki: (b, h, ki, 0)),
        ],
        out_specs=pl.BlockSpec((1, 1, tq, hd), lambda b, h, qi, ki: (b, h, qi, 0)),
        scratch_shapes=[pltpu.VMEM((tq, 1), jnp.float32),
                        pltpu.VMEM((tq, 1), jnp.float32),
                        pltpu.VMEM((tq, hd), jnp.float32)],
        compiler_params=pltpu.CompilerParams(
            dimension_semantics=("parallel", "parallel", "parallel", "arbitrary"),
            vmem_limit_bytes=_VMEM_LIMIT),
    )(q, k, v)


# -------------- fused final-LN + LM head + online cross-entropy -------------


def _lmhead_ce_kernel(x_ref, g_ref, bln_ref, w_ref, lbl_ref,
                      logits_ref, loss_ref,
                      xln_ref, m_sc, s_sc, p_sc, *, true_vocab):
    j = pl.program_id(1)
    tm = x_ref.shape[0]
    tv = w_ref.shape[1]

    @pl.when(j == 0)
    def _():
        # final LayerNorm, once per M-tile, cached in VMEM scratch
        xf = x_ref[...].astype(jnp.float32)
        mu = jnp.mean(xf, axis=-1, keepdims=True)
        var = jnp.mean(jnp.square(xf - mu), axis=-1, keepdims=True)
        xf = (xf - mu) * lax.rsqrt(var + 1e-5)
        xf = xf * g_ref[...] + bln_ref[...]
        xln_ref[...] = xf.astype(xln_ref.dtype)
        m_sc[...] = jnp.full_like(m_sc, -1e30)
        s_sc[...] = jnp.zeros_like(s_sc)
        p_sc[...] = jnp.zeros_like(p_sc)

    # tied LM head: LN(x) @ wte^T, one vocab tile per step (f32 accumulate)
    logits = jnp.dot(xln_ref[...], w_ref[...], preferred_element_type=jnp.float32)
    logits_ref[...] = logits

    labels = lbl_ref[...]                                       # (tm, 1) int32
    col = lax.broadcasted_iota(jnp.int32, (tm, tv), 1) + j * tv
    s = jnp.where(col < true_vocab, logits, -1e30)              # mask padded vocab

    # online logsumexp over vocab tiles
    m_prev = m_sc[...]
    m_new = jnp.maximum(m_prev, jnp.max(s, axis=-1, keepdims=True))
    s_sc[...] = s_sc[...] * jnp.exp(m_prev - m_new) + jnp.sum(
        jnp.exp(s - m_new), axis=-1, keepdims=True)
    m_sc[...] = m_new

    # accumulate the picked (label) logit
    onehot = (col == labels).astype(jnp.float32)
    p_sc[...] = p_sc[...] + jnp.sum(logits * onehot, axis=-1, keepdims=True)

    @pl.when(j == pl.num_programs(1) - 1)
    def _():
        lse = m_sc[...] + jnp.log(s_sc[...])
        valid = (labels != -100).astype(jnp.float32)             # ignore_index
        loss_ref[...] = (lse - p_sc[...]) * valid                # per-token CE


def lm_head_with_loss(h, wte_lm, lnf_g, lnf_b, labels_shifted, *, true_vocab,
                      max_tm=512, max_tv=512):
    """h: (M, D) bf16; wte_lm: (D, V_pad) bf16 (pre-transposed, 128-padded).

    Returns (logits (M, V) f32, per_token_loss (M, 1) f32).
    """
    M, D = h.shape
    Dw, V_pad = wte_lm.shape
    assert D == Dw
    tm = _pick_tile(M, max_tm)
    tv = _pick_tile(V_pad, max_tv)
    grid = (M // tm, V_pad // tv)

    kern = functools.partial(_lmhead_ce_kernel, true_vocab=true_vocab)
    logits, per_tok = pl.pallas_call(
        kern,
        out_shape=(jax.ShapeDtypeStruct((M, true_vocab), jnp.float32),
                   jax.ShapeDtypeStruct((M, 1), jnp.float32)),
        grid=grid,
        in_specs=[
            pl.BlockSpec((tm, D), lambda i, j: (i, 0)),
            pl.BlockSpec((1, D), lambda i, j: (0, 0)),
            pl.BlockSpec((1, D), lambda i, j: (0, 0)),
            pl.BlockSpec((D, tv), lambda i, j: (0, j)),
            pl.BlockSpec((tm, 1), lambda i, j: (i, 0)),
        ],
        out_specs=(pl.BlockSpec((tm, tv), lambda i, j: (i, j)),
                   pl.BlockSpec((tm, 1), lambda i, j: (i, 0))),
        scratch_shapes=[pltpu.VMEM((tm, D), jnp.bfloat16),
                        pltpu.VMEM((tm, 1), jnp.float32),
                        pltpu.VMEM((tm, 1), jnp.float32),
                        pltpu.VMEM((tm, 1), jnp.float32)],
        compiler_params=pltpu.CompilerParams(
            dimension_semantics=("parallel", "arbitrary"),
            vmem_limit_bytes=_VMEM_LIMIT),
    )(h, lnf_g, lnf_b, wte_lm, labels_shifted)
    return logits, per_tok


# ------------------------------- GPT-2 model --------------------------------


def init_params(key, cfg):
    V, D, L = cfg["vocab"], cfg["n_embd"], cfg["n_layer"]
    S_max = cfg["max_pos"]
    std = 0.02

    def nrm(k, shape):
        return (std * jax.random.normal(k, shape, dtype=jnp.float32)).astype(
            jnp.bfloat16)

    keys = jax.random.split(key, 2 + L)
    wte = nrm(keys[0], (V, D))
    # Pre-transposed, 128-padded tied LM-head weight (built once at init; no
    # per-step transpose and the vocab stays tiled even for non-128 vocabs).
    V_pad = _round_up(V, 128)
    if V_pad > V:
        wte_pad = jnp.concatenate(
            [wte, jnp.zeros((V_pad - V, D), jnp.bfloat16)], axis=0)
    else:
        wte_pad = wte
    params = {
        "wte": wte,
        "wte_lm": wte_pad.T,                         # (D, V_pad) bf16
        "wpe": nrm(keys[1], (S_max, D)),
        "lnf_g": jnp.ones((1, D), jnp.float32),
        "lnf_b": jnp.zeros((1, D), jnp.float32),
        "blocks": [],
    }
    for l in range(L):
        k0, k1, k2, k3 = jax.random.split(keys[2 + l], 4)
        params["blocks"].append({
            "ln1_g": jnp.ones((1, D), jnp.float32),
            "ln1_b": jnp.zeros((1, D), jnp.float32),
            "w_attn": nrm(k0, (D, 3 * D)),
            "b_attn": jnp.zeros((1, 3 * D), jnp.float32),
            "w_proj": nrm(k1, (D, D)),
            "b_proj": jnp.zeros((1, D), jnp.float32),
            "ln2_g": jnp.ones((1, D), jnp.float32),
            "ln2_b": jnp.zeros((1, D), jnp.float32),
            "w_fc": nrm(k2, (D, 4 * D)),
            "b_fc": jnp.zeros((1, 4 * D), jnp.float32),
            "w_mlp_proj": nrm(k3, (4 * D, D)),
            "b_mlp_proj": jnp.zeros((1, D), jnp.float32),
        })
    return params


def gpt2_forward(params, input_ids, lm_labels, cfg):
    B, S = input_ids.shape
    D, H, V = cfg["n_embd"], cfg["n_head"], cfg["vocab"]
    hd = D // H
    scale = 1.0 / (hd ** 0.5)

    # embeddings (gather = plain-JAX glue); residual stream kept in bf16
    x = (params["wte"][input_ids].astype(jnp.float32)
         + params["wpe"][:S][None, :, :].astype(jnp.float32))
    h = x.reshape(B * S, D).astype(jnp.bfloat16)

    def to_heads(t):                       # (B*S, D) -> (B, H, S, hd)
        return t.reshape(B, S, H, hd).transpose(0, 2, 1, 3)

    for blk in params["blocks"]:
        # fused LN -> QKV projection (+bias); LN computed once per M-tile
        qkv = fused_matmul(h, blk["w_attn"], bias=blk["b_attn"],
                           ln_gamma=blk["ln1_g"], ln_beta=blk["ln1_b"])
        # TODO(synk): head split/merge stays XLA glue; fusing (B,H,S,hd) layout
        # into the kernels needs sub-128-lane BlockSpecs (hd < 128).
        q, k, v = jnp.split(qkv, 3, axis=-1)
        o = causal_attention(to_heads(q), to_heads(k), to_heads(v), scale)
        o = o.transpose(0, 2, 1, 3).reshape(B * S, D)
        # fused attn-proj + bias + residual add
        h = fused_matmul(o, blk["w_proj"], bias=blk["b_proj"], residual=h)
        # fused LN -> FC -> GELU (dropout omitted: eval-mode identity)
        m = fused_matmul(h, blk["w_fc"], bias=blk["b_fc"],
                         ln_gamma=blk["ln2_g"], ln_beta=blk["ln2_b"],
                         activation="gelu")
        # fused MLP-proj + bias + residual add
        h = fused_matmul(m, blk["w_mlp_proj"], bias=blk["b_mlp_proj"],
                         residual=h)

    # HF GPT2LMHeadModel shift: label for row (b, s) is lm_labels[b, s+1];
    # the last position of each sequence is ignored (-100).
    if lm_labels is not None:
        shifted = jnp.concatenate(
            [lm_labels[:, 1:], jnp.full((B, 1), -100, lm_labels.dtype)], axis=1)
    else:
        shifted = jnp.full((B, S), -100, jnp.int32)
    shifted = shifted.reshape(B * S, 1).astype(jnp.int32)

    # fused final LN + tied LM head + online cross-entropy (logits written once,
    # never re-read from HBM for the loss)
    logits_2d, per_tok = lm_head_with_loss(
        h, params["wte_lm"], params["lnf_g"], params["lnf_b"], shifted,
        true_vocab=V)
    logits = logits_2d.reshape(B, S, V)

    loss = None
    if lm_labels is not None:
        valid = (shifted != -100).astype(jnp.float32)
        # exact division for the mean (no approx reciprocal on the loss scalar)
        loss = jnp.sum(per_tok) / jnp.maximum(jnp.sum(valid), 1.0)
    return loss, logits


class ResGen:
    """Synthetic stand-in for responseGeneration.model.ResGen."""

    def __init__(self, num_tokens, key=jax.random.PRNGKey(0)):
        # TODO(synk): no pretrained 'uer/gpt2-chinese-cluecorpussmall' weights;
        # a small deterministic GPT-2 (2 layers) is initialized instead.
        self.cfg = dict(vocab=num_tokens, n_embd=128, n_head=4, n_layer=2,
                        max_pos=64)
        self.params = init_params(key, self.cfg)
        self._fwd = jax.jit(functools.partial(gpt2_forward, cfg=self.cfg))

    def __call__(self, input_ids, lm_labels):
        loss_g, encode_state = self._fwd(self.params, input_ids, lm_labels)
        return loss_g, encode_state


# ---------------------------------- main ------------------------------------

if __name__ == "__main__":
    key = jax.random.PRNGKey(0)
    k_model, k_ids = jax.random.split(key)

    B, S, V = 2, 8, 256
    model = ResGen(num_tokens=V, key=k_model)

    input_ids = jax.random.randint(k_ids, (B, S), 0, V, dtype=jnp.int32)
    lm_labels = input_ids  # standard LM objective: labels == inputs

    loss_g, encode_state = model(input_ids, lm_labels)
    jax.block_until_ready((loss_g, encode_state))

    assert encode_state.shape == (B, S, V)
    assert loss_g.shape == () and bool(jnp.isfinite(loss_g))
    print("KERNEL_OK")
</pallas_src>

<mosaic_0001>
module attributes {stable_mosaic.version = 11 : i64} {
  func.func @kernel(%arg0: i32, %arg1: i32, %arg2: memref<16x128xbf16, #tpu.memory_space<vmem>>, %arg3: memref<1x128xf32, #tpu.memory_space<vmem>>, %arg4: memref<1x128xf32, #tpu.memory_space<vmem>>, %arg5: memref<128x384xbf16, #tpu.memory_space<vmem>>, %arg6: memref<1x384xf32, #tpu.memory_space<vmem>>, %arg7: memref<16x384xbf16, #tpu.memory_space<vmem>>, %arg8: memref<16x128xbf16, #tpu.memory_space<vmem>>) attributes {dimension_semantics = [#tpu.dimension_semantics<parallel>, #tpu.dimension_semantics<arbitrary>], iteration_bounds = array<i64: 1, 1>, scalar_prefetch = 0 : i64, scratch_operands = 1 : i64, tpu.core_type = #tpu.core_type<tc>, window_params = [{transform_indices = @transform_0, window_bounds = array<i64: 16, 128>}, {pipeline_mode = #tpu.pipeline_mode<synchronous>, transform_indices = @transform_1, window_bounds = array<i64: 1, 128>}, {pipeline_mode = #tpu.pipeline_mode<synchronous>, transform_indices = @transform_2, window_bounds = array<i64: 1, 128>}, {transform_indices = @transform_3, window_bounds = array<i64: 128, 384>}, {transform_indices = @transform_4, window_bounds = array<i64: 1, 384>}, {transform_indices = @transform_5, window_bounds = array<i64: 16, 384>}]} {
    %c0_i32 = arith.constant 0 : i32
    %0 = arith.cmpi eq, %arg1, %c0_i32 : i32
    %1 = arith.extui %0 : i1 to i32
    %c0_i32_0 = arith.constant 0 : i32
    %2 = arith.cmpi ne, %1, %c0_i32_0 : i32
    scf.if %2 {
      %c0_8 = arith.constant 0 : index
      %c0_9 = arith.constant 0 : index
      %11 = vector.load %arg2[%c0_8, %c0_9] : memref<16x128xbf16, #tpu.memory_space<vmem>>, vector<16x128xbf16>
      %12 = arith.extf %11 : vector<16x128xbf16> to vector<16x128xf32>
      %cst_10 = arith.constant dense<0.000000e+00> : vector<16xf32>
      %13 = vector.multi_reduction <add>, %12, %cst_10 [1] : vector<16x128xf32> to vector<16xf32>
      %14 = vector.shape_cast %13 : vector<16xf32> to vector<16x1xf32>
      %cst_11 = arith.constant 1.280000e+02 : f32
      %15 = vector.broadcast %cst_11 : f32 to vector<16x1xf32>
      %16 = arith.divf %14, %15 : vector<16x1xf32>
      %17 = vector.broadcast %16 : vector<16x1xf32> to vector<16x128xf32>
      %18 = arith.subf %12, %17 : vector<16x128xf32>
      %19 = arith.mulf %18, %18 : vector<16x128xf32>
      %cst_12 = arith.constant dense<0.000000e+00> : vector<16xf32>
      %20 = vector.multi_reduction <add>, %19, %cst_12 [1] : vector<16x128xf32> to vector<16xf32>
      %21 = vector.shape_cast %20 : vector<16xf32> to vector<16x1xf32>
      %cst_13 = arith.constant 1.280000e+02 : f32
      %22 = vector.broadcast %cst_13 : f32 to vector<16x1xf32>
      %23 = arith.divf %21, %22 : vector<16x1xf32>
      %24 = vector.broadcast %16 : vector<16x1xf32> to vector<16x128xf32>
      %25 = arith.subf %12, %24 : vector<16x128xf32>
      %cst_14 = arith.constant 9.99999974E-6 : f32
      %26 = vector.broadcast %cst_14 : f32 to vector<16x1xf32>
      %27 = arith.addf %23, %26 : vector<16x1xf32>
      %28 = math.rsqrt %27 : vector<16x1xf32>
      %29 = vector.broadcast %28 : vector<16x1xf32> to vector<16x128xf32>
      %30 = arith.mulf %25, %29 : vector<16x128xf32>
      %c0_15 = arith.constant 0 : index
      %c0_16 = arith.constant 0 : index
      %31 = vector.load %arg3[%c0_15, %c0_16] : memref<1x128xf32, #tpu.memory_space<vmem>>, vector<1x128xf32>
      %32 = vector.broadcast %31 : vector<1x128xf32> to vector<16x128xf32>
      %33 = arith.mulf %30, %32 : vector<16x128xf32>
      %c0_17 = arith.constant 0 : index
      %c0_18 = arith.constant 0 : index
      %34 = vector.load %arg4[%c0_17, %c0_18] : memref<1x128xf32, #tpu.memory_space<vmem>>, vector<1x128xf32>
      %35 = vector.broadcast %34 : vector<1x128xf32> to vector<16x128xf32>
      %36 = arith.addf %33, %35 : vector<16x128xf32>
      %37 = arith.truncf %36 : vector<16x128xf32> to vector<16x128xbf16>
      %c0_19 = arith.constant 0 : index
      %c0_20 = arith.constant 0 : index
      %38 = vector.load %arg8[%c0_19, %c0_20] : memref<16x128xbf16, #tpu.memory_space<vmem>>, vector<16x128xbf16>
      tpu.vector_store %arg8[%c0_19, %c0_20], %37 {strides = array<i32>} : memref<16x128xbf16, #tpu.memory_space<vmem>>, vector<16x128xbf16>,
    } else {
    }
    %c0 = arith.constant 0 : index
    %c0_1 = arith.constant 0 : index
    %3 = vector.load %arg8[%c0, %c0_1] : memref<16x128xbf16, #tpu.memory_space<vmem>>, vector<16x128xbf16>
    %c0_2 = arith.constant 0 : index
    %c0_3 = arith.constant 0 : index
    %4 = vector.load %arg5[%c0_2, %c0_3] : memref<128x384xbf16, #tpu.memory_space<vmem>>, vector<128x384xbf16>
    %cst = arith.constant dense<0.000000e+00> : vector<16x384xf32>
    %5 = tpu.matmul %3, %4, %cst {dimension_numbers = #tpu.dot_dimension_numbers<[1], [0], [0], [1], [0, 0, 1, 1], [], []>} : vector<16x128xbf16>, vector<128x384xbf16>, vector<16x384xf32> -> vector<16x384xf32>
    %c0_4 = arith.constant 0 : index
    %c0_5 = arith.constant 0 : index
    %6 = vector.load %arg6[%c0_4, %c0_5] : memref<1x384xf32, #tpu.memory_space<vmem>>, vector<1x384xf32>
    %7 = vector.broadcast %6 : vector<1x384xf32> to vector<16x384xf32>
    %8 = arith.addf %5, %7 : vector<16x384xf32>
    %9 = arith.truncf %8 : vector<16x384xf32> to vector<16x384xbf16>
    %c0_6 = arith.constant 0 : index
    %c0_7 = arith.constant 0 : index
    %10 = vector.load %arg7[%c0_6, %c0_7] : memref<16x384xbf16, #tpu.memory_space<vmem>>, vector<16x384xbf16>
    tpu.vector_store %arg7[%c0_6, %c0_7], %9 {strides = array<i32>} : memref<16x384xbf16, #tpu.memory_space<vmem>>, vector<16x384xbf16>,
    return
  }
  func.func @transform_0(%arg0: i32, %arg1: i32) -> (i32, i32) {
    %c0_i32 = arith.constant 0 : i32
    %c0_i32_0 = arith.constant 0 : i32
    return %arg0, %c0_i32 : i32, i32
  }
  func.func @transform_1(%arg0: i32, %arg1: i32) -> (i32, i32) {
    %c0_i32 = arith.constant 0 : i32
    %c0_i32_0 = arith.constant 0 : i32
    %c0_i32_1 = arith.constant 0 : i32
    return %c0_i32, %c0_i32_0 : i32, i32
  }
  func.func @transform_2(%arg0: i32, %arg1: i32) -> (i32, i32) {
    %c0_i32 = arith.constant 0 : i32
    %c0_i32_0 = arith.constant 0 : i32
    %c0_i32_1 = arith.constant 0 : i32
    return %c0_i32, %c0_i32_0 : i32, i32
  }
  func.func @transform_3(%arg0: i32, %arg1: i32) -> (i32, i32) {
    %c0_i32 = arith.constant 0 : i32
    %c0_i32_0 = arith.constant 0 : i32
    return %c0_i32, %arg1 : i32, i32
  }
  func.func @transform_4(%arg0: i32, %arg1: i32) -> (i32, i32) {
    %c0_i32 = arith.constant 0 : i32
    %c0_i32_0 = arith.constant 0 : i32
    return %c0_i32, %arg1 : i32, i32
  }
  func.func @transform_5(%arg0: i32, %arg1: i32) -> (i32, i32) {
    %c0_i32 = arith.constant 0 : i32
    return %arg0, %arg1 : i32, i32
  }
}

module attributes {stable_mosaic.version = 11 : i64} {
  func.func @_flash_attn_kernel(%arg0: i32, %arg1: i32, %arg2: i32, %arg3: i32, %arg4: memref<1x1x8x32xbf16, #tpu.memory_space<vmem>>, %arg5: memref<1x1x8x32xbf16, #tpu.memory_space<vmem>>, %arg6: memref<1x1x8x32xbf16, #tpu.memory_space<vmem>>, %arg7: memref<1x1x8x32xbf16, #tpu.memory_space<vmem>>, %arg8: memref<8x1xf32, #tpu.memory_space<vmem>>, %arg9: memref<8x1xf32, #tpu.memory_space<vmem>>, %arg10: memref<8x32xf32, #tpu.memory_space<vmem>>) attributes {dimension_semantics = [#tpu.dimension_semantics<parallel>, #tpu.dimension_semantics<parallel>, #tpu.dimension_semantics<parallel>, #tpu.dimension_semantics<arbitrary>], iteration_bounds = array<i64: 2, 4, 1, 1>, scalar_prefetch = 0 : i64, scratch_operands = 3 : i64, tpu.core_type = #tpu.core_type<tc>, window_params = [{transform_indices = @transform_0, window_bounds = array<i64: 1, 1, 8, 32>}, {transform_indices = @transform_1, window_bounds = array<i64: 1, 1, 8, 32>}, {transform_indices = @transform_2, window_bounds = array<i64: 1, 1, 8, 32>}, {transform_indices = @transform_3, window_bounds = array<i64: 1, 1, 8, 32>}]} {
    %c8_i32 = arith.constant 8 : i32
    %0 = arith.muli %arg2, %c8_i32 : i32
    %c8_i32_0 = arith.constant 8 : i32
    %1 = arith.muli %arg3, %c8_i32_0 : i32
    %c0_i32 = arith.constant 0 : i32
    %2 = arith.cmpi eq, %arg3, %c0_i32 : i32
    %3 = arith.extui %2 : i1 to i32
    %c0_i32_1 = arith.constant 0 : i32
    %4 = arith.cmpi ne, %3, %c0_i32_1 : i32
    scf.if %4 {
      %cst = arith.constant -1.000000e+30 : f32
      %13 = vector.broadcast %cst : f32 to vector<8x1xf32>
      %c0 = arith.constant 0 : index
      %c0_6 = arith.constant 0 : index
      %14 = vector.load %arg8[%c0, %c0_6] : memref<8x1xf32, #tpu.memory_space<vmem>>, vector<8x1xf32>
      tpu.vector_store %arg8[%c0, %c0_6], %13 {strides = array<i32>} : memref<8x1xf32, #tpu.memory_space<vmem>>, vector<8x1xf32>,
      %cst_7 = arith.constant 0.000000e+00 : f32
      %15 = vector.broadcast %cst_7 : f32 to vector<8x1xf32>
      %c0_8 = arith.constant 0 : index
      %c0_9 = arith.constant 0 : index
      %16 = vector.load %arg9[%c0_8, %c0_9] : memref<8x1xf32, #tpu.memory_space<vmem>>, vector<8x1xf32>
      tpu.vector_store %arg9[%c0_8, %c0_9], %15 {strides = array<i32>} : memref<8x1xf32, #tpu.memory_space<vmem>>, vector<8x1xf32>,
      %cst_10 = arith.constant 0.000000e+00 : f32
      %17 = vector.broadcast %cst_10 : f32 to vector<8x32xf32>
      %c0_11 = arith.constant 0 : index
      %c0_12 = arith.constant 0 : index
      %18 = vector.load %arg10[%c0_11, %c0_12] : memref<8x32xf32, #tpu.memory_space<vmem>>, vector<8x32xf32>
      tpu.vector_store %arg10[%c0_11, %c0_12], %17 {strides = array<i32>} : memref<8x32xf32, #tpu.memory_space<vmem>>, vector<8x32xf32>,
    } else {
    }
    %c8_i32_2 = arith.constant 8 : i32
    %5 = arith.addi %0, %c8_i32_2 : i32
    %c1_i32 = arith.constant 1 : i32
    %6 = arith.subi %5, %c1_i32 : i32
    %7 = arith.cmpi sle, %1, %6 : i32
    %8 = arith.extui %7 : i1 to i32
    %c0_i32_3 = arith.constant 0 : i32
    %9 = arith.cmpi ne, %8, %c0_i32_3 : i32
    scf.if %9 {
      %c0 = arith.constant 0 : index
      %c0_6 = arith.constant 0 : index
      %c0_7 = arith.constant 0 : index
      %c0_8 = arith.constant 0 : index
      %13 = vector.load %arg4[%c0, %c0_6, %c0_7, %c0_8] : memref<1x1x8x32xbf16, #tpu.memory_space<vmem>>, vector<1x1x8x32xbf16>
      %14 = vector.shape_cast %13 : vector<1x1x8x32xbf16> to vector<8x32xbf16>
      %c0_9 = arith.constant 0 : index
      %c0_10 = arith.constant 0 : index
      %c0_11 = arith.constant 0 : index
      %c0_12 = arith.constant 0 : index
      %15 = vector.load %arg5[%c0_9, %c0_10, %c0_11, %c0_12] : memref<1x1x8x32xbf16, #tpu.memory_space<vmem>>, vector<1x1x8x32xbf16>
      %16 = vector.shape_cast %15 : vector<1x1x8x32xbf16> to vector<8x32xbf16>
      %c0_13 = arith.constant 0 : index
      %c0_14 = arith.constant 0 : index
      %c0_15 = arith.constant 0 : index
      %c0_16 = arith.constant 0 : index
      %17 = vector.load %arg6[%c0_13, %c0_14, %c0_15, %c0_16] : memref<1x1x8x32xbf16, #tpu.memory_space<vmem>>, vector<1x1x8x32xbf16>
      %18 = vector.shape_cast %17 : vector<1x1x8x32xbf16> to vector<8x32xbf16>
      %cst = arith.constant dense<0.000000e+00> : vector<8x8xf32>
      %19 = tpu.matmul %14, %16, %cst {dimension_numbers = #tpu.dot_dimension_numbers<[1], [1], [0], [0], [0, 0, 1, 0], [], []>} : vector<8x32xbf16>, vector<8x32xbf16>, vector<8x8xf32> -> vector<8x8xf32>
      %cst_17 = arith.constant 0.176776692 : f32
      %20 = vector.broadcast %cst_17 : f32 to vector<8x8xf32>
      %21 = arith.mulf %19, %20 : vector<8x8xf32>
      %22 = tpu.iota {dimensions = array<i32: 0>} : vector<8x8xi32>
      %23 = vector.broadcast %0 : i32 to vector<8x8xi32>
      %24 = arith.addi %22, %23 : vector<8x8xi32>
      %25 = tpu.iota {dimensions = array<i32: 1>} : vector<8x8xi32>
      %26 = vector.broadcast %1 : i32 to vector<8x8xi32>
      %27 = arith.addi %25, %26 : vector<8x8xi32>
      %28 = arith.cmpi sle, %27, %24 : vector<8x8xi32>
      %cst_18 = arith.constant -1.000000e+30 : f32
      %29 = vector.broadcast %cst_18 : f32 to vector<8x8xf32>
      %30 = arith.select %28, %21, %29 : vector<8x8xi1>, vector<8x8xf32>
      %c0_19 = arith.constant 0 : index
      %c0_20 = arith.constant 0 : index
      %31 = vector.load %arg8[%c0_19, %c0_20] : memref<8x1xf32, #tpu.memory_space<vmem>>, vector<8x1xf32>
      %cst_21 = arith.constant dense<0xFF800000> : vector<8xf32>
      %32 = vector.multi_reduction <maximumf>, %30, %cst_21 [1] : vector<8x8xf32> to vector<8xf32>
      %33 = vector.shape_cast %32 : vector<8xf32> to vector<8x1xf32>
      %34 = arith.maximumf %31, %33 : vector<8x1xf32>
      %35 = arith.subf %31, %34 : vector<8x1xf32>
      %36 = math.exp %35 : vector<8x1xf32>
      %37 = vector.broadcast %34 : vector<8x1xf32> to vector<8x8xf32>
      %38 = arith.subf %30, %37 : vector<8x8xf32>
      %39 = math.exp %38 : vector<8x8xf32>
      %c0_22 = arith.constant 0 : index
      %c0_23 = arith.constant 0 : index
      %40 = vector.load %arg9[%c0_22, %c0_23] : memref<8x1xf32, #tpu.memory_space<vmem>>, vector<8x1xf32>
      %41 = arith.mulf %36, %40 : vector<8x1xf32>
      %cst_24 = arith.constant dense<0.000000e+00> : vector<8xf32>
      %42 = vector.multi_reduction <add>, %39, %cst_24 [1] : vector<8x8xf32> to vector<8xf32>
      %43 = vector.shape_cast %42 : vector<8xf32> to vector<8x1xf32>
      %44 = arith.addf %41, %43 : vector<8x1xf32>
      %c0_25 = arith.constant 0 : index
      %c0_26 = arith.constant 0 : index
      %45 = vector.load %arg9[%c0_25, %c0_26] : memref<8x1xf32, #tpu.memory_space<vmem>>, vector<8x1xf32>
      tpu.vector_store %arg9[%c0_25, %c0_26], %44 {strides = array<i32>} : memref<8x1xf32, #tpu.memory_space<vmem>>, vector<8x1xf32>,
      %c0_27 = arith.constant 0 : index
      %c0_28 = arith.constant 0 : index
      %46 = vector.load %arg10[%c0_27, %c0_28] : memref<8x32xf32, #tpu.memory_space<vmem>>, vector<8x32xf32>
      %47 = vector.broadcast %36 : vector<8x1xf32> to vector<8x32xf32>
      %48 = arith.mulf %47, %46 : vector<8x32xf32>
      %49 = arith.truncf %39 : vector<8x8xf32> to vector<8x8xbf16>
      %cst_29 = arith.constant dense<0.000000e+00> : vector<8x32xf32>
      %50 = tpu.matmul %49, %18, %cst_29 {dimension_numbers = #tpu.dot_dimension_numbers<[1], [0], [0], [1], [0, 0, 1, 1], [], []>} : vector<8x8xbf16>, vector<8x32xbf16>, vector<8x32xf32> -> vector<8x32xf32>
      %51 = arith.addf %48, %50 : vector<8x32xf32>
      %c0_30 = arith.constant 0 : index
      %c0_31 = arith.constant 0 : index
      %52 = vector.load %arg10[%c0_30, %c0_31] : memref<8x32xf32, #tpu.memory_space<vmem>>, vector<8x32xf32>
      tpu.vector_store %arg10[%c0_30, %c0_31], %51 {strides = array<i32>} : memref<8x32xf32, #tpu.memory_space<vmem>>, vector<8x32xf32>,
      %c0_32 = arith.constant 0 : index
      %c0_33 = arith.constant 0 : index
      %53 = vector.load %arg8[%c0_32, %c0_33] : memref<8x1xf32, #tpu.memory_space<vmem>>, vector<8x1xf32>
      tpu.vector_store %arg8[%c0_32, %c0_33], %34 {strides = array<i32>} : memref<8x1xf32, #tpu.memory_space<vmem>>, vector<8x1xf32>,
    } else {
    }
    %c0_i32_4 = arith.constant 0 : i32
    %10 = arith.cmpi eq, %arg3, %c0_i32_4 : i32
    %11 = arith.extui %10 : i1 to i32
    %c0_i32_5 = arith.constant 0 : i32
    %12 = arith.cmpi ne, %11, %c0_i32_5 : i32
    scf.if %12 {
      %c0 = arith.constant 0 : index
      %c0_6 = arith.constant 0 : index
      %13 = vector.load %arg10[%c0, %c0_6] : memref<8x32xf32, #tpu.memory_space<vmem>>, vector<8x32xf32>
      %c0_7 = arith.constant 0 : index
      %c0_8 = arith.constant 0 : index
      %14 = vector.load %arg9[%c0_7, %c0_8] : memref<8x1xf32, #tpu.memory_space<vmem>>, vector<8x1xf32>
      %15 = tpu.reciprocal %14 {approx = true} : vector<8x1xf32> -> vector<8x1xf32>
      %16 = vector.broadcast %15 : vector<8x1xf32> to vector<8x32xf32>
      %17 = arith.mulf %13, %16 : vector<8x32xf32>
      %18 = arith.truncf %17 : vector<8x32xf32> to vector<8x32xbf16>
      %c0_9 = arith.constant 0 : index
      %c0_10 = arith.constant 0 : index
      %c0_11 = arith.constant 0 : index
      %c0_12 = arith.constant 0 : index
      %19 = vector.load %arg7[%c0_9, %c0_10, %c0_11, %c0_12] : memref<1x1x8x32xbf16, #tpu.memory_space<vmem>>, vector<1x1x8x32xbf16>
      %20 = vector.shape_cast %19 : vector<1x1x8x32xbf16> to vector<8x32xbf16>
      %21 = vector.shape_cast %18 : vector<8x32xbf16> to vector<1x1x8x32xbf16>
      tpu.vector_store %arg7[%c0_9, %c0_10, %c0_11, %c0_12], %21 {strides = array<i32>} : memref<1x1x8x32xbf16, #tpu.memory_space<vmem>>, vector<1x1x8x32xbf16>,
    } else {
    }
    return
  }
  func.func @transform_0(%arg0: i32, %arg1: i32, %arg2: i32, %arg3: i32) -> (i32, i32, i32, i32) {
    %c0_i32 = arith.constant 0 : i32
    %c0_i32_0 = arith.constant 0 : i32
    return %arg0, %arg1, %arg2, %c0_i32 : i32, i32, i32, i32
  }
  func.func @transform_1(%arg0: i32, %arg1: i32, %arg2: i32, %arg3: i32) -> (i32, i32, i32, i32) {
    %c0_i32 = arith.constant 0 : i32
    %c0_i32_0 = arith.constant 0 : i32
    return %arg0, %arg1, %arg3, %c0_i32 : i32, i32, i32, i32
  }
  func.func @transform_2(%arg0: i32, %arg1: i32, %arg2: i32, %arg3: i32) -> (i32, i32, i32, i32) {
    %c0_i32 = arith.constant 0 : i32
    %c0_i32_0 = arith.constant 0 : i32
    return %arg0, %arg1, %arg3, %c0_i32 : i32, i32, i32, i32
  }
  func.func @transform_3(%arg0: i32, %arg1: i32, %arg2: i32, %arg3: i32) -> (i32, i32, i32, i32) {
    %c0_i32 = arith.constant 0 : i32
    %c0_i32_0 = arith.constant 0 : i32
    return %arg0, %arg1, %arg2, %c0_i32 : i32, i32, i32, i32
  }
}

module attributes {stable_mosaic.version = 11 : i64} {
  func.func @kernel(%arg0: i32, %arg1: i32, %arg2: memref<16x128xbf16, #tpu.memory_space<vmem>>, %arg3: memref<128x128xbf16, #tpu.memory_space<vmem>>, %arg4: memref<1x128xf32, #tpu.memory_space<vmem>>, %arg5: memref<16x128xbf16, #tpu.memory_space<vmem>>, %arg6: memref<16x128xbf16, #tpu.memory_space<vmem>>) attributes {dimension_semantics = [#tpu.dimension_semantics<parallel>, #tpu.dimension_semantics<parallel>], iteration_bounds = array<i64: 1, 1>, scalar_prefetch = 0 : i64, scratch_operands = 0 : i64, tpu.core_type = #tpu.core_type<tc>, window_params = [{transform_indices = @transform_0, window_bounds = array<i64: 16, 128>}, {transform_indices = @transform_1, window_bounds = array<i64: 128, 128>}, {transform_indices = @transform_2, window_bounds = array<i64: 1, 128>}, {transform_indices = @transform_3, window_bounds = array<i64: 16, 128>}, {transform_indices = @transform_4, window_bounds = array<i64: 16, 128>}]} {
    %c0 = arith.constant 0 : index
    %c0_0 = arith.constant 0 : index
    %0 = vector.load %arg2[%c0, %c0_0] : memref<16x128xbf16, #tpu.memory_space<vmem>>, vector<16x128xbf16>
    %c0_1 = arith.constant 0 : index
    %c0_2 = arith.constant 0 : index
    %1 = vector.load %arg3[%c0_1, %c0_2] : memref<128x128xbf16, #tpu.memory_space<vmem>>, vector<128x128xbf16>
    %cst = arith.constant dense<0.000000e+00> : vector<16x128xf32>
    %2 = tpu.matmul %0, %1, %cst {dimension_numbers = #tpu.dot_dimension_numbers<[1], [0], [0], [1], [0, 0, 1, 1], [], []>} : vector<16x128xbf16>, vector<128x128xbf16>, vector<16x128xf32> -> vector<16x128xf32>
    %c0_3 = arith.constant 0 : index
    %c0_4 = arith.constant 0 : index
    %3 = vector.load %arg4[%c0_3, %c0_4] : memref<1x128xf32, #tpu.memory_space<vmem>>, vector<1x128xf32>
    %4 = vector.broadcast %3 : vector<1x128xf32> to vector<16x128xf32>
    %5 = arith.addf %2, %4 : vector<16x128xf32>
    %c0_5 = arith.constant 0 : index
    %c0_6 = arith.constant 0 : index
    %6 = vector.load %arg5[%c0_5, %c0_6] : memref<16x128xbf16, #tpu.memory_space<vmem>>, vector<16x128xbf16>
    %7 = arith.extf %6 : vector<16x128xbf16> to vector<16x128xf32>
    %8 = arith.addf %5, %7 : vector<16x128xf32>
    %9 = arith.truncf %8 : vector<16x128xf32> to vector<16x128xbf16>
    %c0_7 = arith.constant 0 : index
    %c0_8 = arith.constant 0 : index
    %10 = vector.load %arg6[%c0_7, %c0_8] : memref<16x128xbf16, #tpu.memory_space<vmem>>, vector<16x128xbf16>
    tpu.vector_store %arg6[%c0_7, %c0_8], %9 {strides = array<i32>} : memref<16x128xbf16, #tpu.memory_space<vmem>>, vector<16x128xbf16>,
    return
  }
  func.func @transform_0(%arg0: i32, %arg1: i32) -> (i32, i32) {
    %c0_i32 = arith.constant 0 : i32
    %c0_i32_0 = arith.constant 0 : i32
    return %arg0, %c0_i32 : i32, i32
  }
  func.func @transform_1(%arg0: i32, %arg1: i32) -> (i32, i32) {
    %c0_i32 = arith.constant 0 : i32
    %c0_i32_0 = arith.constant 0 : i32
    return %c0_i32, %arg1 : i32, i32
  }
  func.func @transform_2(%arg0: i32, %arg1: i32) -> (i32, i32) {
    %c0_i32 = arith.constant 0 : i32
    %c0_i32_0 = arith.constant 0 : i32
    return %c0_i32, %arg1 : i32, i32
  }
  func.func @transform_3(%arg0: i32, %arg1: i32) -> (i32, i32) {
    %c0_i32 = arith.constant 0 : i32
    return %arg0, %arg1 : i32, i32
  }
  func.func @transform_4(%arg0: i32, %arg1: i32) -> (i32, i32) {
    %c0_i32 = arith.constant 0 : i32
    return %arg0, %arg1 : i32, i32
  }
}

module attributes {stable_mosaic.version = 11 : i64} {
  func.func @kernel(%arg0: i32, %arg1: i32, %arg2: memref<16x128xbf16, #tpu.memory_space<vmem>>, %arg3: memref<1x128xf32, #tpu.memory_space<vmem>>, %arg4: memref<1x128xf32, #tpu.memory_space<vmem>>, %arg5: memref<128x512xbf16, #tpu.memory_space<vmem>>, %arg6: memref<1x512xf32, #tpu.memory_space<vmem>>, %arg7: memref<16x512xbf16, #tpu.memory_space<vmem>>, %arg8: memref<16x128xbf16, #tpu.memory_space<vmem>>) attributes {dimension_semantics = [#tpu.dimension_semantics<parallel>, #tpu.dimension_semantics<arbitrary>], iteration_bounds = array<i64: 1, 1>, scalar_prefetch = 0 : i64, scratch_operands = 1 : i64, tpu.core_type = #tpu.core_type<tc>, window_params = [{transform_indices = @transform_0, window_bounds = array<i64: 16, 128>}, {pipeline_mode = #tpu.pipeline_mode<synchronous>, transform_indices = @transform_1, window_bounds = array<i64: 1, 128>}, {pipeline_mode = #tpu.pipeline_mode<synchronous>, transform_indices = @transform_2, window_bounds = array<i64: 1, 128>}, {transform_indices = @transform_3, window_bounds = array<i64: 128, 512>}, {transform_indices = @transform_4, window_bounds = array<i64: 1, 512>}, {transform_indices = @transform_5, window_bounds = array<i64: 16, 512>}]} {
    %c0_i32 = arith.constant 0 : i32
    %0 = arith.cmpi eq, %arg1, %c0_i32 : i32
    %1 = arith.extui %0 : i1 to i32
    %c0_i32_0 = arith.constant 0 : i32
    %2 = arith.cmpi ne, %1, %c0_i32_0 : i32
    scf.if %2 {
      %c0_12 = arith.constant 0 : index
      %c0_13 = arith.constant 0 : index
      %24 = vector.load %arg2[%c0_12, %c0_13] : memref<16x128xbf16, #tpu.memory_space<vmem>>, vector<16x128xbf16>
      %25 = arith.extf %24 : vector<16x128xbf16> to vector<16x128xf32>
      %cst_14 = arith.constant dense<0.000000e+00> : vector<16xf32>
      %26 = vector.multi_reduction <add>, %25, %cst_14 [1] : vector<16x128xf32> to vector<16xf32>
      %27 = vector.shape_cast %26 : vector<16xf32> to vector<16x1xf32>
      %cst_15 = arith.constant 1.280000e+02 : f32
      %28 = vector.broadcast %cst_15 : f32 to vector<16x1xf32>
      %29 = arith.divf %27, %28 : vector<16x1xf32>
      %30 = vector.broadcast %29 : vector<16x1xf32> to vector<16x128xf32>
      %31 = arith.subf %25, %30 : vector<16x128xf32>
      %32 = arith.mulf %31, %31 : vector<16x128xf32>
      %cst_16 = arith.constant dense<0.000000e+00> : vector<16xf32>
      %33 = vector.multi_reduction <add>, %32, %cst_16 [1] : vector<16x128xf32> to vector<16xf32>
      %34 = vector.shape_cast %33 : vector<16xf32> to vector<16x1xf32>
      %cst_17 = arith.constant 1.280000e+02 : f32
      %35 = vector.broadcast %cst_17 : f32 to vector<16x1xf32>
      %36 = arith.divf %34, %35 : vector<16x1xf32>
      %37 = vector.broadcast %29 : vector<16x1xf32> to vector<16x128xf32>
      %38 = arith.subf %25, %37 : vector<16x128xf32>
      %cst_18 = arith.constant 9.99999974E-6 : f32
      %39 = vector.broadcast %cst_18 : f32 to vector<16x1xf32>
      %40 = arith.addf %36, %39 : vector<16x1xf32>
      %41 = math.rsqrt %40 : vector<16x1xf32>
      %42 = vector.broadcast %41 : vector<16x1xf32> to vector<16x128xf32>
      %43 = arith.mulf %38, %42 : vector<16x128xf32>
      %c0_19 = arith.constant 0 : index
      %c0_20 = arith.constant 0 : index
      %44 = vector.load %arg3[%c0_19, %c0_20] : memref<1x128xf32, #tpu.memory_space<vmem>>, vector<1x128xf32>
      %45 = vector.broadcast %44 : vector<1x128xf32> to vector<16x128xf32>
      %46 = arith.mulf %43, %45 : vector<16x128xf32>
      %c0_21 = arith.constant 0 : index
      %c0_22 = arith.constant 0 : index
      %47 = vector.load %arg4[%c0_21, %c0_22] : memref<1x128xf32, #tpu.memory_space<vmem>>, vector<1x128xf32>
      %48 = vector.broadcast %47 : vector<1x128xf32> to vector<16x128xf32>
      %49 = arith.addf %46, %48 : vector<16x128xf32>
      %50 = arith.truncf %49 : vector<16x128xf32> to vector<16x128xbf16>
      %c0_23 = arith.constant 0 : index
      %c0_24 = arith.constant 0 : index
      %51 = vector.load %arg8[%c0_23, %c0_24] : memref<16x128xbf16, #tpu.memory_space<vmem>>, vector<16x128xbf16>
      tpu.vector_store %arg8[%c0_23, %c0_24], %50 {strides = array<i32>} : memref<16x128xbf16, #tpu.memory_space<vmem>>, vector<16x128xbf16>,
    } else {
    }
    %c0 = arith.constant 0 : index
    %c0_1 = arith.constant 0 : index
    %3 = vector.load %arg8[%c0, %c0_1] : memref<16x128xbf16, #tpu.memory_space<vmem>>, vector<16x128xbf16>
    %c0_2 = arith.constant 0 : index
    %c0_3 = arith.constant 0 : index
    %4 = vector.load %arg5[%c0_2, %c0_3] : memref<128x512xbf16, #tpu.memory_space<vmem>>, vector<128x512xbf16>
    %cst = arith.constant dense<0.000000e+00> : vector<16x512xf32>
    %5 = tpu.matmul %3, %4, %cst {dimension_numbers = #tpu.dot_dimension_numbers<[1], [0], [0], [1], [0, 0, 1, 1], [], []>} : vector<16x128xbf16>, vector<128x512xbf16>, vector<16x512xf32> -> vector<16x512xf32>
    %c0_4 = arith.constant 0 : index
    %c0_5 = arith.constant 0 : index
    %6 = vector.load %arg6[%c0_4, %c0_5] : memref<1x512xf32, #tpu.memory_space<vmem>>, vector<1x512xf32>
    %7 = vector.broadcast %6 : vector<1x512xf32> to vector<16x512xf32>
    %8 = arith.addf %5, %7 : vector<16x512xf32>
    %cst_6 = arith.constant 5.000000e-01 : f32
    %9 = vector.broadcast %cst_6 : f32 to vector<16x512xf32>
    %10 = arith.mulf %9, %8 : vector<16x512xf32>
    %cst_7 = arith.constant 4.471500e-02 : f32
    %11 = vector.broadcast %cst_7 : f32 to vector<16x512xf32>
    %12 = arith.mulf %11, %8 : vector<16x512xf32>
    %13 = arith.mulf %12, %8 : vector<16x512xf32>
    %14 = arith.mulf %13, %8 : vector<16x512xf32>
    %15 = arith.addf %8, %14 : vector<16x512xf32>
    %cst_8 = arith.constant 0.797884583 : f32
    %16 = vector.broadcast %cst_8 : f32 to vector<16x512xf32>
    %17 = arith.mulf %16, %15 : vector<16x512xf32>
    %18 = math.tanh %17 : vector<16x512xf32>
    %cst_9 = arith.constant 1.000000e+00 : f32
    %19 = vector.broadcast %cst_9 : f32 to vector<16x512xf32>
    %20 = arith.addf %19, %18 : vector<16x512xf32>
    %21 = arith.mulf %10, %20 : vector<16x512xf32>
    %22 = arith.truncf %21 : vector<16x512xf32> to vector<16x512xbf16>
    %c0_10 = arith.constant 0 : index
    %c0_11 = arith.constant 0 : index
    %23 = vector.load %arg7[%c0_10, %c0_11] : memref<16x512xbf16, #tpu.memory_space<vmem>>, vector<16x512xbf16>
    tpu.vector_store %arg7[%c0_10, %c0_11], %22 {strides = array<i32>} : memref<16x512xbf16, #tpu.memory_space<vmem>>, vector<16x512xbf16>,
    return
  }
  func.func @transform_0(%arg0: i32, %arg1: i32) -> (i32, i32) {
    %c0_i32 = arith.constant 0 : i32
    %c0_i32_0 = arith.constant 0 : i32
    return %arg0, %c0_i32 : i32, i32
  }
  func.func @transform_1(%arg0: i32, %arg1: i32) -> (i32, i32) {
    %c0_i32 = arith.constant 0 : i32
    %c0_i32_0 = arith.constant 0 : i32
    %c0_i32_1 = arith.constant 0 : i32
    return %c0_i32, %c0_i32_0 : i32, i32
  }
  func.func @transform_2(%arg0: i32, %arg1: i32) -> (i32, i32) {
    %c0_i32 = arith.constant 0 : i32
    %c0_i32_0 = arith.constant 0 : i32
    %c0_i32_1 = arith.constant 0 : i32
    return %c0_i32, %c0_i32_0 : i32, i32
  }
  func.func @transform_3(%arg0: i32, %arg1: i32) -> (i32, i32) {
    %c0_i32 = arith.constant 0 : i32
    %c0_i32_0 = arith.constant 0 : i32
    return %c0_i32, %arg1 : i32, i32
  }
  func.func @transform_4(%arg0: i32, %arg1: i32) -> (i32, i32) {
    %c0_i32 = arith.constant 0 : i32
    %c0_i32_0 = arith.constant 0 : i32
    return %c0_i32, %arg1 : i32, i32
  }
  func.func @transform_5(%arg0: i32, %arg1: i32) -> (i32, i32) {
    %c0_i32 = arith.constant 0 : i32
    return %arg0, %arg1 : i32, i32
  }
}

module attributes {stable_mosaic.version = 11 : i64} {
  func.func @kernel(%arg0: i32, %arg1: i32, %arg2: memref<16x512xbf16, #tpu.memory_space<vmem>>, %arg3: memref<512x128xbf16, #tpu.memory_space<vmem>>, %arg4: memref<1x128xf32, #tpu.memory_space<vmem>>, %arg5: memref<16x128xbf16, #tpu.memory_space<vmem>>, %arg6: memref<16x128xbf16, #tpu.memory_space<vmem>>) attributes {dimension_semantics = [#tpu.dimension_semantics<parallel>, #tpu.dimension_semantics<parallel>], iteration_bounds = array<i64: 1, 1>, scalar_prefetch = 0 : i64, scratch_operands = 0 : i64, tpu.core_type = #tpu.core_type<tc>, window_params = [{transform_indices = @transform_0, window_bounds = array<i64: 16, 512>}, {transform_indices = @transform_1, window_bounds = array<i64: 512, 128>}, {transform_indices = @transform_2, window_bounds = array<i64: 1, 128>}, {transform_indices = @transform_3, window_bounds = array<i64: 16, 128>}, {transform_indices = @transform_4, window_bounds = array<i64: 16, 128>}]} {
    %c0 = arith.constant 0 : index
    %c0_0 = arith.constant 0 : index
    %0 = vector.load %arg2[%c0, %c0_0] : memref<16x512xbf16, #tpu.memory_space<vmem>>, vector<16x512xbf16>
    %c0_1 = arith.constant 0 : index
    %c0_2 = arith.constant 0 : index
    %1 = vector.load %arg3[%c0_1, %c0_2] : memref<512x128xbf16, #tpu.memory_space<vmem>>, vector<512x128xbf16>
    %cst = arith.constant dense<0.000000e+00> : vector<16x128xf32>
    %2 = tpu.matmul %0, %1, %cst {dimension_numbers = #tpu.dot_dimension_numbers<[1], [0], [0], [1], [0, 0, 1, 1], [], []>} : vector<16x512xbf16>, vector<512x128xbf16>, vector<16x128xf32> -> vector<16x128xf32>
    %c0_3 = arith.constant 0 : index
    %c0_4 = arith.constant 0 : index
    %3 = vector.load %arg4[%c0_3, %c0_4] : memref<1x128xf32, #tpu.memory_space<vmem>>, vector<1x128xf32>
    %4 = vector.broadcast %3 : vector<1x128xf32> to vector<16x128xf32>
    %5 = arith.addf %2, %4 : vector<16x128xf32>
    %c0_5 = arith.constant 0 : index
    %c0_6 = arith.constant 0 : index
    %6 = vector.load %arg5[%c0_5, %c0_6] : memref<16x128xbf16, #tpu.memory_space<vmem>>, vector<16x128xbf16>
    %7 = arith.extf %6 : vector<16x128xbf16> to vector<16x128xf32>
    %8 = arith.addf %5, %7 : vector<16x128xf32>
    %9 = arith.truncf %8 : vector<16x128xf32> to vector<16x128xbf16>
    %c0_7 = arith.constant 0 : index
    %c0_8 = arith.constant 0 : index
    %10 = vector.load %arg6[%c0_7, %c0_8] : memref<16x128xbf16, #tpu.memory_space<vmem>>, vector<16x128xbf16>
    tpu.vector_store %arg6[%c0_7, %c0_8], %9 {strides = array<i32>} : memref<16x128xbf16, #tpu.memory_space<vmem>>, vector<16x128xbf16>,
    return
  }
  func.func @transform_0(%arg0: i32, %arg1: i32) -> (i32, i32) {
    %c0_i32 = arith.constant 0 : i32
    %c0_i32_0 = arith.constant 0 : i32
    return %arg0, %c0_i32 : i32, i32
  }
  func.func @transform_1(%arg0: i32, %arg1: i32) -> (i32, i32) {
    %c0_i32 = arith.constant 0 : i32
    %c0_i32_0 = arith.constant 0 : i32
    return %c0_i32, %arg1 : i32, i32
  }
  func.func @transform_2(%arg0: i32, %arg1: i32) -> (i32, i32) {
    %c0_i32 = arith.constant 0 : i32
    %c0_i32_0 = arith.constant 0 : i32
    return %c0_i32, %arg1 : i32, i32
  }
  func.func @transform_3(%arg0: i32, %arg1: i32) -> (i32, i32) {
    %c0_i32 = arith.constant 0 : i32
    return %arg0, %arg1 : i32, i32
  }
  func.func @transform_4(%arg0: i32, %arg1: i32) -> (i32, i32) {
    %c0_i32 = arith.constant 0 : i32
    return %arg0, %arg1 : i32, i32
  }
}

module attributes {stable_mosaic.version = 11 : i64} {
  func.func @_lmhead_ce_kernel(%arg0: i32, %arg1: i32, %arg2: memref<16x128xbf16, #tpu.memory_space<vmem>>, %arg3: memref<1x128xf32, #tpu.memory_space<vmem>>, %arg4: memref<1x128xf32, #tpu.memory_space<vmem>>, %arg5: memref<128x256xbf16, #tpu.memory_space<vmem>>, %arg6: memref<16x1xi32, #tpu.memory_space<vmem>>, %arg7: memref<16x256xf32, #tpu.memory_space<vmem>>, %arg8: memref<16x1xf32, #tpu.memory_space<vmem>>, %arg9: memref<16x128xbf16, #tpu.memory_space<vmem>>, %arg10: memref<16x1xf32, #tpu.memory_space<vmem>>, %arg11: memref<16x1xf32, #tpu.memory_space<vmem>>, %arg12: memref<16x1xf32, #tpu.memory_space<vmem>>) attributes {dimension_semantics = [#tpu.dimension_semantics<parallel>, #tpu.dimension_semantics<arbitrary>], iteration_bounds = array<i64: 1, 1>, scalar_prefetch = 0 : i64, scratch_operands = 4 : i64, tpu.core_type = #tpu.core_type<tc>, window_params = [{transform_indices = @transform_0, window_bounds = array<i64: 16, 128>}, {pipeline_mode = #tpu.pipeline_mode<synchronous>, transform_indices = @transform_1, window_bounds = array<i64: 1, 128>}, {pipeline_mode = #tpu.pipeline_mode<synchronous>, transform_indices = @transform_2, window_bounds = array<i64: 1, 128>}, {transform_indices = @transform_3, window_bounds = array<i64: 128, 256>}, {transform_indices = @transform_4, window_bounds = array<i64: 16, 1>}, {transform_indices = @transform_5, window_bounds = array<i64: 16, 256>}, {transform_indices = @transform_6, window_bounds = array<i64: 16, 1>}]} {
    %c0_i32 = arith.constant 0 : i32
    %0 = arith.cmpi eq, %arg1, %c0_i32 : i32
    %1 = arith.extui %0 : i1 to i32
    %c0_i32_0 = arith.constant 0 : i32
    %2 = arith.cmpi ne, %1, %c0_i32_0 : i32
    scf.if %2 {
      %c0_27 = arith.constant 0 : index
      %c0_28 = arith.constant 0 : index
      %45 = vector.load %arg2[%c0_27, %c0_28] : memref<16x128xbf16, #tpu.memory_space<vmem>>, vector<16x128xbf16>
      %46 = arith.extf %45 : vector<16x128xbf16> to vector<16x128xf32>
      %cst_29 = arith.constant dense<0.000000e+00> : vector<16xf32>
      %47 = vector.multi_reduction <add>, %46, %cst_29 [1] : vector<16x128xf32> to vector<16xf32>
      %48 = vector.shape_cast %47 : vector<16xf32> to vector<16x1xf32>
      %cst_30 = arith.constant 1.280000e+02 : f32
      %49 = vector.broadcast %cst_30 : f32 to vector<16x1xf32>
      %50 = arith.divf %48, %49 : vector<16x1xf32>
      %51 = vector.broadcast %50 : vector<16x1xf32> to vector<16x128xf32>
      %52 = arith.subf %46, %51 : vector<16x128xf32>
      %53 = arith.mulf %52, %52 : vector<16x128xf32>
      %cst_31 = arith.constant dense<0.000000e+00> : vector<16xf32>
      %54 = vector.multi_reduction <add>, %53, %cst_31 [1] : vector<16x128xf32> to vector<16xf32>
      %55 = vector.shape_cast %54 : vector<16xf32> to vector<16x1xf32>
      %cst_32 = arith.constant 1.280000e+02 : f32
      %56 = vector.broadcast %cst_32 : f32 to vector<16x1xf32>
      %57 = arith.divf %55, %56 : vector<16x1xf32>
      %58 = vector.broadcast %50 : vector<16x1xf32> to vector<16x128xf32>
      %59 = arith.subf %46, %58 : vector<16x128xf32>
      %cst_33 = arith.constant 9.99999974E-6 : f32
      %60 = vector.broadcast %cst_33 : f32 to vector<16x1xf32>
      %61 = arith.addf %57, %60 : vector<16x1xf32>
      %62 = math.rsqrt %61 : vector<16x1xf32>
      %63 = vector.broadcast %62 : vector<16x1xf32> to vector<16x128xf32>
      %64 = arith.mulf %59, %63 : vector<16x128xf32>
      %c0_34 = arith.constant 0 : index
      %c0_35 = arith.constant 0 : index
      %65 = vector.load %arg3[%c0_34, %c0_35] : memref<1x128xf32, #tpu.memory_space<vmem>>, vector<1x128xf32>
      %66 = vector.broadcast %65 : vector<1x128xf32> to vector<16x128xf32>
      %67 = arith.mulf %64, %66 : vector<16x128xf32>
      %c0_36 = arith.constant 0 : index
      %c0_37 = arith.constant 0 : index
      %68 = vector.load %arg4[%c0_36, %c0_37] : memref<1x128xf32, #tpu.memory_space<vmem>>, vector<1x128xf32>
      %69 = vector.broadcast %68 : vector<1x128xf32> to vector<16x128xf32>
      %70 = arith.addf %67, %69 : vector<16x128xf32>
      %71 = arith.truncf %70 : vector<16x128xf32> to vector<16x128xbf16>
      %c0_38 = arith.constant 0 : index
      %c0_39 = arith.constant 0 : index
      %72 = vector.load %arg9[%c0_38, %c0_39] : memref<16x128xbf16, #tpu.memory_space<vmem>>, vector<16x128xbf16>
      tpu.vector_store %arg9[%c0_38, %c0_39], %71 {strides = array<i32>} : memref<16x128xbf16, #tpu.memory_space<vmem>>, vector<16x128xbf16>,
      %cst_40 = arith.constant -1.000000e+30 : f32
      %73 = vector.broadcast %cst_40 : f32 to vector<16x1xf32>
      %c0_41 = arith.constant 0 : index
      %c0_42 = arith.constant 0 : index
      %74 = vector.load %arg10[%c0_41, %c0_42] : memref<16x1xf32, #tpu.memory_space<vmem>>, vector<16x1xf32>
      tpu.vector_store %arg10[%c0_41, %c0_42], %73 {strides = array<i32>} : memref<16x1xf32, #tpu.memory_space<vmem>>, vector<16x1xf32>,
      %cst_43 = arith.constant 0.000000e+00 : f32
      %75 = vector.broadcast %cst_43 : f32 to vector<16x1xf32>
      %c0_44 = arith.constant 0 : index
      %c0_45 = arith.constant 0 : index
      %76 = vector.load %arg11[%c0_44, %c0_45] : memref<16x1xf32, #tpu.memory_space<vmem>>, vector<16x1xf32>
      tpu.vector_store %arg11[%c0_44, %c0_45], %75 {strides = array<i32>} : memref<16x1xf32, #tpu.memory_space<vmem>>, vector<16x1xf32>,
      %cst_46 = arith.constant 0.000000e+00 : f32
      %77 = vector.broadcast %cst_46 : f32 to vector<16x1xf32>
      %c0_47 = arith.constant 0 : index
      %c0_48 = arith.constant 0 : index
      %78 = vector.load %arg12[%c0_47, %c0_48] : memref<16x1xf32, #tpu.memory_space<vmem>>, vector<16x1xf32>
      tpu.vector_store %arg12[%c0_47, %c0_48], %77 {strides = array<i32>} : memref<16x1xf32, #tpu.memory_space<vmem>>, vector<16x1xf32>,
    } else {
    }
    %c0 = arith.constant 0 : index
    %c0_1 = arith.constant 0 : index
    %3 = vector.load %arg9[%c0, %c0_1] : memref<16x128xbf16, #tpu.memory_space<vmem>>, vector<16x128xbf16>
    %c0_2 = arith.constant 0 : index
    %c0_3 = arith.constant 0 : index
    %4 = vector.load %arg5[%c0_2, %c0_3] : memref<128x256xbf16, #tpu.memory_space<vmem>>, vector<128x256xbf16>
    %cst = arith.constant dense<0.000000e+00> : vector<16x256xf32>
    %5 = tpu.matmul %3, %4, %cst {dimension_numbers = #tpu.dot_dimension_numbers<[1], [0], [0], [1], [0, 0, 1, 1], [], []>} : vector<16x128xbf16>, vector<128x256xbf16>, vector<16x256xf32> -> vector<16x256xf32>
    %c0_4 = arith.constant 0 : index
    %c0_5 = arith.constant 0 : index
    %6 = vector.load %arg7[%c0_4, %c0_5] : memref<16x256xf32, #tpu.memory_space<vmem>>, vector<16x256xf32>
    tpu.vector_store %arg7[%c0_4, %c0_5], %5 {strides = array<i32>} : memref<16x256xf32, #tpu.memory_space<vmem>>, vector<16x256xf32>,
    %c0_6 = arith.constant 0 : index
    %c0_7 = arith.constant 0 : index
    %7 = vector.load %arg6[%c0_6, %c0_7] : memref<16x1xi32, #tpu.memory_space<vmem>>, vector<16x1xi32>
    %8 = tpu.iota {dimensions = array<i32: 1>} : vector<16x256xi32>
    %c256_i32 = arith.constant 256 : i32
    %9 = arith.muli %arg1, %c256_i32 : i32
    %10 = vector.broadcast %9 : i32 to vector<16x256xi32>
    %11 = arith.addi %8, %10 : vector<16x256xi32>
    %c256_i32_8 = arith.constant 256 : i32
    %12 = vector.broadcast %c256_i32_8 : i32 to vector<16x256xi32>
    %13 = arith.cmpi slt, %11, %12 : vector<16x256xi32>
    %cst_9 = arith.constant -1.000000e+30 : f32
    %14 = vector.broadcast %cst_9 : f32 to vector<16x256xf32>
    %15 = arith.select %13, %5, %14 : vector<16x256xi1>, vector<16x256xf32>
    %c0_10 = arith.constant 0 : index
    %c0_11 = arith.constant 0 : index
    %16 = vector.load %arg10[%c0_10, %c0_11] : memref<16x1xf32, #tpu.memory_space<vmem>>, vector<16x1xf32>
    %cst_12 = arith.constant dense<0xFF800000> : vector<16xf32>
    %17 = vector.multi_reduction <maximumf>, %15, %cst_12 [1] : vector<16x256xf32> to vector<16xf32>
    %18 = vector.shape_cast %17 : vector<16xf32> to vector<16x1xf32>
    %19 = arith.maximumf %16, %18 : vector<16x1xf32>
    %c0_13 = arith.constant 0 : index
    %c0_14 = arith.constant 0 : index
    %20 = vector.load %arg11[%c0_13, %c0_14] : memref<16x1xf32, #tpu.memory_space<vmem>>, vector<16x1xf32>
    %21 = arith.subf %16, %19 : vector<16x1xf32>
    %22 = math.exp %21 : vector<16x1xf32>
    %23 = arith.mulf %20, %22 : vector<16x1xf32>
    %24 = vector.broadcast %19 : vector<16x1xf32> to vector<16x256xf32>
    %25 = arith.subf %15, %24 : vector<16x256xf32>
    %26 = math.exp %25 : vector<16x256xf32>
    %cst_15 = arith.constant dense<0.000000e+00> : vector<16xf32>
    %27 = vector.multi_reduction <add>, %26, %cst_15 [1] : vector<16x256xf32> to vector<16xf32>
    %28 = vector.shape_cast %27 : vector<16xf32> to vector<16x1xf32>
    %29 = arith.addf %23, %28 : vector<16x1xf32>
    %c0_16 = arith.constant 0 : index
    %c0_17 = arith.constant 0 : index
    %30 = vector.load %arg11[%c0_16, %c0_17] : memref<16x1xf32, #tpu.memory_space<vmem>>, vector<16x1xf32>
    tpu.vector_store %arg11[%c0_16, %c0_17], %29 {strides = array<i32>} : memref<16x1xf32, #tpu.memory_space<vmem>>, vector<16x1xf32>,
    %c0_18 = arith.constant 0 : index
    %c0_19 = arith.constant 0 : index
    %31 = vector.load %arg10[%c0_18, %c0_19] : memref<16x1xf32, #tpu.memory_space<vmem>>, vector<16x1xf32>
    tpu.vector_store %arg10[%c0_18, %c0_19], %19 {strides = array<i32>} : memref<16x1xf32, #tpu.memory_space<vmem>>, vector<16x1xf32>,
    %32 = vector.broadcast %7 : vector<16x1xi32> to vector<16x256xi32>
    %33 = arith.cmpi eq, %11, %32 : vector<16x256xi32>
    %34 = arith.extui %33 : vector<16x256xi1> to vector<16x256xi32>
    %35 = arith.sitofp %34 : vector<16x256xi32> to vector<16x256xf32>
    %c0_20 = arith.constant 0 : index
    %c0_21 = arith.constant 0 : index
    %36 = vector.load %arg12[%c0_20, %c0_21] : memref<16x1xf32, #tpu.memory_space<vmem>>, vector<16x1xf32>
    %37 = arith.mulf %5, %35 : vector<16x256xf32>
    %cst_22 = arith.constant dense<0.000000e+00> : vector<16xf32>
    %38 = vector.multi_reduction <add>, %37, %cst_22 [1] : vector<16x256xf32> to vector<16xf32>
    %39 = vector.shape_cast %38 : vector<16xf32> to vector<16x1xf32>
    %40 = arith.addf %36, %39 : vector<16x1xf32>
    %c0_23 = arith.constant 0 : index
    %c0_24 = arith.constant 0 : index
    %41 = vector.load %arg12[%c0_23, %c0_24] : memref<16x1xf32, #tpu.memory_space<vmem>>, vector<16x1xf32>
    tpu.vector_store %arg12[%c0_23, %c0_24], %40 {strides = array<i32>} : memref<16x1xf32, #tpu.memory_space<vmem>>, vector<16x1xf32>,
    %c0_i32_25 = arith.constant 0 : i32
    %42 = arith.cmpi eq, %arg1, %c0_i32_25 : i32
    %43 = arith.extui %42 : i1 to i32
    %c0_i32_26 = arith.constant 0 : i32
    %44 = arith.cmpi ne, %43, %c0_i32_26 : i32
    scf.if %44 {
      %c0_27 = arith.constant 0 : index
      %c0_28 = arith.constant 0 : index
      %45 = vector.load %arg10[%c0_27, %c0_28] : memref<16x1xf32, #tpu.memory_space<vmem>>, vector<16x1xf32>
      %c0_29 = arith.constant 0 : index
      %c0_30 = arith.constant 0 : index
      %46 = vector.load %arg11[%c0_29, %c0_30] : memref<16x1xf32, #tpu.memory_space<vmem>>, vector<16x1xf32>
      %47 = math.log %46 : vector<16x1xf32>
      %48 = arith.addf %45, %47 : vector<16x1xf32>
      %c-100_i32 = arith.constant -100 : i32
      %49 = vector.broadcast %c-100_i32 : i32 to vector<16x1xi32>
      %50 = arith.cmpi ne, %7, %49 : vector<16x1xi32>
      %51 = arith.extui %50 : vector<16x1xi1> to vector<16x1xi32>
      %52 = arith.sitofp %51 : vector<16x1xi32> to vector<16x1xf32>
      %c0_31 = arith.constant 0 : index
      %c0_32 = arith.constant 0 : index
      %53 = vector.load %arg12[%c0_31, %c0_32] : memref<16x1xf32, #tpu.memory_space<vmem>>, vector<16x1xf32>
      %54 = arith.subf %48, %53 : vector<16x1xf32>
      %55 = arith.mulf %54, %52 : vector<16x1xf32>
      %c0_33 = arith.constant 0 : index
      %c0_34 = arith.constant 0 : index
      %56 = vector.load %arg8[%c0_33, %c0_34] : memref<16x1xf32, #tpu.memory_space<vmem>>, vector<16x1xf32>
      tpu.vector_store %arg8[%c0_33, %c0_34], %55 {strides = array<i32>} : memref<16x1xf32, #tpu.memory_space<vmem>>, vector<16x1xf32>,
    } else {
    }
    return
  }
  func.func @transform_0(%arg0: i32, %arg1: i32) -> (i32, i32) {
    %c0_i32 = arith.constant 0 : i32
    %c0_i32_0 = arith.constant 0 : i32
    return %arg0, %c0_i32 : i32, i32
  }
  func.func @transform_1(%arg0: i32, %arg1: i32) -> (i32, i32) {
    %c0_i32 = arith.constant 0 : i32
    %c0_i32_0 = arith.constant 0 : i32
    %c0_i32_1 = arith.constant 0 : i32
    return %c0_i32, %c0_i32_0 : i32, i32
  }
  func.func @transform_2(%arg0: i32, %arg1: i32) -> (i32, i32) {
    %c0_i32 = arith.constant 0 : i32
    %c0_i32_0 = arith.constant 0 : i32
    %c0_i32_1 = arith.constant 0 : i32
    return %c0_i32, %c0_i32_0 : i32, i32
  }
  func.func @transform_3(%arg0: i32, %arg1: i32) -> (i32, i32) {
    %c0_i32 = arith.constant 0 : i32
    %c0_i32_0 = arith.constant 0 : i32
    return %c0_i32, %arg1 : i32, i32
  }
  func.func @transform_4(%arg0: i32, %arg1: i32) -> (i32, i32) {
    %c0_i32 = arith.constant 0 : i32
    %c0_i32_0 = arith.constant 0 : i32
    return %arg0, %c0_i32 : i32, i32
  }
  func.func @transform_5(%arg0: i32, %arg1: i32) -> (i32, i32) {
    %c0_i32 = arith.constant 0 : i32
    return %arg0, %arg1 : i32, i32
  }
  func.func @transform_6(%arg0: i32, %arg1: i32) -> (i32, i32) {
    %c0_i32 = arith.constant 0 : i32
    %c0_i32_0 = arith.constant 0 : i32
    return %arg0, %c0_i32 : i32, i32
  }
}

</mosaic_0001>

<llo_original>
// kernel: gpt2_forward.13
$region0: #{gpt2_forward.13}
  #allocation0 [shape = 'u32[]', space=smem, size = 0x4, offset = 0x4, fixed_abs, tag = 'smem constant byte address 0x4 - core index']
  #allocation1 [shape = 'u32[144,128]{1,0:T(1,128)}', space=vmem, size = 0x12000, scoped, tag = 'internal scratch']
  %s0 = inlined_call_operand.vmem [shape: bf16[16,128], index: 0, kind: input, shape index: {}]
  %s1 = inlined_call_operand.vmem [shape: bf16[128,128], index: 1, kind: input, shape index: {}]
  %s2 = inlined_call_operand.vmem [shape: f32[1,128], index: 2, kind: input, shape index: {}]
  %s3 = inlined_call_operand.vmem [shape: bf16[16,128], index: 3, kind: input, shape index: {}]
  %s4 = inlined_call_operand.vmem [shape: bf16[16,128], index: 4, kind: output, shape index: {}]
  %s5 = sld [smem:[#allocation0]]
  $region26: #{gpt2_forward.13} parent=0
    _
  %s7 = ssub.s32 1, %s5
  %s8 = scalar_select 0, %s7, %s5
  // Predicated region
  $region2: #{gpt2_forward.13} parent=0 // pred_check
    _
  $region3: #{gpt2_forward.13} parent=0 // pred_check_branch
    %10 = sbr.rel (0) target = $region5
  $region4: #{gpt2_forward.13} parent=0 // pred_region
    _
  $region5: #{gpt2_forward.13} parent=0 // pred_fallthru
    _
  // Predicated region
  $region6: #{gpt2_forward.13} parent=0 // pred_check
    _
  $region7: #{gpt2_forward.13} parent=0 // pred_check_branch
    %12 = sbr.rel (0) target = $region9
  $region8: #{gpt2_forward.13} parent=0 // pred_region
    _
  $region9: #{gpt2_forward.13} parent=0 // pred_fallthru
    _
  // Predicated region
  $region10: #{gpt2_forward.13} parent=0 // pred_check
    _
  $region11: #{gpt2_forward.13} parent=0 // pred_check_branch
    %14 = sbr.rel (0) target = $region13
  $region12: #{gpt2_forward.13} parent=0 // pred_region
    _
  $region13: #{gpt2_forward.13} parent=0 // pred_fallthru
    _
  // Predicated region
  $region14: #{gpt2_forward.13} parent=0 // pred_check
    _
  $region15: #{gpt2_forward.13} parent=0 // pred_check_branch
    %16 = sbr.rel (0) target = $region17
  $region16: #{gpt2_forward.13} parent=0 // pred_region
    _
  $region17: #{gpt2_forward.13} parent=0 // pred_fallthru
    _
  %v18 = vld [vmem:[%s0] sm:$0xf]
  %v19 = vld [vmem:[%s0 + $0x4] sm:$0xf]
  %v20 = vld [vmem:[%s1] sm:$0xf]
  %v21 = vld [vmem:[%s1 + $0x4] sm:$0xf]
  %v22 = vld [vmem:[%s1 + $0x8] sm:$0xf]
  %v23 = vld [vmem:[%s1 + $0xc] sm:$0xf]
  %v24 = vld [vmem:[%s1 + $0x10] sm:$0xf]
  %v25 = vld [vmem:[%s1 + $0x14] sm:$0xf]
  %v26 = vld [vmem:[%s1 + $0x18] sm:$0xf]
  %v27 = vld [vmem:[%s1 + $0x1c] sm:$0xf]
  %v28 = vld [vmem:[%s1 + $0x20] sm:$0xf]
  %v29 = vld [vmem:[%s1 + $0x24] sm:$0xf]
  %v30 = vld [vmem:[%s1 + $0x28] sm:$0xf]
  %v31 = vld [vmem:[%s1 + $0x2c] sm:$0xf]
  %v32 = vld [vmem:[%s1 + $0x30] sm:$0xf]
  %v33 = vld [vmem:[%s1 + $0x34] sm:$0xf]
  %v34 = vld [vmem:[%s1 + $0x38] sm:$0xf]
  %v35 = vld [vmem:[%s1 + $0x3c] sm:$0xf]
  %v36 = vld [vmem:[%s2] sm:$0x1]
  %v38 = vlaneseq
  %v39 = vshrl.u32 %v38, 7
  %v40 = vsub.s32 0, %v39
  %v41 = vrot.slane %v36, %v40
  %v45 = vunpack.c.l.b16 %v18
  %v46 = vunpack.c.l.b16 %v19
  %v47 = vpack.c.b16 %v46, %v45
  %v65 = vunpack.c.l.b16 %v20
  %v66 = vunpack.c.l.b16 %v21
  %v67 = vunpack.c.l.b16 %v22
  %v68 = vunpack.c.l.b16 %v23
  %v69 = vunpack.c.l.b16 %v24
  %v70 = vunpack.c.l.b16 %v25
  %v71 = vunpack.c.l.b16 %v26
  %v72 = vunpack.c.l.b16 %v27
  %v73 = vunpack.c.l.b16 %v28
  %v74 = vunpack.c.l.b16 %v29
  %v75 = vunpack.c.l.b16 %v30
  %v76 = vunpack.c.l.b16 %v31
  %v77 = vunpack.c.l.b16 %v32
  %v78 = vunpack.c.l.b16 %v33
  %v79 = vunpack.c.l.b16 %v34
  %v80 = vunpack.c.l.b16 %v35
  %v81 = vpack.c.b16 %v66, %v65
  %v82 = vpack.c.b16 %v68, %v67
  %v83 = vpack.c.b16 %v70, %v69
  %v84 = vpack.c.b16 %v72, %v71
  %v85 = vpack.c.b16 %v74, %v73
  %v86 = vpack.c.b16 %v76, %v75
  %v87 = vpack.c.b16 %v78, %v77
  %v88 = vpack.c.b16 %v80, %v79
  %97 = vmatprep.subr.bf16.mxu0 0
  %98 = vmatpush1.bf16.msra.mxu0 %v81
  %99 = vmatprep.subr.bf16.mxu0 0
  %100 = vmatpush1.bf16.msra.mxu0 %v82
  %101 = vmatprep.subr.bf16.mxu0 0
  %102 = vmatpush1.bf16.msra.mxu0 %v83
  %103 = vmatprep.subr.bf16.mxu0 0
  %104 = vmatpush1.bf16.msra.mxu0 %v84
  %105 = vmatprep.subr.bf16.mxu0 0
  %106 = vmatpush1.bf16.msra.mxu0 %v85
  %107 = vmatprep.subr.bf16.mxu0 0
  %108 = vmatpush1.bf16.msra.mxu0 %v86
  %109 = vmatprep.subr.bf16.mxu0 0
  %110 = vmatpush1.bf16.msra.mxu0 %v87
  %111 = vmatprep.subr.bf16.mxu0 0
  %112 = vmatpush1.bf16.msra.mxu0 %v88
  %113 = vmatprep.subr.bf16.mxu0 0
  %114 = vmatpush1.bf16.msra.mxu0 0
  %115 = vmatprep.subr.bf16.mxu0 0
  %116 = vmatpush1.bf16.msra.mxu0 0
  %117 = vmatprep.subr.bf16.mxu0 0
  %118 = vmatpush1.bf16.msra.mxu0 0
  %119 = vmatprep.subr.bf16.mxu0 0
  %120 = vmatpush1.bf16.msra.mxu0 0
  %121 = vmatprep.subr.bf16.mxu0 0
  %122 = vmatpush1.bf16.msra.mxu0 0
  %123 = vmatprep.subr.bf16.mxu0 0
  %124 = vmatpush1.bf16.msra.mxu0 0
  %125 = vmatprep.subr.bf16.mxu0 0
  %126 = vmatpush1.bf16.msra.mxu0 0
  %127 = vmatprep.subr.bf16.mxu0 0
  %128 = vmatpush1.bf16.msra.mxu0 0
  %129 = vmatprep.mubr.bf16.mxu0 0
  %130 = vmatmul.mubr.bf16.gmra.mrb[0].mxu0 %v47
  %v131 = vpop.f32.mrb[0].mxu0
  %v132 = vadd.f32 %v41, %v131
  %v133 = vpop.f32.mrb[0].mxu0
  %v134 = vpop.f32.mrb[0].mxu0
  %v135 = vadd.f32 %v41, %v134
  %v136 = vpop.f32.mrb[0].mxu0
  %137 = vdwg.mxu0
  %v138 = vld [vmem:[%s3] sm:$0xf]
  %v139 = vld [vmem:[%s3 + $0x4] sm:$0xf]
  %v140 = vunpack.c.l.bf16 %v138
  %v141 = vunpack.c.l.bf16 %v139
  %v142 = vadd.f32 %v132, %v140
  %v143 = vadd.f32 %v135, %v141
  %v144 = vpack.c.bf16 %v143, %v142
  %v146 = vunpack.c.l.b16 %v144
  %v147 = vunpack.c.h.b16 %v144
  %v148 = vpack.c.b16 %v146, %v146
  %v149 = vpack.c.b16 %v147, %v147
  %152 = vst [vmem:[%s4] sm:$0xf] %v148
  %153 = vst [vmem:[%s4 + $0x4] sm:$0xf] %v149
  // Predicated region
  $region18: #{gpt2_forward.13} parent=0 // pred_check
    _
  $region19: #{gpt2_forward.13} parent=0 // pred_check_branch
    %155 = sbr.rel (0) target = $region21
  $region20: #{gpt2_forward.13} parent=0 // pred_region
    _
  $region21: #{gpt2_forward.13} parent=0 // pred_fallthru
    _
  // Predicated region
  $region22: #{gpt2_forward.13} parent=0 // pred_check
    _
  $region23: #{gpt2_forward.13} parent=0 // pred_check_branch
    %157 = sbr.rel (0) target = $region25
  $region24: #{gpt2_forward.13} parent=0 // pred_region
    _
  $region25: #{gpt2_forward.13} parent=0 // pred_fallthru
    _

// kernel: gpt2_forward.12
$region0: #{gpt2_forward.12}
  #allocation0 [shape = 'u32[]', space=smem, size = 0x4, offset = 0x4, fixed_abs, tag = 'smem constant byte address 0x4 - core index']
  #allocation1 [shape = 'u32[144,128]{1,0:T(1,128)}', space=vmem, size = 0x12000, scoped, tag = 'internal scratch']
  #allocation2 [shape = 'f32[8,1]{1,0:T(8,128)}', space=vmem, size = 0x1000, scoped, tag = 'scratch operand']
  #allocation3 [shape = 'f32[8,1]{1,0:T(8,128)}', space=vmem, size = 0x1000, scoped, tag = 'scratch operand']
  #allocation4 [shape = 'f32[8,32]{1,0:T(8,128)}', space=vmem, size = 0x1000, scoped, tag = 'scratch operand']
  %s0 = inlined_call_operand.vmem [shape: bf16[2,4,8,32], index: 0, kind: input, shape index: {}]
  %s1 = inlined_call_operand.vmem [shape: bf16[2,4,8,32], index: 1, kind: input, shape index: {}]
  %s2 = inlined_call_operand.vmem [shape: bf16[2,4,8,32], index: 2, kind: input, shape index: {}]
  %s3 = inlined_call_operand.vmem [shape: bf16[2,4,8,32], index: 3, kind: output, shape index: {}]
  %s4 = sld [smem:[#allocation0]]
  $region57: #{gpt2_forward.12} parent=0
    _
  %s6 = ssub.s32 1, %s4
  %s7 = scalar_select 0, %s6, %s4
  loop: start=0, step=1, limit=10
  $region2: #{gpt2_forward.12} parent=0 // loop_pre_header
    _
  $region3: #{gpt2_forward.12} parent=0 // loop_header
    %s9 = sphi 0, %s13
    %p10 = scmp.ge.s32.totalorder %s9, 10
    %s16 = sphi 0, %s42
    %s17 = sphi 0, %s38
    %s18 = sphi 0, %s34
    %s19 = sphi 0, %s30
    %s20 = sphi 0, %s16
    %s21 = sphi 0, %s17
    %s22 = sphi 0, %s18
    %s23 = sphi 0, %s19
    %s24 = sphi 0, %s20
    %s25 = sphi 0, %s21
    %s26 = sphi 0, %s22
    %s27 = sphi 0, %s23
    %s49 = sphi 0, %s51
    %s52 = sphi 0, %s49
    %s53 = sphi 0, %s52
    %s69 = sphi 0, %s53
    %s79 = sphi 0, %s81
    %s82 = sphi 0, %s79
    %s83 = sphi 0, %s82
    %s99 = sphi 0, %s83
    %s109 = sphi 0, %s111
    %s112 = sphi 0, %s109
    %s113 = sphi 0, %s112
    %s129 = sphi 0, %s113
    %s139 = sphi 0, %s141
    %s142 = sphi 0, %s139
    %s143 = sphi 0, %s142
    %s159 = sphi 0, %s143
  $region4: #{gpt2_forward.12} parent=0 // loop_header_branch
    %12 = sbr.rel (%p10) target = $region8
  $region5: #{gpt2_forward.12} parent=0 // loop_body
    %s14 = ssub.s32 %s9, 1
    %s15 = ssub.s32 %s9, 2
    %s28 = sadd.s32 1, %s19
    %p29 = scmp.ge.s32.totalorder %s28, 1
    %s30 = scalar_select %p29, 0, %s28
    %s31 = sadd.s32 1, %s18
    %s32 = scalar_select %p29, %s31, %s18
    %p33 = scmp.ge.s32.totalorder %s32, 1
    %s34 = scalar_select %p33, 0, %s32
    %s35 = sadd.s32 1, %s17
    %s36 = scalar_select %p33, %s35, %s17
    %p37 = scmp.ge.s32.totalorder %s36, 4
    %s38 = scalar_select %p37, 0, %s36
    %s39 = sadd.s32 1, %s16
    %s40 = scalar_select %p37, %s39, %s16
    %p41 = scmp.ge.s32.totalorder %s40, 2
    %s42 = scalar_select %p41, 0, %s40
    %s43 = ssub.s32 %s16, %s42
    %s44 = ssub.s32 %s17, %s38
    %s45 = sor.u32 %s43, %s44
    %s46 = ssub.s32 %s18, %s34
    %s47 = sor.u32 %s45, %s46
    %p48 = scmp.eq.s32.totalorder %s47, 0
    %s50 = sadd.s32 %s49, 1
    %s51 = scalar_select %p48, %s49, %s50
    %p54 = pneg %p48
    %p55 = scmp.eq.s32.totalorder %s9, 7
    %p56 = por %p54, %p55
    %p57 = scmp.ne.s32.totalorder %s49, %s52
    %p58 = scmp.eq.s32.totalorder %s9, 0
    %p59 = por %p57, %p58
    %p60 = scmp.ne.s32.totalorder %s49, %s52
    %p61 = scmp.eq.s32.totalorder %s14, 7
    %p62 = por %p60, %p61
    %p63 = scmp.ne.s32.totalorder %s52, %s53
    %p64 = scmp.eq.s32.totalorder %s14, 0
    %p65 = por %p63, %p64
    %p66 = scmp.ne.s32.totalorder %s52, %s53
    %p67 = scmp.eq.s32.totalorder %s15, 7
    %p68 = por %p66, %p67
    %p70 = scmp.ne.s32.totalorder %s53, %s69
    %p71 = scmp.eq.s32.totalorder %s15, 0
    %p72 = por %p70, %p71
    %s73 = ssub.s32 %s16, %s42
    %s74 = ssub.s32 %s17, %s38
    %s75 = sor.u32 %s73, %s74
    %s76 = ssub.s32 %s19, %s30
    %s77 = sor.u32 %s75, %s76
    %p78 = scmp.eq.s32.totalorder %s77, 0
    %s80 = sadd.s32 %s79, 1
    %s81 = scalar_select %p78, %s79, %s80
    %p84 = pneg %p78
    %p85 = scmp.eq.s32.totalorder %s9, 7
    %p86 = por %p84, %p85
    %p87 = scmp.ne.s32.totalorder %s79, %s82
    %p88 = scmp.eq.s32.totalorder %s9, 0
    %p89 = por %p87, %p88
    %p90 = scmp.ne.s32.totalorder %s79, %s82
    %p91 = scmp.eq.s32.totalorder %s14, 7
    %p92 = por %p90, %p91
    %p93 = scmp.ne.s32.totalorder %s82, %s83
    %p94 = scmp.eq.s32.totalorder %s14, 0
    %p95 = por %p93, %p94
    %p96 = scmp.ne.s32.totalorder %s82, %s83
    %p97 = scmp.eq.s32.totalorder %s15, 7
    %p98 = por %p96, %p97
    %p100 = scmp.ne.s32.totalorder %s83, %s99
    %p101 = scmp.eq.s32.totalorder %s15, 0
    %p102 = por %p100, %p101
    %s103 = ssub.s32 %s16, %s42
    %s104 = ssub.s32 %s17, %s38
    %s105 = sor.u32 %s103, %s104
    %s106 = ssub.s32 %s19, %s30
    %s107 = sor.u32 %s105, %s106
    %p108 = scmp.eq.s32.totalorder %s107, 0
    %s110 = sadd.s32 %s109, 1
    %s111 = scalar_select %p108, %s109, %s110
    %p114 = pneg %p108
    %p115 = scmp.eq.s32.totalorder %s9, 7
    %p116 = por %p114, %p115
    %p117 = scmp.ne.s32.totalorder %s109, %s112
    %p118 = scmp.eq.s32.totalorder %s9, 0
    %p119 = por %p117, %p118
    %p120 = scmp.ne.s32.totalorder %s109, %s112
    %p121 = scmp.eq.s32.totalorder %s14, 7
    %p122 = por %p120, %p121
    %p123 = scmp.ne.s32.totalorder %s112, %s113
    %p124 = scmp.eq.s32.totalorder %s14, 0
    %p125 = por %p123, %p124
    %p126 = scmp.ne.s32.totalorder %s112, %s113
    %p127 = scmp.eq.s32.totalorder %s15, 7
    %p128 = por %p126, %p127
    %p130 = scmp.ne.s32.totalorder %s113, %s129
    %p131 = scmp.eq.s32.totalorder %s15, 0
    %p132 = por %p130, %p131
    %s133 = ssub.s32 %s16, %s42
    %s134 = ssub.s32 %s17, %s38
    %s135 = sor.u32 %s133, %s134
    %s136 = ssub.s32 %s18, %s34
    %s137 = sor.u32 %s135, %s136
    %p138 = scmp.eq.s32.totalorder %s137, 0
    %s140 = sadd.s32 %s139, 1
    %s141 = scalar_select %p138, %s139, %s140
    %p144 = pneg %p138
    %p145 = scmp.eq.s32.totalorder %s9, 7
    %p146 = por %p144, %p145
    %p147 = scmp.ne.s32.totalorder %s139, %s142
    %p148 = scmp.eq.s32.totalorder %s9, 0
    %p149 = por %p147, %p148
    %p150 = scmp.ne.s32.totalorder %s139, %s142
    %p151 = scmp.eq.s32.totalorder %s14, 7
    %p152 = por %p150, %p151
    %p153 = scmp.ne.s32.totalorder %s142, %s143
    %p154 = scmp.eq.s32.totalorder %s14, 0
    %p155 = por %p153, %p154
    %p156 = scmp.ne.s32.totalorder %s142, %s143
    %p157 = scmp.eq.s32.totalorder %s15, 7
    %p158 = por %p156, %p157
    %p160 = scmp.ne.s32.totalorder %s143, %s159
    %p161 = scmp.eq.s32.totalorder %s15, 0
    %p162 = por %p160, %p161
    %p163 = scmp.le.s32.totalorder 1, %s9
    %p164 = scmp.lt.s32.totalorder %s9, 9
    %p165 = pnand %p163, %p164
    %p166 = pneg %p165
    // Predicated region
    $region9: #{gpt2_forward.12} parent=5 // pred_check
      _
    $region10: #{gpt2_forward.12} parent=5 // pred_check_branch
      %168 = sbr.rel (%p165) target = $region12
    $region11: #{gpt2_forward.12} parent=5 // pred_region
      %s169 = ssub.s32 %s9, 1
    $region12: #{gpt2_forward.12} parent=5 // pred_fallthru
      _
    %p170 = scmp.lt.s32.totalorder %s9, 8
    // Predicated region
    $region13: #{gpt2_forward.12} parent=5 // pred_check
      %p171 = pneg %p170
    $region14: #{gpt2_forward.12} parent=5 // pred_check_branch
      %173 = sbr.rel (%p171) target = $region16
    $region15: #{gpt2_forward.12} parent=5 // pred_region
      // Predicated region
      $region17: #{gpt2_forward.12} parent=15 // pred_check
        %p174 = pneg %p59
      $region18: #{gpt2_forward.12} parent=15 // pred_check_branch
        %176 = sbr.rel (%p174) target = $region20
      $region19: #{gpt2_forward.12} parent=15 // pred_region
        %p177 = scmp.lt.s32.totalorder %s16, 1
        %s178 = scalar_select %p177, %s16, 1
        %p179 = scmp.lt.s32.totalorder %s17, 3
        %s180 = scalar_select %p179, %s17, 3
        %p181 = scmp.lt.s32.totalorder %s18, 0
        %s182 = scalar_select %p181, %s18, 0
        %s183 = sadd.s32 %s182, %s180
        %s184 = smul.addr %s178, 4
        %s185 = sadd.s32 %s183, %s184
        %s186 = smul.addr %s185, 4
        %s187 = scalar_lea.vmem %s0, %s186
      $region20: #{gpt2_forward.12} parent=15 // pred_fallthru
        _
      // Predicated region
      $region21: #{gpt2_forward.12} parent=15 // pred_check
        %p188 = pneg %p89
      $region22: #{gpt2_forward.12} parent=15 // pred_check_branch
        %190 = sbr.rel (%p188) target = $region24
      $region23: #{gpt2_forward.12} parent=15 // pred_region
        %p191 = scmp.lt.s32.totalorder %s16, 1
        %s192 = scalar_select %p191, %s16, 1
        %p193 = scmp.lt.s32.totalorder %s17, 3
        %s194 = scalar_select %p193, %s17, 3
        %p195 = scmp.lt.s32.totalorder %s19, 0
        %s196 = scalar_select %p195, %s19, 0
        %s197 = sadd.s32 %s196, %s194
        %s198 = smul.addr %s192, 4
        %s199 = sadd.s32 %s197, %s198
        %s200 = smul.addr %s199, 4
        %s201 = scalar_lea.vmem %s1, %s200
      $region24: #{gpt2_forward.12} parent=15 // pred_fallthru
        _
      // Predicated region
      $region25: #{gpt2_forward.12} parent=15 // pred_check
        %p202 = pneg %p119
      $region26: #{gpt2_forward.12} parent=15 // pred_check_branch
        %204 = sbr.rel (%p202) target = $region28
      $region27: #{gpt2_forward.12} parent=15 // pred_region
        %p205 = scmp.lt.s32.totalorder %s16, 1
        %s206 = scalar_select %p205, %s16, 1
        %p207 = scmp.lt.s32.totalorder %s17, 3
        %s208 = scalar_select %p207, %s17, 3
        %p209 = scmp.lt.s32.totalorder %s19, 0
        %s210 = scalar_select %p209, %s19, 0
        %s211 = sadd.s32 %s210, %s208
        %s212 = smul.addr %s206, 4
        %s213 = sadd.s32 %s211, %s212
        %s214 = smul.addr %s213, 4
        %s215 = scalar_lea.vmem %s2, %s214
      $region28: #{gpt2_forward.12} parent=15 // pred_fallthru
        _
    $region16: #{gpt2_forward.12} parent=5 // pred_fallthru
      _
    %p216 = scmp.le.s32.totalorder 1, %s9
    %p217 = scmp.lt.s32.totalorder %s9, 9
    %p218 = pnand %p216, %p217
    %p219 = pneg %p218
    // Predicated region
    $region29: #{gpt2_forward.12} parent=5 // pred_check
      _
    $region30: #{gpt2_forward.12} parent=5 // pred_check_branch
      %221 = sbr.rel (%p218) target = $region32
    $region31: #{gpt2_forward.12} parent=5 // pred_region
      %s222 = ssub.s32 %s9, 1
      %p223 = scmp.lt.s32.totalorder %s20, 1
      %s224 = scalar_select %p223, %s20, 1
      %p225 = scmp.lt.s32.totalorder %s21, 3
      %s226 = scalar_select %p225, %s21, 3
      %p227 = scmp.lt.s32.totalorder %s22, 0
      %s228 = scalar_select %p227, %s22, 0
      %s229 = sadd.s32 %s228, %s226
      %s230 = smul.addr %s224, 4
      %s231 = sadd.s32 %s229, %s230
      %s232 = smul.addr %s231, 4
      %s233 = scalar_lea.vmem %s0, %s232
      %p234 = pneg %p65
      %p235 = pneg %p62
      %p236 = scmp.lt.s32.totalorder %s20, 1
      %s237 = scalar_select %p236, %s20, 1
      %p238 = scmp.lt.s32.totalorder %s21, 3
      %s239 = scalar_select %p238, %s21, 3
      %p240 = scmp.lt.s32.totalorder %s23, 0
      %s241 = scalar_select %p240, %s23, 0
      %s242 = sadd.s32 %s241, %s239
      %s243 = smul.addr %s237, 4
      %s244 = sadd.s32 %s242, %s243
      %s245 = smul.addr %s244, 4
      %s246 = scalar_lea.vmem %s1, %s245
      %p247 = pneg %p95
      %p248 = pneg %p92
      %p249 = scmp.lt.s32.totalorder %s20, 1
      %s250 = scalar_select %p249, %s20, 1
      %p251 = scmp.lt.s32.totalorder %s21, 3
      %s252 = scalar_select %p251, %s21, 3
      %p253 = scmp.lt.s32.totalorder %s23, 0
      %s254 = scalar_select %p253, %s23, 0
      %s255 = sadd.s32 %s254, %s252
      %s256 = smul.addr %s250, 4
      %s257 = sadd.s32 %s255, %s256
      %s258 = smul.addr %s257, 4
      %s259 = scalar_lea.vmem %s2, %s258
      %p260 = pneg %p125
      %p261 = pneg %p122
      %p262 = pneg %p155
      %p263 = pneg %p152
      %p264 = scmp.lt.s32.totalorder %s20, 1
      %s265 = scalar_select %p264, %s20, 1
      %p266 = scmp.lt.s32.totalorder %s21, 3
      %s267 = scalar_select %p266, %s21, 3
      %p268 = scmp.lt.s32.totalorder %s22, 0
      %s269 = scalar_select %p268, %s22, 0
      %s270 = sadd.s32 %s269, %s267
      %s271 = smul.addr %s265, 4
      %s272 = sadd.s32 %s270, %s271
      %s273 = smul.addr %s272, 4
      %s274 = scalar_lea.vmem %s3, %s273
      %p275 = scmp.lt.s32.totalorder %s20, 1
      %s276 = scalar_select %p275, %s20, 1
      %p277 = scmp.lt.s32.totalorder %s21, 3
      %s278 = scalar_select %p277, %s21, 3
      %p279 = scmp.lt.s32.totalorder %s22, 0
      %s280 = scalar_select %p279, %s22, 0
      %s281 = sadd.s32 %s280, %s278
      %s282 = smul.addr %s276, 4
      %s283 = sadd.s32 %s281, %s282
      %s284 = smul.addr %s283, 4
      %s285 = scalar_lea.vmem %s0, %s284
      %p286 = scmp.lt.s32.totalorder %s20, 1
      %s287 = scalar_select %p286, %s20, 1
      %p288 = scmp.lt.s32.totalorder %s21, 3
      %s289 = scalar_select %p288, %s21, 3
      %p290 = scmp.lt.s32.totalorder %s23, 0
      %s291 = scalar_select %p290, %s23, 0
      %s292 = sadd.s32 %s291, %s289
      %s293 = smul.addr %s287, 4
      %s294 = sadd.s32 %s292, %s293
      %s295 = smul.addr %s294, 4
      %s296 = scalar_lea.vmem %s1, %s295
      %p297 = scmp.lt.s32.totalorder %s20, 1
      %s298 = scalar_select %p297, %s20, 1
      %p299 = scmp.lt.s32.totalorder %s21, 3
      %s300 = scalar_select %p299, %s21, 3
      %p301 = scmp.lt.s32.totalorder %s23, 0
      %s302 = scalar_select %p301, %s23, 0
      %s303 = sadd.s32 %s302, %s300
      %s304 = smul.addr %s298, 4
      %s305 = sadd.s32 %s303, %s304
      %s306 = smul.addr %s305, 4
      %s307 = scalar_lea.vmem %s2, %s306
      %p308 = scmp.lt.s32.totalorder %s20, 1
      %s309 = scalar_select %p308, %s20, 1
      %p310 = scmp.lt.s32.totalorder %s21, 3
      %s311 = scalar_select %p310, %s21, 3
      %p312 = scmp.lt.s32.totalorder %s22, 0
      %s313 = scalar_select %p312, %s22, 0
      %s314 = sadd.s32 %s313, %s311
      %s315 = smul.addr %s309, 4
      %s316 = sadd.s32 %s314, %s315
      %s317 = smul.addr %s316, 4
      %s318 = scalar_lea.vmem %s3, %s317
      %s320 = smul.u32 %s22, 8
      %s321 = smul.u32 %s23, 8
      %p322 = scmp.eq.s32.totalorder %s23, 0
      // Predicated region
      $region33: #{gpt2_forward.12} parent=31 // pred_check
        %p323 = pneg %p322
      $region34: #{gpt2_forward.12} parent=31 // pred_check_branch
        %325 = sbr.rel (%p323) target = $region36
      $region35: #{gpt2_forward.12} parent=31 // pred_region
        %vm326 = vcmask 7168
        %327 = vst.msk [vmem:[#allocation2] sm:$0xff] %vm326, -1e+30
        %328 = vst.msk [vmem:[#allocation3] sm:$0xff] %vm326, 0.0
        %vm329 = vcmask 261120
        %330 = vst.msk [vmem:[#allocation4] sm:$0xff] %vm329, 0.0
      $region36: #{gpt2_forward.12} parent=31 // pred_fallthru
        _
      %s331 = sadd.s32 %s320, 7
      %p332 = scmp.le.s32.totalorder %s321, %s331
      // Predicated region
      $region37: #{gpt2_forward.12} parent=31 // pred_check
        %p333 = pneg %p332
      $region38: #{gpt2_forward.12} parent=31 // pred_check_branch
        %335 = sbr.rel (%p333) target = $region40
      $region39: #{gpt2_forward.12} parent=31 // pred_region
        %v336 = vld [vmem:[%s285] sm:$0xf]
        %v337 = vld [vmem:[%s296] sm:$0xf]
        %v338 = vld [vmem:[%s307] sm:$0xf]
        %vm339 = vcmask 261120
        %v341 = vsel %vm339, %v336, 0
        %v344 = vsel %vm339, %v337, 0
        %346 = vmatprep.subr.bf16.mxu0 0
        %347 = vmatpush1.bf16.xpose.msra.mxu0 %v344
        %348 = vmatprep.subr.bf16.mxu0 0
        %349 = vmatpush1.bf16.xpose.msra.mxu0 0
        %350 = vmatprep.subr.bf16.mxu0 0
        %351 = vmatpush1.bf16.xpose.msra.mxu0 0
        %352 = vmatprep.subr.bf16.mxu0 0
        %353 = vmatpush1.bf16.xpose.msra.mxu0 0
        %354 = vmatprep.subr.bf16.mxu0 0
        %355 = vmatpush1.bf16.xpose.msra.mxu0 0
        %356 = vmatprep.subr.bf16.mxu0 0
        %357 = vmatpush1.bf16.xpose.msra.mxu0 0
        %358 = vmatprep.subr.bf16.mxu0 0
        %359 = vmatpush1.bf16.xpose.msra.mxu0 0
        %360 = vmatprep.subr.bf16.mxu0 0
        %361 = vmatpush1.bf16.xpose.msra.mxu0 0
        %362 = vmatprep.subr.bf16.mxu0 0
        %363 = vmatpush1.bf16.xpose.msra.mxu0 0
        %364 = vmatprep.subr.bf16.mxu0 0
        %365 = vmatpush1.bf16.xpose.msra.mxu0 0
        %366 = vmatprep.subr.bf16.mxu0 0
        %367 = vmatpush1.bf16.xpose.msra.mxu0 0
        %368 = vmatprep.subr.bf16.mxu0 0
        %369 = vmatpush1.bf16.xpose.msra.mxu0 0
        %370 = vmatprep.subr.bf16.mxu0 0
        %371 = vmatpush1.bf16.xpose.msra.mxu0 0
        %372 = vmatprep.subr.bf16.mxu0 0
        %373 = vmatpush1.bf16.xpose.msra.mxu0 0
        %374 = vmatprep.subr.bf16.mxu0 0
        %375 = vmatpush1.bf16.xpose.msra.mxu0 0
        %376 = vmatprep.subr.bf16.mxu0 0
        %377 = vmatpush1.bf16.xpose.msra.mxu0 0
        %378 = vmatprep.mubr.bf16.mxu0 0
        %379 = vmatmul.mubr.bf16.gmra.mrb[0].mxu0 %v341
        %v380 = vpop.f32.mrb[0].mxu0
        %v381 = vadd.f32 0.0, %v380
        %v382 = vpop.f32.mrb[0].mxu0
        %v383 = vpop.f32.mrb[0].mxu0
        %v384 = vpop.f32.mrb[0].mxu0
        %385 = vdwg.mxu0
        %v386 = vmul.f32 %v381, 0.17677669
        %v387 = vlaneseq
        %v388 = vshrl.u32 %v387, 7
        %v389 = vstv %s320
        %v390 = vadd.s32 %v388, %v389
        %v391 = vlaneseq
        %v392 = vand.u32 %v391, 127
        %v393 = vstv %s321
        %v394 = vadd.s32 %v392, %v393
        %vm395 = vcmp.le.s32.totalorder %v394, %v390
        %v396 = vsel %vm395, %v386, -1e+30
        %v397 = vld [vmem:[#allocation2] sm:$0xff]
        %vm398 = vcmask 64512
        %v399 = vsel %vm398, %v396, -inf
        %400 = vmax.xlane.f32.xlu0 %v399
        %v401 = vpop.xlane.xlu0 %400
        %v402 = vmax.f32 %v397, %v401
        %v403 = vsub.f32 %v397, %v402
        %v404 = vmul.f32 %v403, 1.442695
        %v405 = vpow.pop %v404
        %407 = vset.pattern.permute.xlu0 0
        %408 = vperm.xlu0 %407, %v402
        %v409 = vpop.permute.xlu0 %408
        %v411 = vsub.f32 %v396, %v409
        %v412 = vmul.f32 %v411, 1.442695
        %v413 = vpow.pop %v412
        %v414 = vld [vmem:[#allocation3] sm:$0xff]
        %v415 = vmul.f32 %v405, %v414
        %v416 = vsel %vm398, %v413, 0.0
        %417 = vadd.xlane.f32.xlu0 %v416
        %v418 = vpop.xlane.xlu0 %417
        %v419 = vadd.f32 %v415, %v418
        %vm420 = vcmask 7168
        %421 = vst.msk [vmem:[#allocation3] sm:$0xff] %vm420, %v419
        %v422 = vld [vmem:[#allocation4] sm:$0xff]
        %424 = vset.pattern.permute.xlu0 0
        %425 = vperm.xlu0 %424, %v405
        %v426 = vpop.permute.xlu0 %425
        %v428 = vmul.f32 %v426, %v422
        %v429 = vpack.c.bf16 %v413, %v413
        %v431 = vsel %vm398, %v429, 0
        %vm433 = vcmask 1043456
        %v435 = vsel %vm433, %v338, 0
        %437 = vmatprep.subr.bf16.mxu0 0
        %438 = vmatpush1.bf16.msra.mxu0 %v435
        %439 = vmatprep.subr.bf16.mxu0 0
        %440 = vmatpush1.bf16.msra.mxu0 0
        %441 = vmatprep.subr.bf16.mxu0 0
        %442 = vmatpush1.bf16.msra.mxu0 0
        %443 = vmatprep.subr.bf16.mxu0 0
        %444 = vmatpush1.bf16.msra.mxu0 0
        %445 = vmatprep.subr.bf16.mxu0 0
        %446 = vmatpush1.bf16.msra.mxu0 0
        %447 = vmatprep.subr.bf16.mxu0 0
        %448 = vmatpush1.bf16.msra.mxu0 0
        %449 = vmatprep.subr.bf16.mxu0 0
        %450 = vmatpush1.bf16.msra.mxu0 0
        %451 = vmatprep.subr.bf16.mxu0 0
        %452 = vmatpush1.bf16.msra.mxu0 0
        %453 = vmatprep.subr.bf16.mxu0 0
        %454 = vmatpush1.bf16.msra.mxu0 0
        %455 = vmatprep.subr.bf16.mxu0 0
        %456 = vmatpush1.bf16.msra.mxu0 0
        %457 = vmatprep.subr.bf16.mxu0 0
        %458 = vmatpush1.bf16.msra.mxu0 0
        %459 = vmatprep.subr.bf16.mxu0 0
        %460 = vmatpush1.bf16.msra.mxu0 0
        %461 = vmatprep.subr.bf16.mxu0 0
        %462 = vmatpush1.bf16.msra.mxu0 0
        %463 = vmatprep.subr.bf16.mxu0 0
        %464 = vmatpush1.bf16.msra.mxu0 0
        %465 = vmatprep.subr.bf16.mxu0 0
        %466 = vmatpush1.bf16.msra.mxu0 0
        %467 = vmatprep.subr.bf16.mxu0 0
        %468 = vmatpush1.bf16.msra.mxu0 0
        %469 = vmatprep.mubr.bf16.mxu0 0
        %470 = vmatmul.mubr.bf16.gmra.mrb[0].mxu0 %v431
        %v471 = vpop.f32.mrb[0].mxu0
        %v472 = vadd.f32 0.0, %v471
        %v473 = vpop.f32.mrb[0].mxu0
        %v474 = vpop.f32.mrb[0].mxu0
        %v475 = vpop.f32.mrb[0].mxu0
        %476 = vdwg.mxu0
        %v477 = vadd.f32 %v428, %v472
        %478 = vst.msk [vmem:[#allocation4] sm:$0xff] %vm339, %v477
        %479 = vst.msk [vmem:[#allocation2] sm:$0xff] %vm420, %v402
      $region40: #{gpt2_forward.12} parent=31 // pred_fallthru
        _
      // Predicated region
      $region41: #{gpt2_forward.12} parent=31 // pred_check
        %p480 = pneg %p322
      $region42: #{gpt2_forward.12} parent=31 // pred_check_branch
        %482 = sbr.rel (%p480) target = $region44
      $region43: #{gpt2_forward.12} parent=31 // pred_region
        %v483 = vld [vmem:[#allocation4] sm:$0xff]
        %v484 = vld [vmem:[#allocation3] sm:$0xff]
        %v485 = vrcp.pop %v484
        %487 = vset.pattern.permute.xlu0 0
        %488 = vperm.xlu0 %487, %v485
        %v489 = vpop.permute.xlu0 %488
        %v491 = vmul.f32 %v483, %v489
        %v492 = vpack.c.bf16 %v491, %v491
        %vm493 = vcmask 257024
        %494 = vst.msk [vmem:[%s318] sm:$0xf] %vm493, %v492
      $region44: #{gpt2_forward.12} parent=31 // pred_fallthru
        _
      %p495 = scmp.lt.s32.totalorder %s20, 1
      %s496 = scalar_select %p495, %s20, 1
      %p497 = scmp.lt.s32.totalorder %s21, 3
      %s498 = scalar_select %p497, %s21, 3
      %p499 = scmp.lt.s32.totalorder %s22, 0
      %s500 = scalar_select %p499, %s22, 0
      %s501 = sadd.s32 %s500, %s498
      %s502 = smul.addr %s496, 4
      %s503 = sadd.s32 %s501, %s502
      %s504 = smul.addr %s503, 4
      %s505 = scalar_lea.vmem %s3, %s504
      // Predicated region
      $region45: #{gpt2_forward.12} parent=31 // pred_check
        %p506 = pneg %p152
      $region46: #{gpt2_forward.12} parent=31 // pred_check_branch
        %508 = sbr.rel (%p506) target = $region48
      $region47: #{gpt2_forward.12} parent=31 // pred_region
        _
      $region48: #{gpt2_forward.12} parent=31 // pred_fallthru
        _
    $region32: #{gpt2_forward.12} parent=5 // pred_fallthru
      _
    %p509 = scmp.le.s32.totalorder 2, %s9
    // Predicated region
    $region49: #{gpt2_forward.12} parent=5 // pred_check
      %p510 = pneg %p509
    $region50: #{gpt2_forward.12} parent=5 // pred_check_branch
      %512 = sbr.rel (%p510) target = $region52
    $region51: #{gpt2_forward.12} parent=5 // pred_region
      %s513 = ssub.s32 %s9, 2
      // Predicated region
      $region53: #{gpt2_forward.12} parent=51 // pred_check
        %p514 = pneg %p158
      $region54: #{gpt2_forward.12} parent=51 // pred_check_branch
        %516 = sbr.rel (%p514) target = $region56
      $region55: #{gpt2_forward.12} parent=51 // pred_region
        %p517 = scmp.lt.s32.totalorder %s24, 1
        %s518 = scalar_select %p517, %s24, 1
        %p519 = scmp.lt.s32.totalorder %s25, 3
        %s520 = scalar_select %p519, %s25, 3
        %p521 = scmp.lt.s32.totalorder %s26, 0
        %s522 = scalar_select %p521, %s26, 0
        %s523 = sadd.s32 %s522, %s520
        %s524 = smul.addr %s518, 4
        %s525 = sadd.s32 %s523, %s524
        %s526 = smul.addr %s525, 4
        %s527 = scalar_lea.vmem %s3, %s526
      $region56: #{gpt2_forward.12} parent=51 // pred_fallthru
        _
    $region52: #{gpt2_forward.12} parent=5 // pred_fallthru
      _
  $region6: #{gpt2_forward.12} parent=0 // loop_footer
    %s13 = sadd.s32 1, %s9
  $region7: #{gpt2_forward.12} parent=0 // loop_footer_branch
    %8 = sbr.rel target = $region3
  $region8: #{gpt2_forward.12} parent=0 // loop_exit
    _

// kernel: gpt2_forward.11
$region0: #{gpt2_forward.11}
  #allocation0 [shape = 'u32[]', space=smem, size = 0x4, offset = 0x4, fixed_abs, tag = 'smem constant byte address 0x4 - core index']
  #allocation1 [shape = 'u32[144,128]{1,0:T(1,128)}', space=vmem, size = 0x12000, scoped, tag = 'internal scratch']
  #allocation2 [shape = 'bf16[16,128]{1,0:T(16,128)(2,1)}', space=vmem, size = 0x1000, scoped, tag = 'scratch operand']
  %s0 = inlined_call_operand.vmem [shape: bf16[16,128], index: 0, kind: input, shape index: {}]
  %s1 = inlined_call_operand.vmem [shape: f32[1,128], index: 1, kind: input, shape index: {}]
  %s2 = inlined_call_operand.vmem [shape: f32[1,128], index: 2, kind: input, shape index: {}]
  %s3 = inlined_call_operand.vmem [shape: bf16[128,384], index: 3, kind: input, shape index: {}]
  %s4 = inlined_call_operand.vmem [shape: f32[1,384], index: 4, kind: input, shape index: {}]
  %s5 = inlined_call_operand.vmem [shape: bf16[16,384], index: 5, kind: output, shape index: {}]
  %s6 = sld [smem:[#allocation0]]
  $region34: #{gpt2_forward.11} parent=0
    _
  %s8 = ssub.s32 1, %s6
  %s9 = scalar_select 0, %s8, %s6
  // Predicated region
  $region2: #{gpt2_forward.11} parent=0 // pred_check
    _
  $region3: #{gpt2_forward.11} parent=0 // pred_check_branch
    %11 = sbr.rel (0) target = $region5
  $region4: #{gpt2_forward.11} parent=0 // pred_region
    _
  $region5: #{gpt2_forward.11} parent=0 // pred_fallthru
    _
  // Predicated region
  $region6: #{gpt2_forward.11} parent=0 // pred_check
    _
  $region7: #{gpt2_forward.11} parent=0 // pred_check_branch
    %13 = sbr.rel (0) target = $region9
  $region8: #{gpt2_forward.11} parent=0 // pred_region
    _
  $region9: #{gpt2_forward.11} parent=0 // pred_fallthru
    _
  // Predicated region
  $region10: #{gpt2_forward.11} parent=0 // pred_check
    _
  $region11: #{gpt2_forward.11} parent=0 // pred_check_branch
    %15 = sbr.rel (0) target = $region13
  $region12: #{gpt2_forward.11} parent=0 // pred_region
    _
  $region13: #{gpt2_forward.11} parent=0 // pred_fallthru
    _
  // Predicated region
  $region14: #{gpt2_forward.11} parent=0 // pred_check
    _
  $region15: #{gpt2_forward.11} parent=0 // pred_check_branch
    %17 = sbr.rel (0) target = $region17
  $region16: #{gpt2_forward.11} parent=0 // pred_region
    _
  $region17: #{gpt2_forward.11} parent=0 // pred_fallthru
    _
  // Predicated region
  $region18: #{gpt2_forward.11} parent=0 // pred_check
    _
  $region19: #{gpt2_forward.11} parent=0 // pred_check_branch
    %19 = sbr.rel (0) target = $region21
  $region20: #{gpt2_forward.11} parent=0 // pred_region
    _
  $region21: #{gpt2_forward.11} parent=0 // pred_fallthru
    _
  %p21 = scmp.eq.s32.totalorder 0, 0
  // Predicated region
  $region22: #{gpt2_forward.11} parent=0 // pred_check
    %p22 = pneg %p21
  $region23: #{gpt2_forward.11} parent=0 // pred_check_branch
    %24 = sbr.rel (%p22) target = $region25
  $region24: #{gpt2_forward.11} parent=0 // pred_region
    %v25 = vld [vmem:[%s0] sm:$0xf]
    %v26 = vld [vmem:[%s0 + $0x4] sm:$0xf]
    %v27 = vunpack.c.l.bf16 %v25
    %v28 = vunpack.c.l.bf16 %v26
    %29 = vadd.xlane.f32.xlu0 %v27
    %v30 = vpop.xlane.xlu0 %29
    %31 = vadd.xlane.f32.xlu0 %v28
    %v32 = vpop.xlane.xlu0 %31
    %v33 = vrcp.pop 128.0
    %v34 = vmul.f32 %v30, %v33
    %v35 = vmul.f32 %v32, %v33
    %v36 = vsub.f32 %v27, %v34
    %v37 = vsub.f32 %v28, %v35
    %v38 = vmul.f32 %v36, %v36
    %v39 = vmul.f32 %v37, %v37
    %40 = vadd.xlane.f32.xlu0 %v38
    %v41 = vpop.xlane.xlu0 %40
    %42 = vadd.xlane.f32.xlu0 %v39
    %v43 = vpop.xlane.xlu0 %42
    %v44 = vmul.f32 %v41, %v33
    %v45 = vmul.f32 %v43, %v33
    %v46 = vadd.f32 %v44, 1e-05
    %v47 = vadd.f32 %v45, 1e-05
    %v48 = vrsqrt.pop %v46
    %v49 = vrsqrt.pop %v47
    %v50 = vmul.f32 %v36, %v48
    %v51 = vmul.f32 %v37, %v49
    %v52 = vld [vmem:[%s1] sm:$0x1]
    %v54 = vlaneseq
    %v55 = vshrl.u32 %v54, 7
    %v56 = vsub.s32 0, %v55
    %v57 = vrot.slane %v52, %v56
    %v59 = vmul.f32 %v50, %v57
    %v60 = vmul.f32 %v51, %v57
    %v61 = vld [vmem:[%s2] sm:$0x1]
    %v63 = vlaneseq
    %v64 = vshrl.u32 %v63, 7
    %v65 = vsub.s32 0, %v64
    %v66 = vrot.slane %v61, %v65
    %v68 = vadd.f32 %v59, %v66
    %v69 = vadd.f32 %v60, %v66
    %v70 = vpack.c.bf16 %v69, %v68
    %71 = vst [vmem:[#allocation2] sm:$0xff] %v70
  $region25: #{gpt2_forward.11} parent=0 // pred_fallthru
    _
  %v72 = vld [vmem:[#allocation2] sm:$0xff]
  %v73 = vld [vmem:[%s3] sm:$0xff]
  %v74 = vld [vmem:[%s3 + $0x8] sm:$0xf]
  %v75 = vld [vmem:[%s3 + $0xc] sm:$0xff]
  %v76 = vld [vmem:[%s3 + $0x14] sm:$0xf]
  %v77 = vld [vmem:[%s3 + $0x18] sm:$0xff]
  %v78 = vld [vmem:[%s3 + $0x20] sm:$0xf]
  %v79 = vld [vmem:[%s3 + $0x24] sm:$0xff]
  %v80 = vld [vmem:[%s3 + $0x2c] sm:$0xf]
  %v81 = vld [vmem:[%s3 + $0x30] sm:$0xff]
  %v82 = vld [vmem:[%s3 + $0x38] sm:$0xf]
  %v83 = vld [vmem:[%s3 + $0x3c] sm:$0xff]
  %v84 = vld [vmem:[%s3 + $0x44] sm:$0xf]
  %v85 = vld [vmem:[%s3 + $0x48] sm:$0xff]
  %v86 = vld [vmem:[%s3 + $0x50] sm:$0xf]
  %v87 = vld [vmem:[%s3 + $0x54] sm:$0xff]
  %v88 = vld [vmem:[%s3 + $0x5c] sm:$0xf]
  %v89 = vld [vmem:[%s3 + $0x60] sm:$0xff]
  %v90 = vld [vmem:[%s3 + $0x68] sm:$0xf]
  %v91 = vld [vmem:[%s3 + $0x6c] sm:$0xff]
  %v92 = vld [vmem:[%s3 + $0x74] sm:$0xf]
  %v93 = vld [vmem:[%s3 + $0x78] sm:$0xff]
  %v94 = vld [vmem:[%s3 + $0x80] sm:$0xf]
  %v95 = vld [vmem:[%s3 + $0x84] sm:$0xff]
  %v96 = vld [vmem:[%s3 + $0x8c] sm:$0xf]
  %v97 = vld [vmem:[%s3 + $0x90] sm:$0xff]
  %v98 = vld [vmem:[%s3 + $0x98] sm:$0xf]
  %v99 = vld [vmem:[%s3 + $0x9c] sm:$0xff]
  %v100 = vld [vmem:[%s3 + $0xa4] sm:$0xf]
  %v101 = vld [vmem:[%s3 + $0xa8] sm:$0xff]
  %v102 = vld [vmem:[%s3 + $0xb0] sm:$0xf]
  %v103 = vld [vmem:[%s3 + $0xb4] sm:$0xff]
  %v104 = vld [vmem:[%s3 + $0xbc] sm:$0xf]
  %v105 = vld [vmem:[%s4] sm:$0x7]
  %v107 = vlaneseq
  %v108 = vshrl.u32 %v107, 7
  %v109 = vsub.s32 0, %v108
  %v110 = vrot.slane %v105, %v109
  %v111 = vlaneseq
  %v112 = vshrl.u32 %v111, 7
  %v113 = vsub.s32 1, %v112
  %v114 = vrot.slane %v105, %v113
  %v115 = vlaneseq
  %v116 = vshrl.u32 %v115, 7
  %v117 = vsub.s32 2, %v116
  %v118 = vrot.slane %v105, %v117
  %v154 = vunpack.c.l.b16 %v73
  %v155 = vunpack.c.h.b16 %v73
  %v156 = vunpack.c.l.b16 %v74
  %v157 = vunpack.c.l.b16 %v75
  %v158 = vunpack.c.h.b16 %v75
  %v159 = vunpack.c.l.b16 %v76
  %v160 = vunpack.c.l.b16 %v77
  %v161 = vunpack.c.h.b16 %v77
  %v162 = vunpack.c.l.b16 %v78
  %v163 = vunpack.c.l.b16 %v79
  %v164 = vunpack.c.h.b16 %v79
  %v165 = vunpack.c.l.b16 %v80
  %v166 = vunpack.c.l.b16 %v81
  %v167 = vunpack.c.h.b16 %v81
  %v168 = vunpack.c.l.b16 %v82
  %v169 = vunpack.c.l.b16 %v83
  %v170 = vunpack.c.h.b16 %v83
  %v171 = vunpack.c.l.b16 %v84
  %v172 = vunpack.c.l.b16 %v85
  %v173 = vunpack.c.h.b16 %v85
  %v174 = vunpack.c.l.b16 %v86
  %v175 = vunpack.c.l.b16 %v87
  %v176 = vunpack.c.h.b16 %v87
  %v177 = vunpack.c.l.b16 %v88
  %v178 = vunpack.c.l.b16 %v89
  %v179 = vunpack.c.h.b16 %v89
  %v180 = vunpack.c.l.b16 %v90
  %v181 = vunpack.c.l.b16 %v91
  %v182 = vunpack.c.h.b16 %v91
  %v183 = vunpack.c.l.b16 %v92
  %v184 = vunpack.c.l.b16 %v93
  %v185 = vunpack.c.h.b16 %v93
  %v186 = vunpack.c.l.b16 %v94
  %v187 = vunpack.c.l.b16 %v95
  %v188 = vunpack.c.h.b16 %v95
  %v189 = vunpack.c.l.b16 %v96
  %v190 = vunpack.c.l.b16 %v97
  %v191 = vunpack.c.h.b16 %v97
  %v192 = vunpack.c.l.b16 %v98
  %v193 = vunpack.c.l.b16 %v99
  %v194 = vunpack.c.h.b16 %v99
  %v195 = vunpack.c.l.b16 %v100
  %v196 = vunpack.c.l.b16 %v101
  %v197 = vunpack.c.h.b16 %v101
  %v198 = vunpack.c.l.b16 %v102
  %v199 = vunpack.c.l.b16 %v103
  %v200 = vunpack.c.h.b16 %v103
  %v201 = vunpack.c.l.b16 %v104
  %v202 = vpack.c.b16 %v157, %v154
  %v203 = vpack.c.b16 %v158, %v155
  %v204 = vpack.c.b16 %v159, %v156
  %v205 = vpack.c.b16 %v163, %v160
  %v206 = vpack.c.b16 %v164, %v161
  %v207 = vpack.c.b16 %v165, %v162
  %v208 = vpack.c.b16 %v169, %v166
  %v209 = vpack.c.b16 %v170, %v167
  %v210 = vpack.c.b16 %v171, %v168
  %v211 = vpack.c.b16 %v175, %v172
  %v212 = vpack.c.b16 %v176, %v173
  %v213 = vpack.c.b16 %v177, %v174
  %v214 = vpack.c.b16 %v181, %v178
  %v215 = vpack.c.b16 %v182, %v179
  %v216 = vpack.c.b16 %v183, %v180
  %v217 = vpack.c.b16 %v187, %v184
  %v218 = vpack.c.b16 %v188, %v185
  %v219 = vpack.c.b16 %v189, %v186
  %v220 = vpack.c.b16 %v193, %v190
  %v221 = vpack.c.b16 %v194, %v191
  %v222 = vpack.c.b16 %v195, %v192
  %v223 = vpack.c.b16 %v199, %v196
  %v224 = vpack.c.b16 %v200, %v197
  %v225 = vpack.c.b16 %v201, %v198
  %250 = vmatprep.subr.bf16.mxu0 %v203
  %251 = vmatpush1.bf16.msra.mxu0 %v202
  %252 = vmatprep.subr.bf16.mxu0 %v206
  %253 = vmatpush1.bf16.msra.mxu0 %v205
  %254 = vmatprep.subr.bf16.mxu0 %v209
  %255 = vmatpush1.bf16.msra.mxu0 %v208
  %256 = vmatprep.subr.bf16.mxu0 %v212
  %257 = vmatpush1.bf16.msra.mxu0 %v211
  %258 = vmatprep.subr.bf16.mxu0 %v215
  %259 = vmatpush1.bf16.msra.mxu0 %v214
  %260 = vmatprep.subr.bf16.mxu0 %v218
  %261 = vmatpush1.bf16.msra.mxu0 %v217
  %262 = vmatprep.subr.bf16.mxu0 %v221
  %263 = vmatpush1.bf16.msra.mxu0 %v220
  %264 = vmatprep.subr.bf16.mxu0 %v224
  %265 = vmatpush1.bf16.msra.mxu0 %v223
  %266 = vmatprep.subr.bf16.mxu0 0
  %267 = vmatpush1.bf16.msra.mxu0 0
  %268 = vmatprep.subr.bf16.mxu0 0
  %269 = vmatpush1.bf16.msra.mxu0 0
  %270 = vmatprep.subr.bf16.mxu0 0
  %271 = vmatpush1.bf16.msra.mxu0 0
  %272 = vmatprep.subr.bf16.mxu0 0
  %273 = vmatpush1.bf16.msra.mxu0 0
  %274 = vmatprep.subr.bf16.mxu0 0
  %275 = vmatpush1.bf16.msra.mxu0 0
  %276 = vmatprep.subr.bf16.mxu0 0
  %277 = vmatpush1.bf16.msra.mxu0 0
  %278 = vmatprep.subr.bf16.mxu0 0
  %279 = vmatpush1.bf16.msra.mxu0 0
  %280 = vmatprep.subr.bf16.mxu0 0
  %281 = vmatpush1.bf16.msra.mxu0 0
  %282 = vmatprep.mubr.bf16.mxu0 0
  %283 = vmatmul.mubr.bf16.gmra.mrb[0].mxu0 %v72
  %v284 = vpop.f32.mrb[0].mxu0
  %v285 = vadd.f32 %v110, %v284
  %v286 = vpop.f32.mrb[0].mxu0
  %v287 = vadd.f32 %v114, %v286
  %v288 = vpop.f32.mrb[0].mxu0
  %v289 = vadd.f32 %v110, %v288
  %v290 = vpop.f32.mrb[0].mxu0
  %v291 = vadd.f32 %v114, %v290
  %292 = vdwg.mxu0
  %293 = vmatprep.subr.bf16.mxu0 0
  %294 = vmatpush1.bf16.msra.mxu0 %v204
  %295 = vmatprep.subr.bf16.mxu0 0
  %296 = vmatpush1.bf16.msra.mxu0 %v207
  %297 = vmatprep.subr.bf16.mxu0 0
  %298 = vmatpush1.bf16.msra.mxu0 %v210
  %299 = vmatprep.subr.bf16.mxu0 0
  %300 = vmatpush1.bf16.msra.mxu0 %v213
  %301 = vmatprep.subr.bf16.mxu0 0
  %302 = vmatpush1.bf16.msra.mxu0 %v216
  %303 = vmatprep.subr.bf16.mxu0 0
  %304 = vmatpush1.bf16.msra.mxu0 %v219
  %305 = vmatprep.subr.bf16.mxu0 0
  %306 = vmatpush1.bf16.msra.mxu0 %v222
  %307 = vmatprep.subr.bf16.mxu0 0
  %308 = vmatpush1.bf16.msra.mxu0 %v225
  %309 = vmatprep.subr.bf16.mxu0 0
  %310 = vmatpush1.bf16.msra.mxu0 0
  %311 = vmatprep.subr.bf16.mxu0 0
  %312 = vmatpush1.bf16.msra.mxu0 0
  %313 = vmatprep.subr.bf16.mxu0 0
  %314 = vmatpush1.bf16.msra.mxu0 0
  %315 = vmatprep.subr.bf16.mxu0 0
  %316 = vmatpush1.bf16.msra.mxu0 0
  %317 = vmatprep.subr.bf16.mxu0 0
  %318 = vmatpush1.bf16.msra.mxu0 0
  %319 = vmatprep.subr.bf16.mxu0 0
  %320 = vmatpush1.bf16.msra.mxu0 0
  %321 = vmatprep.subr.bf16.mxu0 0
  %322 = vmatpush1.bf16.msra.mxu0 0
  %323 = vmatprep.subr.bf16.mxu0 0
  %324 = vmatpush1.bf16.msra.mxu0 0
  %325 = vmatprep.mubr.bf16.mxu0 0
  %326 = vmatmul.mubr.bf16.gmra.mrb[0].mxu0 %v72
  %v327 = vpop.f32.mrb[0].mxu0
  %v328 = vadd.f32 %v118, %v327
  %v329 = vpop.f32.mrb[0].mxu0
  %v330 = vpop.f32.mrb[0].mxu0
  %v331 = vadd.f32 %v118, %v330
  %v332 = vpop.f32.mrb[0].mxu0
  %333 = vdwg.mxu0
  %v334 = vpack.c.bf16 %v289, %v285
  %v335 = vpack.c.bf16 %v291, %v287
  %v336 = vpack.c.bf16 %v331, %v328
  %v340 = vunpack.c.l.b16 %v334
  %v341 = vunpack.c.l.b16 %v335
  %v342 = vunpack.c.l.b16 %v336
  %v343 = vunpack.c.h.b16 %v334
  %v344 = vunpack.c.h.b16 %v335
  %v345 = vunpack.c.h.b16 %v336
  %v346 = vpack.c.b16 %v341, %v340
  %v347 = vpack.c.b16 %v342, %v342
  %v348 = vpack.c.b16 %v344, %v343
  %v349 = vpack.c.b16 %v345, %v345
  %354 = vst [vmem:[%s5] sm:$0xff] %v346
  %355 = vst [vmem:[%s5 + $0x8] sm:$0xf] %v347
  %356 = vst [vmem:[%s5 + $0xc] sm:$0xff] %v348
  %357 = vst [vmem:[%s5 + $0x14] sm:$0xf] %v349
  // Predicated region
  $region26: #{gpt2_forward.11} parent=0 // pred_check
    _
  $region27: #{gpt2_forward.11} parent=0 // pred_check_branch
    %359 = sbr.rel (0) target = $region29
  $region28: #{gpt2_forward.11} parent=0 // pred_region
    _
  $region29: #{gpt2_forward.11} parent=0 // pred_fallthru
    _
  // Predicated region
  $region30: #{gpt2_forward.11} parent=0 // pred_check
    _
  $region31: #{gpt2_forward.11} parent=0 // pred_check_branch
    %361 = sbr.rel (0) target = $region33
  $region32: #{gpt2_forward.11} parent=0 // pred_region
    _
  $region33: #{gpt2_forward.11} parent=0 // pred_fallthru
    _

// kernel: gpt2_forward.14
$region0: #{gpt2_forward.14}
  #allocation0 [shape = 'u32[]', space=smem, size = 0x4, offset = 0x4, fixed_abs, tag = 'smem constant byte address 0x4 - core index']
  #allocation1 [shape = 'u32[144,128]{1,0:T(1,128)}', space=vmem, size = 0x12000, scoped, tag = 'internal scratch']
  #allocation2 [shape = 'bf16[16,128]{1,0:T(16,128)(2,1)}', space=vmem, size = 0x1000, scoped, tag = 'scratch operand']
  %s0 = inlined_call_operand.vmem [shape: bf16[16,128], index: 0, kind: input, shape index: {}]
  %s1 = inlined_call_operand.vmem [shape: f32[1,128], index: 1, kind: input, shape index: {}]
  %s2 = inlined_call_operand.vmem [shape: f32[1,128], index: 2, kind: input, shape index: {}]
  %s3 = inlined_call_operand.vmem [shape: bf16[128,512], index: 3, kind: input, shape index: {}]
  %s4 = inlined_call_operand.vmem [shape: f32[1,512], index: 4, kind: input, shape index: {}]
  %s5 = inlined_call_operand.vmem [shape: bf16[16,512], index: 5, kind: output, shape index: {}]
  %s6 = sld [smem:[#allocation0]]
  $region34: #{gpt2_forward.14} parent=0
    _
  %s8 = ssub.s32 1, %s6
  %s9 = scalar_select 0, %s8, %s6
  // Predicated region
  $region2: #{gpt2_forward.14} parent=0 // pred_check
    _
  $region3: #{gpt2_forward.14} parent=0 // pred_check_branch
    %11 = sbr.rel (0) target = $region5
  $region4: #{gpt2_forward.14} parent=0 // pred_region
    _
  $region5: #{gpt2_forward.14} parent=0 // pred_fallthru
    _
  // Predicated region
  $region6: #{gpt2_forward.14} parent=0 // pred_check
    _
  $region7: #{gpt2_forward.14} parent=0 // pred_check_branch
    %13 = sbr.rel (0) target = $region9
  $region8: #{gpt2_forward.14} parent=0 // pred_region
    _
  $region9: #{gpt2_forward.14} parent=0 // pred_fallthru
    _
  // Predicated region
  $region10: #{gpt2_forward.14} parent=0 // pred_check
    _
  $region11: #{gpt2_forward.14} parent=0 // pred_check_branch
    %15 = sbr.rel (0) target = $region13
  $region12: #{gpt2_forward.14} parent=0 // pred_region
    _
  $region13: #{gpt2_forward.14} parent=0 // pred_fallthru
    _
  // Predicated region
  $region14: #{gpt2_forward.14} parent=0 // pred_check
    _
  $region15: #{gpt2_forward.14} parent=0 // pred_check_branch
    %17 = sbr.rel (0) target = $region17
  $region16: #{gpt2_forward.14} parent=0 // pred_region
    _
  $region17: #{gpt2_forward.14} parent=0 // pred_fallthru
    _
  // Predicated region
  $region18: #{gpt2_forward.14} parent=0 // pred_check
    _
  $region19: #{gpt2_forward.14} parent=0 // pred_check_branch
    %19 = sbr.rel (0) target = $region21
  $region20: #{gpt2_forward.14} parent=0 // pred_region
    _
  $region21: #{gpt2_forward.14} parent=0 // pred_fallthru
    _
  %p21 = scmp.eq.s32.totalorder 0, 0
  // Predicated region
  $region22: #{gpt2_forward.14} parent=0 // pred_check
    %p22 = pneg %p21
  $region23: #{gpt2_forward.14} parent=0 // pred_check_branch
    %24 = sbr.rel (%p22) target = $region25
  $region24: #{gpt2_forward.14} parent=0 // pred_region
    %v25 = vld [vmem:[%s0] sm:$0xf]
    %v26 = vld [vmem:[%s0 + $0x4] sm:$0xf]
    %v27 = vunpack.c.l.bf16 %v25
    %v28 = vunpack.c.l.bf16 %v26
    %29 = vadd.xlane.f32.xlu0 %v27
    %v30 = vpop.xlane.xlu0 %29
    %31 = vadd.xlane.f32.xlu0 %v28
    %v32 = vpop.xlane.xlu0 %31
    %v33 = vrcp.pop 128.0
    %v34 = vmul.f32 %v30, %v33
    %v35 = vmul.f32 %v32, %v33
    %v36 = vsub.f32 %v27, %v34
    %v37 = vsub.f32 %v28, %v35
    %v38 = vmul.f32 %v36, %v36
    %v39 = vmul.f32 %v37, %v37
    %40 = vadd.xlane.f32.xlu0 %v38
    %v41 = vpop.xlane.xlu0 %40
    %42 = vadd.xlane.f32.xlu0 %v39
    %v43 = vpop.xlane.xlu0 %42
    %v44 = vmul.f32 %v41, %v33
    %v45 = vmul.f32 %v43, %v33
    %v46 = vadd.f32 %v44, 1e-05
    %v47 = vadd.f32 %v45, 1e-05
    %v48 = vrsqrt.pop %v46
    %v49 = vrsqrt.pop %v47
    %v50 = vmul.f32 %v36, %v48
    %v51 = vmul.f32 %v37, %v49
    %v52 = vld [vmem:[%s1] sm:$0x1]
    %v54 = vlaneseq
    %v55 = vshrl.u32 %v54, 7
    %v56 = vsub.s32 0, %v55
    %v57 = vrot.slane %v52, %v56
    %v59 = vmul.f32 %v50, %v57
    %v60 = vmul.f32 %v51, %v57
    %v61 = vld [vmem:[%s2] sm:$0x1]
    %v63 = vlaneseq
    %v64 = vshrl.u32 %v63, 7
    %v65 = vsub.s32 0, %v64
    %v66 = vrot.slane %v61, %v65
    %v68 = vadd.f32 %v59, %v66
    %v69 = vadd.f32 %v60, %v66
    %v70 = vpack.c.bf16 %v69, %v68
    %71 = vst [vmem:[#allocation2] sm:$0xff] %v70
  $region25: #{gpt2_forward.14} parent=0 // pred_fallthru
    _
  %v72 = vld [vmem:[#allocation2] sm:$0xff]
  %v73 = vld [vmem:[%s3] sm:$0xff]
  %v74 = vld [vmem:[%s3 + $0x8] sm:$0xff]
  %v75 = vld [vmem:[%s3 + $0x10] sm:$0xff]
  %v76 = vld [vmem:[%s3 + $0x18] sm:$0xff]
  %v77 = vld [vmem:[%s3 + $0x20] sm:$0xff]
  %v78 = vld [vmem:[%s3 + $0x28] sm:$0xff]
  %v79 = vld [vmem:[%s3 + $0x30] sm:$0xff]
  %v80 = vld [vmem:[%s3 + $0x38] sm:$0xff]
  %v81 = vld [vmem:[%s3 + $0x40] sm:$0xff]
  %v82 = vld [vmem:[%s3 + $0x48] sm:$0xff]
  %v83 = vld [vmem:[%s3 + $0x50] sm:$0xff]
  %v84 = vld [vmem:[%s3 + $0x58] sm:$0xff]
  %v85 = vld [vmem:[%s3 + $0x60] sm:$0xff]
  %v86 = vld [vmem:[%s3 + $0x68] sm:$0xff]
  %v87 = vld [vmem:[%s3 + $0x70] sm:$0xff]
  %v88 = vld [vmem:[%s3 + $0x78] sm:$0xff]
  %v89 = vld [vmem:[%s3 + $0x80] sm:$0xff]
  %v90 = vld [vmem:[%s3 + $0x88] sm:$0xff]
  %v91 = vld [vmem:[%s3 + $0x90] sm:$0xff]
  %v92 = vld [vmem:[%s3 + $0x98] sm:$0xff]
  %v93 = vld [vmem:[%s3 + $0xa0] sm:$0xff]
  %v94 = vld [vmem:[%s3 + $0xa8] sm:$0xff]
  %v95 = vld [vmem:[%s3 + $0xb0] sm:$0xff]
  %v96 = vld [vmem:[%s3 + $0xb8] sm:$0xff]
  %v97 = vld [vmem:[%s3 + $0xc0] sm:$0xff]
  %v98 = vld [vmem:[%s3 + $0xc8] sm:$0xff]
  %v99 = vld [vmem:[%s3 + $0xd0] sm:$0xff]
  %v100 = vld [vmem:[%s3 + $0xd8] sm:$0xff]
  %v101 = vld [vmem:[%s3 + $0xe0] sm:$0xff]
  %v102 = vld [vmem:[%s3 + $0xe8] sm:$0xff]
  %v103 = vld [vmem:[%s3 + $0xf0] sm:$0xff]
  %v104 = vld [vmem:[%s3 + $0xf8] sm:$0xff]
  %v105 = vld [vmem:[%s4] sm:$0xf]
  %v107 = vlaneseq
  %v108 = vshrl.u32 %v107, 7
  %v109 = vsub.s32 0, %v108
  %v110 = vrot.slane %v105, %v109
  %v111 = vlaneseq
  %v112 = vshrl.u32 %v111, 7
  %v113 = vsub.s32 1, %v112
  %v114 = vrot.slane %v105, %v113
  %v115 = vlaneseq
  %v116 = vshrl.u32 %v115, 7
  %v117 = vsub.s32 2, %v116
  %v118 = vrot.slane %v105, %v117
  %v119 = vlaneseq
  %v120 = vshrl.u32 %v119, 7
  %v121 = vsub.s32 3, %v120
  %v122 = vrot.slane %v105, %v121
  %v159 = vunpack.c.l.b16 %v73
  %v160 = vunpack.c.h.b16 %v73
  %v161 = vunpack.c.l.b16 %v74
  %v162 = vunpack.c.h.b16 %v74
  %v163 = vunpack.c.l.b16 %v75
  %v164 = vunpack.c.h.b16 %v75
  %v165 = vunpack.c.l.b16 %v76
  %v166 = vunpack.c.h.b16 %v76
  %v167 = vunpack.c.l.b16 %v77
  %v168 = vunpack.c.h.b16 %v77
  %v169 = vunpack.c.l.b16 %v78
  %v170 = vunpack.c.h.b16 %v78
  %v171 = vunpack.c.l.b16 %v79
  %v172 = vunpack.c.h.b16 %v79
  %v173 = vunpack.c.l.b16 %v80
  %v174 = vunpack.c.h.b16 %v80
  %v175 = vunpack.c.l.b16 %v81
  %v176 = vunpack.c.h.b16 %v81
  %v177 = vunpack.c.l.b16 %v82
  %v178 = vunpack.c.h.b16 %v82
  %v179 = vunpack.c.l.b16 %v83
  %v180 = vunpack.c.h.b16 %v83
  %v181 = vunpack.c.l.b16 %v84
  %v182 = vunpack.c.h.b16 %v84
  %v183 = vunpack.c.l.b16 %v85
  %v184 = vunpack.c.h.b16 %v85
  %v185 = vunpack.c.l.b16 %v86
  %v186 = vunpack.c.h.b16 %v86
  %v187 = vunpack.c.l.b16 %v87
  %v188 = vunpack.c.h.b16 %v87
  %v189 = vunpack.c.l.b16 %v88
  %v190 = vunpack.c.h.b16 %v88
  %v191 = vunpack.c.l.b16 %v89
  %v192 = vunpack.c.h.b16 %v89
  %v193 = vunpack.c.l.b16 %v90
  %v194 = vunpack.c.h.b16 %v90
  %v195 = vunpack.c.l.b16 %v91
  %v196 = vunpack.c.h.b16 %v91
  %v197 = vunpack.c.l.b16 %v92
  %v198 = vunpack.c.h.b16 %v92
  %v199 = vunpack.c.l.b16 %v93
  %v200 = vunpack.c.h.b16 %v93
  %v201 = vunpack.c.l.b16 %v94
  %v202 = vunpack.c.h.b16 %v94
  %v203 = vunpack.c.l.b16 %v95
  %v204 = vunpack.c.h.b16 %v95
  %v205 = vunpack.c.l.b16 %v96
  %v206 = vunpack.c.h.b16 %v96
  %v207 = vunpack.c.l.b16 %v97
  %v208 = vunpack.c.h.b16 %v97
  %v209 = vunpack.c.l.b16 %v98
  %v210 = vunpack.c.h.b16 %v98
  %v211 = vunpack.c.l.b16 %v99
  %v212 = vunpack.c.h.b16 %v99
  %v213 = vunpack.c.l.b16 %v100
  %v214 = vunpack.c.h.b16 %v100
  %v215 = vunpack.c.l.b16 %v101
  %v216 = vunpack.c.h.b16 %v101
  %v217 = vunpack.c.l.b16 %v102
  %v218 = vunpack.c.h.b16 %v102
  %v219 = vunpack.c.l.b16 %v103
  %v220 = vunpack.c.h.b16 %v103
  %v221 = vunpack.c.l.b16 %v104
  %v222 = vunpack.c.h.b16 %v104
  %v223 = vpack.c.b16 %v163, %v159
  %v224 = vpack.c.b16 %v164, %v160
  %v225 = vpack.c.b16 %v165, %v161
  %v226 = vpack.c.b16 %v166, %v162
  %v227 = vpack.c.b16 %v171, %v167
  %v228 = vpack.c.b16 %v172, %v168
  %v229 = vpack.c.b16 %v173, %v169
  %v230 = vpack.c.b16 %v174, %v170
  %v231 = vpack.c.b16 %v179, %v175
  %v232 = vpack.c.b16 %v180, %v176
  %v233 = vpack.c.b16 %v181, %v177
  %v234 = vpack.c.b16 %v182, %v178
  %v235 = vpack.c.b16 %v187, %v183
  %v236 = vpack.c.b16 %v188, %v184
  %v237 = vpack.c.b16 %v189, %v185
  %v238 = vpack.c.b16 %v190, %v186
  %v239 = vpack.c.b16 %v195, %v191
  %v240 = vpack.c.b16 %v196, %v192
  %v241 = vpack.c.b16 %v197, %v193
  %v242 = vpack.c.b16 %v198, %v194
  %v243 = vpack.c.b16 %v203, %v199
  %v244 = vpack.c.b16 %v204, %v200
  %v245 = vpack.c.b16 %v205, %v201
  %v246 = vpack.c.b16 %v206, %v202
  %v247 = vpack.c.b16 %v211, %v207
  %v248 = vpack.c.b16 %v212, %v208
  %v249 = vpack.c.b16 %v213, %v209
  %v250 = vpack.c.b16 %v214, %v210
  %v251 = vpack.c.b16 %v219, %v215
  %v252 = vpack.c.b16 %v220, %v216
  %v253 = vpack.c.b16 %v221, %v217
  %v254 = vpack.c.b16 %v222, %v218
  %287 = vmatprep.subr.bf16.mxu0 %v224
  %288 = vmatpush1.bf16.msra.mxu0 %v223
  %289 = vmatprep.subr.bf16.mxu0 %v228
  %290 = vmatpush1.bf16.msra.mxu0 %v227
  %291 = vmatprep.subr.bf16.mxu0 %v232
  %292 = vmatpush1.bf16.msra.mxu0 %v231
  %293 = vmatprep.subr.bf16.mxu0 %v236
  %294 = vmatpush1.bf16.msra.mxu0 %v235
  %295 = vmatprep.subr.bf16.mxu0 %v240
  %296 = vmatpush1.bf16.msra.mxu0 %v239
  %297 = vmatprep.subr.bf16.mxu0 %v244
  %298 = vmatpush1.bf16.msra.mxu0 %v243
  %299 = vmatprep.subr.bf16.mxu0 %v248
  %300 = vmatpush1.bf16.msra.mxu0 %v247
  %301 = vmatprep.subr.bf16.mxu0 %v252
  %302 = vmatpush1.bf16.msra.mxu0 %v251
  %303 = vmatprep.subr.bf16.mxu0 0
  %304 = vmatpush1.bf16.msra.mxu0 0
  %305 = vmatprep.subr.bf16.mxu0 0
  %306 = vmatpush1.bf16.msra.mxu0 0
  %307 = vmatprep.subr.bf16.mxu0 0
  %308 = vmatpush1.bf16.msra.mxu0 0
  %309 = vmatprep.subr.bf16.mxu0 0
  %310 = vmatpush1.bf16.msra.mxu0 0
  %311 = vmatprep.subr.bf16.mxu0 0
  %312 = vmatpush1.bf16.msra.mxu0 0
  %313 = vmatprep.subr.bf16.mxu0 0
  %314 = vmatpush1.bf16.msra.mxu0 0
  %315 = vmatprep.subr.bf16.mxu0 0
  %316 = vmatpush1.bf16.msra.mxu0 0
  %317 = vmatprep.subr.bf16.mxu0 0
  %318 = vmatpush1.bf16.msra.mxu0 0
  %319 = vmatprep.mubr.bf16.mxu0 0
  %320 = vmatmul.mubr.bf16.gmra.mrb[0].mxu0 %v72
  %v321 = vpop.f32.mrb[0].mxu0
  %v322 = vadd.f32 %v110, %v321
  %v323 = vpop.f32.mrb[0].mxu0
  %v324 = vadd.f32 %v114, %v323
  %v325 = vpop.f32.mrb[0].mxu0
  %v326 = vadd.f32 %v110, %v325
  %v327 = vpop.f32.mrb[0].mxu0
  %v328 = vadd.f32 %v114, %v327
  %329 = vdwg.mxu0
  %330 = vmatprep.subr.bf16.mxu0 %v226
  %331 = vmatpush1.bf16.msra.mxu0 %v225
  %332 = vmatprep.subr.bf16.mxu0 %v230
  %333 = vmatpush1.bf16.msra.mxu0 %v229
  %334 = vmatprep.subr.bf16.mxu0 %v234
  %335 = vmatpush1.bf16.msra.mxu0 %v233
  %336 = vmatprep.subr.bf16.mxu0 %v238
  %337 = vmatpush1.bf16.msra.mxu0 %v237
  %338 = vmatprep.subr.bf16.mxu0 %v242
  %339 = vmatpush1.bf16.msra.mxu0 %v241
  %340 = vmatprep.subr.bf16.mxu0 %v246
  %341 = vmatpush1.bf16.msra.mxu0 %v245
  %342 = vmatprep.subr.bf16.mxu0 %v250
  %343 = vmatpush1.bf16.msra.mxu0 %v249
  %344 = vmatprep.subr.bf16.mxu0 %v254
  %345 = vmatpush1.bf16.msra.mxu0 %v253
  %346 = vmatprep.subr.bf16.mxu0 0
  %347 = vmatpush1.bf16.msra.mxu0 0
  %348 = vmatprep.subr.bf16.mxu0 0
  %349 = vmatpush1.bf16.msra.mxu0 0
  %350 = vmatprep.subr.bf16.mxu0 0
  %351 = vmatpush1.bf16.msra.mxu0 0
  %352 = vmatprep.subr.bf16.mxu0 0
  %353 = vmatpush1.bf16.msra.mxu0 0
  %354 = vmatprep.subr.bf16.mxu0 0
  %355 = vmatpush1.bf16.msra.mxu0 0
  %356 = vmatprep.subr.bf16.mxu0 0
  %357 = vmatpush1.bf16.msra.mxu0 0
  %358 = vmatprep.subr.bf16.mxu0 0
  %359 = vmatpush1.bf16.msra.mxu0 0
  %360 = vmatprep.subr.bf16.mxu0 0
  %361 = vmatpush1.bf16.msra.mxu0 0
  %362 = vmatprep.mubr.bf16.mxu0 0
  %363 = vmatmul.mubr.bf16.gmra.mrb[0].mxu0 %v72
  %v364 = vpop.f32.mrb[0].mxu0
  %v365 = vadd.f32 %v118, %v364
  %v366 = vpop.f32.mrb[0].mxu0
  %v367 = vadd.f32 %v122, %v366
  %v368 = vpop.f32.mrb[0].mxu0
  %v369 = vadd.f32 %v118, %v368
  %v370 = vpop.f32.mrb[0].mxu0
  %v371 = vadd.f32 %v122, %v370
  %372 = vdwg.mxu0
  %v373 = vmul.f32 %v322, 0.5
  %v374 = vmul.f32 %v324, 0.5
  %v375 = vmul.f32 %v365, 0.5
  %v376 = vmul.f32 %v367, 0.5
  %v377 = vmul.f32 %v326, 0.5
  %v378 = vmul.f32 %v328, 0.5
  %v379 = vmul.f32 %v369, 0.5
  %v380 = vmul.f32 %v371, 0.5
  %v381 = vmul.f32 %v322, 0.044715
  %v382 = vmul.f32 %v324, 0.044715
  %v383 = vmul.f32 %v365, 0.044715
  %v384 = vmul.f32 %v367, 0.044715
  %v385 = vmul.f32 %v326, 0.044715
  %v386 = vmul.f32 %v328, 0.044715
  %v387 = vmul.f32 %v369, 0.044715
  %v388 = vmul.f32 %v371, 0.044715
  %v389 = vmul.f32 %v381, %v322
  %v390 = vmul.f32 %v382, %v324
  %v391 = vmul.f32 %v383, %v365
  %v392 = vmul.f32 %v384, %v367
  %v393 = vmul.f32 %v385, %v326
  %v394 = vmul.f32 %v386, %v328
  %v395 = vmul.f32 %v387, %v369
  %v396 = vmul.f32 %v388, %v371
  %v397 = vmul.f32 %v389, %v322
  %v398 = vmul.f32 %v390, %v324
  %v399 = vmul.f32 %v391, %v365
  %v400 = vmul.f32 %v392, %v367
  %v401 = vmul.f32 %v393, %v326
  %v402 = vmul.f32 %v394, %v328
  %v403 = vmul.f32 %v395, %v369
  %v404 = vmul.f32 %v396, %v371
  %v405 = vadd.f32 %v322, %v397
  %v406 = vadd.f32 %v324, %v398
  %v407 = vadd.f32 %v365, %v399
  %v408 = vadd.f32 %v367, %v400
  %v409 = vadd.f32 %v326, %v401
  %v410 = vadd.f32 %v328, %v402
  %v411 = vadd.f32 %v369, %v403
  %v412 = vadd.f32 %v371, %v404
  %v413 = vmul.f32 %v405, 0.7978846
  %v414 = vmul.f32 %v406, 0.7978846
  %v415 = vmul.f32 %v407, 0.7978846
  %v416 = vmul.f32 %v408, 0.7978846
  %v417 = vmul.f32 %v409, 0.7978846
  %v418 = vmul.f32 %v410, 0.7978846
  %v419 = vmul.f32 %v411, 0.7978846
  %v420 = vmul.f32 %v412, 0.7978846
  %v421 = vtanh.pop %v413
  %v422 = vtanh.pop %v414
  %v423 = vtanh.pop %v415
  %v424 = vtanh.pop %v416
  %v425 = vtanh.pop %v417
  %v426 = vtanh.pop %v418
  %v427 = vtanh.pop %v419
  %v428 = vtanh.pop %v420
  %v429 = vadd.f32 %v421, 1.0
  %v430 = vadd.f32 %v422, 1.0
  %v431 = vadd.f32 %v423, 1.0
  %v432 = vadd.f32 %v424, 1.0
  %v433 = vadd.f32 %v425, 1.0
  %v434 = vadd.f32 %v426, 1.0
  %v435 = vadd.f32 %v427, 1.0
  %v436 = vadd.f32 %v428, 1.0
  %v437 = vmul.f32 %v373, %v429
  %v438 = vmul.f32 %v374, %v430
  %v439 = vmul.f32 %v375, %v431
  %v440 = vmul.f32 %v376, %v432
  %v441 = vmul.f32 %v377, %v433
  %v442 = vmul.f32 %v378, %v434
  %v443 = vmul.f32 %v379, %v435
  %v444 = vmul.f32 %v380, %v436
  %v445 = vpack.c.bf16 %v441, %v437
  %v446 = vpack.c.bf16 %v442, %v438
  %v447 = vpack.c.bf16 %v443, %v439
  %v448 = vpack.c.bf16 %v444, %v440
  %v453 = vunpack.c.l.b16 %v445
  %v454 = vunpack.c.l.b16 %v446
  %v455 = vunpack.c.l.b16 %v447
  %v456 = vunpack.c.l.b16 %v448
  %v457 = vunpack.c.h.b16 %v445
  %v458 = vunpack.c.h.b16 %v446
  %v459 = vunpack.c.h.b16 %v447
  %v460 = vunpack.c.h.b16 %v448
  %v461 = vpack.c.b16 %v454, %v453
  %v462 = vpack.c.b16 %v456, %v455
  %v463 = vpack.c.b16 %v458, %v457
  %v464 = vpack.c.b16 %v460, %v459
  %469 = vst [vmem:[%s5] sm:$0xff] %v461
  %470 = vst [vmem:[%s5 + $0x8] sm:$0xff] %v462
  %471 = vst [vmem:[%s5 + $0x10] sm:$0xff] %v463
  %472 = vst [vmem:[%s5 + $0x18] sm:$0xff] %v464
  // Predicated region
  $region26: #{gpt2_forward.14} parent=0 // pred_check
    _
  $region27: #{gpt2_forward.14} parent=0 // pred_check_branch
    %474 = sbr.rel (0) target = $region29
  $region28: #{gpt2_forward.14} parent=0 // pred_region
    _
  $region29: #{gpt2_forward.14} parent=0 // pred_fallthru
    _
  // Predicated region
  $region30: #{gpt2_forward.14} parent=0 // pred_check
    _
  $region31: #{gpt2_forward.14} parent=0 // pred_check_branch
    %476 = sbr.rel (0) target = $region33
  $region32: #{gpt2_forward.14} parent=0 // pred_region
    _
  $region33: #{gpt2_forward.14} parent=0 // pred_fallthru
    _

// kernel: gpt2_forward.15
$region0: #{gpt2_forward.15}
  #allocation0 [shape = 'u32[]', space=smem, size = 0x4, offset = 0x4, fixed_abs, tag = 'smem constant byte address 0x4 - core index']
  #allocation1 [shape = 'u32[144,128]{1,0:T(1,128)}', space=vmem, size = 0x12000, scoped, tag = 'internal scratch']
  %s0 = inlined_call_operand.vmem [shape: bf16[16,512], index: 0, kind: input, shape index: {}]
  %s1 = inlined_call_operand.vmem [shape: bf16[512,128], index: 1, kind: input, shape index: {}]
  %s2 = inlined_call_operand.vmem [shape: f32[1,128], index: 2, kind: input, shape index: {}]
  %s3 = inlined_call_operand.vmem [shape: bf16[16,128], index: 3, kind: input, shape index: {}]
  %s4 = inlined_call_operand.vmem [shape: bf16[16,128], index: 4, kind: output, shape index: {}]
  %s5 = sld [smem:[#allocation0]]
  $region26: #{gpt2_forward.15} parent=0
    _
  %s7 = ssub.s32 1, %s5
  %s8 = scalar_select 0, %s7, %s5
  // Predicated region
  $region2: #{gpt2_forward.15} parent=0 // pred_check
    _
  $region3: #{gpt2_forward.15} parent=0 // pred_check_branch
    %10 = sbr.rel (0) target = $region5
  $region4: #{gpt2_forward.15} parent=0 // pred_region
    _
  $region5: #{gpt2_forward.15} parent=0 // pred_fallthru
    _
  // Predicated region
  $region6: #{gpt2_forward.15} parent=0 // pred_check
    _
  $region7: #{gpt2_forward.15} parent=0 // pred_check_branch
    %12 = sbr.rel (0) target = $region9
  $region8: #{gpt2_forward.15} parent=0 // pred_region
    _
  $region9: #{gpt2_forward.15} parent=0 // pred_fallthru
    _
  // Predicated region
  $region10: #{gpt2_forward.15} parent=0 // pred_check
    _
  $region11: #{gpt2_forward.15} parent=0 // pred_check_branch
    %14 = sbr.rel (0) target = $region13
  $region12: #{gpt2_forward.15} parent=0 // pred_region
    _
  $region13: #{gpt2_forward.15} parent=0 // pred_fallthru
    _
  // Predicated region
  $region14: #{gpt2_forward.15} parent=0 // pred_check
    _
  $region15: #{gpt2_forward.15} parent=0 // pred_check_branch
    %16 = sbr.rel (0) target = $region17
  $region16: #{gpt2_forward.15} parent=0 // pred_region
    _
  $region17: #{gpt2_forward.15} parent=0 // pred_fallthru
    _
  %v18 = vld [vmem:[%s0] sm:$0xff]
  %v19 = vld [vmem:[%s0 + $0x8] sm:$0xff]
  %v20 = vld [vmem:[%s0 + $0x10] sm:$0xff]
  %v21 = vld [vmem:[%s0 + $0x18] sm:$0xff]
  %v22 = vld [vmem:[%s1] sm:$0xf]
  %v23 = vld [vmem:[%s1 + $0x4] sm:$0xf]
  %v24 = vld [vmem:[%s1 + $0x8] sm:$0xf]
  %v25 = vld [vmem:[%s1 + $0xc] sm:$0xf]
  %v26 = vld [vmem:[%s1 + $0x10] sm:$0xf]
  %v27 = vld [vmem:[%s1 + $0x14] sm:$0xf]
  %v28 = vld [vmem:[%s1 + $0x18] sm:$0xf]
  %v29 = vld [vmem:[%s1 + $0x1c] sm:$0xf]
  %v30 = vld [vmem:[%s1 + $0x20] sm:$0xf]
  %v31 = vld [vmem:[%s1 + $0x24] sm:$0xf]
  %v32 = vld [vmem:[%s1 + $0x28] sm:$0xf]
  %v33 = vld [vmem:[%s1 + $0x2c] sm:$0xf]
  %v34 = vld [vmem:[%s1 + $0x30] sm:$0xf]
  %v35 = vld [vmem:[%s1 + $0x34] sm:$0xf]
  %v36 = vld [vmem:[%s1 + $0x38] sm:$0xf]
  %v37 = vld [vmem:[%s1 + $0x3c] sm:$0xf]
  %v38 = vld [vmem:[%s1 + $0x40] sm:$0xf]
  %v39 = vld [vmem:[%s1 + $0x44] sm:$0xf]
  %v40 = vld [vmem:[%s1 + $0x48] sm:$0xf]
  %v41 = vld [vmem:[%s1 + $0x4c] sm:$0xf]
  %v42 = vld [vmem:[%s1 + $0x50] sm:$0xf]
  %v43 = vld [vmem:[%s1 + $0x54] sm:$0xf]
  %v44 = vld [vmem:[%s1 + $0x58] sm:$0xf]
  %v45 = vld [vmem:[%s1 + $0x5c] sm:$0xf]
  %v46 = vld [vmem:[%s1 + $0x60] sm:$0xf]
  %v47 = vld [vmem:[%s1 + $0x64] sm:$0xf]
  %v48 = vld [vmem:[%s1 + $0x68] sm:$0xf]
  %v49 = vld [vmem:[%s1 + $0x6c] sm:$0xf]
  %v50 = vld [vmem:[%s1 + $0x70] sm:$0xf]
  %v51 = vld [vmem:[%s1 + $0x74] sm:$0xf]
  %v52 = vld [vmem:[%s1 + $0x78] sm:$0xf]
  %v53 = vld [vmem:[%s1 + $0x7c] sm:$0xf]
  %v54 = vld [vmem:[%s1 + $0x80] sm:$0xf]
  %v55 = vld [vmem:[%s1 + $0x84] sm:$0xf]
  %v56 = vld [vmem:[%s1 + $0x88] sm:$0xf]
  %v57 = vld [vmem:[%s1 + $0x8c] sm:$0xf]
  %v58 = vld [vmem:[%s1 + $0x90] sm:$0xf]
  %v59 = vld [vmem:[%s1 + $0x94] sm:$0xf]
  %v60 = vld [vmem:[%s1 + $0x98] sm:$0xf]
  %v61 = vld [vmem:[%s1 + $0x9c] sm:$0xf]
  %v62 = vld [vmem:[%s1 + $0xa0] sm:$0xf]
  %v63 = vld [vmem:[%s1 + $0xa4] sm:$0xf]
  %v64 = vld [vmem:[%s1 + $0xa8] sm:$0xf]
  %v65 = vld [vmem:[%s1 + $0xac] sm:$0xf]
  %v66 = vld [vmem:[%s1 + $0xb0] sm:$0xf]
  %v67 = vld [vmem:[%s1 + $0xb4] sm:$0xf]
  %v68 = vld [vmem:[%s1 + $0xb8] sm:$0xf]
  %v69 = vld [vmem:[%s1 + $0xbc] sm:$0xf]
  %v70 = vld [vmem:[%s1 + $0xc0] sm:$0xf]
  %v71 = vld [vmem:[%s1 + $0xc4] sm:$0xf]
  %v72 = vld [vmem:[%s1 + $0xc8] sm:$0xf]
  %v73 = vld [vmem:[%s1 + $0xcc] sm:$0xf]
  %v74 = vld [vmem:[%s1 + $0xd0] sm:$0xf]
  %v75 = vld [vmem:[%s1 + $0xd4] sm:$0xf]
  %v76 = vld [vmem:[%s1 + $0xd8] sm:$0xf]
  %v77 = vld [vmem:[%s1 + $0xdc] sm:$0xf]
  %v78 = vld [vmem:[%s1 + $0xe0] sm:$0xf]
  %v79 = vld [vmem:[%s1 + $0xe4] sm:$0xf]
  %v80 = vld [vmem:[%s1 + $0xe8] sm:$0xf]
  %v81 = vld [vmem:[%s1 + $0xec] sm:$0xf]
  %v82 = vld [vmem:[%s1 + $0xf0] sm:$0xf]
  %v83 = vld [vmem:[%s1 + $0xf4] sm:$0xf]
  %v84 = vld [vmem:[%s1 + $0xf8] sm:$0xf]
  %v85 = vld [vmem:[%s1 + $0xfc] sm:$0xf]
  %v86 = vld [vmem:[%s2] sm:$0x1]
  %v88 = vlaneseq
  %v89 = vshrl.u32 %v88, 7
  %v90 = vsub.s32 0, %v89
  %v91 = vrot.slane %v86, %v90
  %v97 = vunpack.c.l.b16 %v18
  %v98 = vunpack.c.h.b16 %v18
  %v99 = vunpack.c.l.b16 %v19
  %v100 = vunpack.c.h.b16 %v19
  %v101 = vunpack.c.l.b16 %v20
  %v102 = vunpack.c.h.b16 %v20
  %v103 = vunpack.c.l.b16 %v21
  %v104 = vunpack.c.h.b16 %v21
  %v105 = vpack.c.b16 %v101, %v97
  %v106 = vpack.c.b16 %v102, %v98
  %v107 = vpack.c.b16 %v103, %v99
  %v108 = vpack.c.b16 %v104, %v100
  %v177 = vunpack.c.l.b16 %v22
  %v178 = vunpack.c.l.b16 %v23
  %v179 = vunpack.c.l.b16 %v24
  %v180 = vunpack.c.l.b16 %v25
  %v181 = vunpack.c.l.b16 %v26
  %v182 = vunpack.c.l.b16 %v27
  %v183 = vunpack.c.l.b16 %v28
  %v184 = vunpack.c.l.b16 %v29
  %v185 = vunpack.c.l.b16 %v30
  %v186 = vunpack.c.l.b16 %v31
  %v187 = vunpack.c.l.b16 %v32
  %v188 = vunpack.c.l.b16 %v33
  %v189 = vunpack.c.l.b16 %v34
  %v190 = vunpack.c.l.b16 %v35
  %v191 = vunpack.c.l.b16 %v36
  %v192 = vunpack.c.l.b16 %v37
  %v193 = vunpack.c.l.b16 %v38
  %v194 = vunpack.c.l.b16 %v39
  %v195 = vunpack.c.l.b16 %v40
  %v196 = vunpack.c.l.b16 %v41
  %v197 = vunpack.c.l.b16 %v42
  %v198 = vunpack.c.l.b16 %v43
  %v199 = vunpack.c.l.b16 %v44
  %v200 = vunpack.c.l.b16 %v45
  %v201 = vunpack.c.l.b16 %v46
  %v202 = vunpack.c.l.b16 %v47
  %v203 = vunpack.c.l.b16 %v48
  %v204 = vunpack.c.l.b16 %v49
  %v205 = vunpack.c.l.b16 %v50
  %v206 = vunpack.c.l.b16 %v51
  %v207 = vunpack.c.l.b16 %v52
  %v208 = vunpack.c.l.b16 %v53
  %v209 = vunpack.c.l.b16 %v54
  %v210 = vunpack.c.l.b16 %v55
  %v211 = vunpack.c.l.b16 %v56
  %v212 = vunpack.c.l.b16 %v57
  %v213 = vunpack.c.l.b16 %v58
  %v214 = vunpack.c.l.b16 %v59
  %v215 = vunpack.c.l.b16 %v60
  %v216 = vunpack.c.l.b16 %v61
  %v217 = vunpack.c.l.b16 %v62
  %v218 = vunpack.c.l.b16 %v63
  %v219 = vunpack.c.l.b16 %v64
  %v220 = vunpack.c.l.b16 %v65
  %v221 = vunpack.c.l.b16 %v66
  %v222 = vunpack.c.l.b16 %v67
  %v223 = vunpack.c.l.b16 %v68
  %v224 = vunpack.c.l.b16 %v69
  %v225 = vunpack.c.l.b16 %v70
  %v226 = vunpack.c.l.b16 %v71
  %v227 = vunpack.c.l.b16 %v72
  %v228 = vunpack.c.l.b16 %v73
  %v229 = vunpack.c.l.b16 %v74
  %v230 = vunpack.c.l.b16 %v75
  %v231 = vunpack.c.l.b16 %v76
  %v232 = vunpack.c.l.b16 %v77
  %v233 = vunpack.c.l.b16 %v78
  %v234 = vunpack.c.l.b16 %v79
  %v235 = vunpack.c.l.b16 %v80
  %v236 = vunpack.c.l.b16 %v81
  %v237 = vunpack.c.l.b16 %v82
  %v238 = vunpack.c.l.b16 %v83
  %v239 = vunpack.c.l.b16 %v84
  %v240 = vunpack.c.l.b16 %v85
  %v241 = vpack.c.b16 %v178, %v177
  %v242 = vpack.c.b16 %v180, %v179
  %v243 = vpack.c.b16 %v182, %v181
  %v244 = vpack.c.b16 %v184, %v183
  %v245 = vpack.c.b16 %v186, %v185
  %v246 = vpack.c.b16 %v188, %v187
  %v247 = vpack.c.b16 %v190, %v189
  %v248 = vpack.c.b16 %v192, %v191
  %v249 = vpack.c.b16 %v194, %v193
  %v250 = vpack.c.b16 %v196, %v195
  %v251 = vpack.c.b16 %v198, %v197
  %v252 = vpack.c.b16 %v200, %v199
  %v253 = vpack.c.b16 %v202, %v201
  %v254 = vpack.c.b16 %v204, %v203
  %v255 = vpack.c.b16 %v206, %v205
  %v256 = vpack.c.b16 %v208, %v207
  %v257 = vpack.c.b16 %v210, %v209
  %v258 = vpack.c.b16 %v212, %v211
  %v259 = vpack.c.b16 %v214, %v213
  %v260 = vpack.c.b16 %v216, %v215
  %v261 = vpack.c.b16 %v218, %v217
  %v262 = vpack.c.b16 %v220, %v219
  %v263 = vpack.c.b16 %v222, %v221
  %v264 = vpack.c.b16 %v224, %v223
  %v265 = vpack.c.b16 %v226, %v225
  %v266 = vpack.c.b16 %v228, %v227
  %v267 = vpack.c.b16 %v230, %v229
  %v268 = vpack.c.b16 %v232, %v231
  %v269 = vpack.c.b16 %v234, %v233
  %v270 = vpack.c.b16 %v236, %v235
  %v271 = vpack.c.b16 %v238, %v237
  %v272 = vpack.c.b16 %v240, %v239
  %305 = vmatprep.subr.bf16.mxu0 0
  %306 = vmatpush1.bf16.msra.mxu0 %v241
  %307 = vmatprep.subr.bf16.mxu0 0
  %308 = vmatpush1.bf16.msra.mxu0 %v242
  %309 = vmatprep.subr.bf16.mxu0 0
  %310 = vmatpush1.bf16.msra.mxu0 %v243
  %311 = vmatprep.subr.bf16.mxu0 0
  %312 = vmatpush1.bf16.msra.mxu0 %v244
  %313 = vmatprep.subr.bf16.mxu0 0
  %314 = vmatpush1.bf16.msra.mxu0 %v245
  %315 = vmatprep.subr.bf16.mxu0 0
  %316 = vmatpush1.bf16.msra.mxu0 %v246
  %317 = vmatprep.subr.bf16.mxu0 0
  %318 = vmatpush1.bf16.msra.mxu0 %v247
  %319 = vmatprep.subr.bf16.mxu0 0
  %320 = vmatpush1.bf16.msra.mxu0 %v248
  %321 = vmatprep.subr.bf16.mxu0 0
  %322 = vmatpush1.bf16.msra.mxu0 %v249
  %323 = vmatprep.subr.bf16.mxu0 0
  %324 = vmatpush1.bf16.msra.mxu0 %v250
  %325 = vmatprep.subr.bf16.mxu0 0
  %326 = vmatpush1.bf16.msra.mxu0 %v251
  %327 = vmatprep.subr.bf16.mxu0 0
  %328 = vmatpush1.bf16.msra.mxu0 %v252
  %329 = vmatprep.subr.bf16.mxu0 0
  %330 = vmatpush1.bf16.msra.mxu0 %v253
  %331 = vmatprep.subr.bf16.mxu0 0
  %332 = vmatpush1.bf16.msra.mxu0 %v254
  %333 = vmatprep.subr.bf16.mxu0 0
  %334 = vmatpush1.bf16.msra.mxu0 %v255
  %335 = vmatprep.subr.bf16.mxu0 0
  %336 = vmatpush1.bf16.msra.mxu0 %v256
  %337 = vmatprep.mubr.bf16.mxu0 %v106
  %338 = vmatmul.mubr.bf16.gmra.mrb[0].mxu0 %v105
  %v339 = vpop.f32.mrb[0].mxu0
  %v340 = vadd.f32 %v91, %v339
  %v341 = vpop.f32.mrb[0].mxu0
  %v342 = vpop.f32.mrb[0].mxu0
  %v343 = vadd.f32 %v91, %v342
  %v344 = vpop.f32.mrb[0].mxu0
  %345 = vdwg.mxu0
  %346 = vmatprep.subr.bf16.mxu0 0
  %347 = vmatpush1.bf16.msra.mxu0 %v257
  %348 = vmatprep.subr.bf16.mxu0 0
  %349 = vmatpush1.bf16.msra.mxu0 %v258
  %350 = vmatprep.subr.bf16.mxu0 0
  %351 = vmatpush1.bf16.msra.mxu0 %v259
  %352 = vmatprep.subr.bf16.mxu0 0
  %353 = vmatpush1.bf16.msra.mxu0 %v260
  %354 = vmatprep.subr.bf16.mxu0 0
  %355 = vmatpush1.bf16.msra.mxu0 %v261
  %356 = vmatprep.subr.bf16.mxu0 0
  %357 = vmatpush1.bf16.msra.mxu0 %v262
  %358 = vmatprep.subr.bf16.mxu0 0
  %359 = vmatpush1.bf16.msra.mxu0 %v263
  %360 = vmatprep.subr.bf16.mxu0 0
  %361 = vmatpush1.bf16.msra.mxu0 %v264
  %362 = vmatprep.subr.bf16.mxu0 0
  %363 = vmatpush1.bf16.msra.mxu0 %v265
  %364 = vmatprep.subr.bf16.mxu0 0
  %365 = vmatpush1.bf16.msra.mxu0 %v266
  %366 = vmatprep.subr.bf16.mxu0 0
  %367 = vmatpush1.bf16.msra.mxu0 %v267
  %368 = vmatprep.subr.bf16.mxu0 0
  %369 = vmatpush1.bf16.msra.mxu0 %v268
  %370 = vmatprep.subr.bf16.mxu0 0
  %371 = vmatpush1.bf16.msra.mxu0 %v269
  %372 = vmatprep.subr.bf16.mxu0 0
  %373 = vmatpush1.bf16.msra.mxu0 %v270
  %374 = vmatprep.subr.bf16.mxu0 0
  %375 = vmatpush1.bf16.msra.mxu0 %v271
  %376 = vmatprep.subr.bf16.mxu0 0
  %377 = vmatpush1.bf16.msra.mxu0 %v272
  %378 = vmatprep.mubr.bf16.mxu0 %v108
  %379 = vmatmul.mubr.bf16.gmra.mrb[0].mxu0 %v107
  %v380 = vpop.f32.mrb[0].mxu0
  %v381 = vadd.f32 %v340, %v380
  %v382 = vpop.f32.mrb[0].mxu0
  %v383 = vpop.f32.mrb[0].mxu0
  %v384 = vadd.f32 %v343, %v383
  %v385 = vpop.f32.mrb[0].mxu0
  %386 = vdwg.mxu0
  %v387 = vld [vmem:[%s3] sm:$0xf]
  %v388 = vld [vmem:[%s3 + $0x4] sm:$0xf]
  %v389 = vunpack.c.l.bf16 %v387
  %v390 = vunpack.c.l.bf16 %v388
  %v391 = vadd.f32 %v381, %v389
  %v392 = vadd.f32 %v384, %v390
  %v393 = vpack.c.bf16 %v392, %v391
  %v395 = vunpack.c.l.b16 %v393
  %v396 = vunpack.c.h.b16 %v393
  %v397 = vpack.c.b16 %v395, %v395
  %v398 = vpack.c.b16 %v396, %v396
  %401 = vst [vmem:[%s4] sm:$0xf] %v397
  %402 = vst [vmem:[%s4 + $0x4] sm:$0xf] %v398
  // Predicated region
  $region18: #{gpt2_forward.15} parent=0 // pred_check
    _
  $region19: #{gpt2_forward.15} parent=0 // pred_check_branch
    %404 = sbr.rel (0) target = $region21
  $region20: #{gpt2_forward.15} parent=0 // pred_region
    _
  $region21: #{gpt2_forward.15} parent=0 // pred_fallthru
    _
  // Predicated region
  $region22: #{gpt2_forward.15} parent=0 // pred_check
    _
  $region23: #{gpt2_forward.15} parent=0 // pred_check_branch
    %406 = sbr.rel (0) target = $region25
  $region24: #{gpt2_forward.15} parent=0 // pred_region
    _
  $region25: #{gpt2_forward.15} parent=0 // pred_fallthru
    _

// kernel: gpt2_forward.21
$region0: #{gpt2_forward.21}
  #allocation0 [shape = 'u32[]', space=smem, size = 0x4, offset = 0x4, fixed_abs, tag = 'smem constant byte address 0x4 - core index']
  #allocation1 [shape = 'u32[144,128]{1,0:T(1,128)}', space=vmem, size = 0x12000, scoped, tag = 'internal scratch']
  #allocation2 [shape = 'bf16[16,128]{1,0:T(16,128)(2,1)}', space=vmem, size = 0x1000, scoped, tag = 'scratch operand']
  #allocation3 [shape = 'f32[16,1]{1,0:T(8,128)}', space=vmem, size = 0x2000, scoped, tag = 'scratch operand']
  #allocation4 [shape = 'f32[16,1]{1,0:T(8,128)}', space=vmem, size = 0x2000, scoped, tag = 'scratch operand']
  #allocation5 [shape = 'f32[16,1]{1,0:T(8,128)}', space=vmem, size = 0x2000, scoped, tag = 'scratch operand']
  %s0 = inlined_call_operand.vmem [shape: bf16[16,128], index: 0, kind: input, shape index: {}]
  %s1 = inlined_call_operand.vmem [shape: f32[1,128], index: 1, kind: input, shape index: {}]
  %s2 = inlined_call_operand.vmem [shape: f32[1,128], index: 2, kind: input, shape index: {}]
  %s3 = inlined_call_operand.vmem [shape: bf16[128,256], index: 3, kind: input, shape index: {}]
  %s4 = inlined_call_operand.vmem [shape: s32[16,1], index: 4, kind: input, shape index: {}]
  %s5 = inlined_call_operand.hbm [shape: f32[16,256], index: 5, kind: output, shape index: {0}]
  %s6 = inlined_call_operand.vmem [shape: f32[16,1], index: 6, kind: output, shape index: {1}]
  %7 = xla_tuple %s5, %s6
  %s8 = sld [smem:[#allocation0]]
  $region46: #{gpt2_forward.21} parent=0
    _
  %s10 = ssub.s32 1, %s8
  %s11 = scalar_select 0, %s10, %s8
  $region1: #{gpt2_forward.21} parent=0
    #allocation6 [shape = 'u8[16384]{0}', space=vmem, size = 0x4000, scoped, tag = 'output window, operand 0, single buffered']
    #allocation7 [shape = 's32[1]{0}', space=sflag, size = 0x4, scoped, tag = 'scoped memory for gpt2_forward.21']
    %12 = vsyncpa [#allocation7], 0
    // Predicated region
    $region2: #{gpt2_forward.21} parent=1 // pred_check
      _
    $region3: #{gpt2_forward.21} parent=1 // pred_check_branch
      %14 = sbr.rel (0) target = $region5
    $region4: #{gpt2_forward.21} parent=1 // pred_region
      _
    $region5: #{gpt2_forward.21} parent=1 // pred_fallthru
      _
    // Predicated region
    $region6: #{gpt2_forward.21} parent=1 // pred_check
      _
    $region7: #{gpt2_forward.21} parent=1 // pred_check_branch
      %16 = sbr.rel (0) target = $region9
    $region8: #{gpt2_forward.21} parent=1 // pred_region
      _
    $region9: #{gpt2_forward.21} parent=1 // pred_fallthru
      _
    // Predicated region
    $region10: #{gpt2_forward.21} parent=1 // pred_check
      _
    $region11: #{gpt2_forward.21} parent=1 // pred_check_branch
      %18 = sbr.rel (0) target = $region13
    $region12: #{gpt2_forward.21} parent=1 // pred_region
      _
    $region13: #{gpt2_forward.21} parent=1 // pred_fallthru
      _
    // Predicated region
    $region14: #{gpt2_forward.21} parent=1 // pred_check
      _
    $region15: #{gpt2_forward.21} parent=1 // pred_check_branch
      %20 = sbr.rel (0) target = $region17
    $region16: #{gpt2_forward.21} parent=1 // pred_region
      _
    $region17: #{gpt2_forward.21} parent=1 // pred_fallthru
      _
    // Predicated region
    $region18: #{gpt2_forward.21} parent=1 // pred_check
      _
    $region19: #{gpt2_forward.21} parent=1 // pred_check_branch
      %22 = sbr.rel (0) target = $region21
    $region20: #{gpt2_forward.21} parent=1 // pred_region
      _
    $region21: #{gpt2_forward.21} parent=1 // pred_fallthru
      _
    %p24 = scmp.eq.s32.totalorder 0, 0
    // Predicated region
    $region22: #{gpt2_forward.21} parent=1 // pred_check
      %p25 = pneg %p24
    $region23: #{gpt2_forward.21} parent=1 // pred_check_branch
      %27 = sbr.rel (%p25) target = $region25
    $region24: #{gpt2_forward.21} parent=1 // pred_region
      %v28 = vld [vmem:[%s0] sm:$0xf]
      %v29 = vld [vmem:[%s0 + $0x4] sm:$0xf]
      %v30 = vunpack.c.l.bf16 %v28
      %v31 = vunpack.c.l.bf16 %v29
      %32 = vadd.xlane.f32.xlu0 %v30
      %v33 = vpop.xlane.xlu0 %32
      %34 = vadd.xlane.f32.xlu0 %v31
      %v35 = vpop.xlane.xlu0 %34
      %v36 = vrcp.pop 128.0
      %v37 = vmul.f32 %v33, %v36
      %v38 = vmul.f32 %v35, %v36
      %v39 = vsub.f32 %v30, %v37
      %v40 = vsub.f32 %v31, %v38
      %v41 = vmul.f32 %v39, %v39
      %v42 = vmul.f32 %v40, %v40
      %43 = vadd.xlane.f32.xlu0 %v41
      %v44 = vpop.xlane.xlu0 %43
      %45 = vadd.xlane.f32.xlu0 %v42
      %v46 = vpop.xlane.xlu0 %45
      %v47 = vmul.f32 %v44, %v36
      %v48 = vmul.f32 %v46, %v36
      %v49 = vadd.f32 %v47, 1e-05
      %v50 = vadd.f32 %v48, 1e-05
      %v51 = vrsqrt.pop %v49
      %v52 = vrsqrt.pop %v50
      %v53 = vmul.f32 %v39, %v51
      %v54 = vmul.f32 %v40, %v52
      %v55 = vld [vmem:[%s1] sm:$0x1]
      %v57 = vlaneseq
      %v58 = vshrl.u32 %v57, 7
      %v59 = vsub.s32 0, %v58
      %v60 = vrot.slane %v55, %v59
      %v62 = vmul.f32 %v53, %v60
      %v63 = vmul.f32 %v54, %v60
      %v64 = vld [vmem:[%s2] sm:$0x1]
      %v66 = vlaneseq
      %v67 = vshrl.u32 %v66, 7
      %v68 = vsub.s32 0, %v67
      %v69 = vrot.slane %v64, %v68
      %v71 = vadd.f32 %v62, %v69
      %v72 = vadd.f32 %v63, %v69
      %v73 = vpack.c.bf16 %v72, %v71
      %74 = vst [vmem:[#allocation2] sm:$0xff] %v73
      %vm75 = vcmask 7168
      %76 = vst.msk [vmem:[#allocation3] sm:$0xff] %vm75, -1e+30
      %77 = vst.msk [vmem:[#allocation3 + $0x8] sm:$0xff] %vm75, -1e+30
      %78 = vst.msk [vmem:[#allocation4] sm:$0xff] %vm75, 0.0
      %79 = vst.msk [vmem:[#allocation4 + $0x8] sm:$0xff] %vm75, 0.0
      %80 = vst.msk [vmem:[#allocation5] sm:$0xff] %vm75, 0.0
      %81 = vst.msk [vmem:[#allocation5 + $0x8] sm:$0xff] %vm75, 0.0
    $region25: #{gpt2_forward.21} parent=1 // pred_fallthru
      _
    %v82 = vld [vmem:[#allocation2] sm:$0xff]
    %v83 = vld [vmem:[%s3] sm:$0xff]
    %v84 = vld [vmem:[%s3 + $0x8] sm:$0xff]
    %v85 = vld [vmem:[%s3 + $0x10] sm:$0xff]
    %v86 = vld [vmem:[%s3 + $0x18] sm:$0xff]
    %v87 = vld [vmem:[%s3 + $0x20] sm:$0xff]
    %v88 = vld [vmem:[%s3 + $0x28] sm:$0xff]
    %v89 = vld [vmem:[%s3 + $0x30] sm:$0xff]
    %v90 = vld [vmem:[%s3 + $0x38] sm:$0xff]
    %v91 = vld [vmem:[%s3 + $0x40] sm:$0xff]
    %v92 = vld [vmem:[%s3 + $0x48] sm:$0xff]
    %v93 = vld [vmem:[%s3 + $0x50] sm:$0xff]
    %v94 = vld [vmem:[%s3 + $0x58] sm:$0xff]
    %v95 = vld [vmem:[%s3 + $0x60] sm:$0xff]
    %v96 = vld [vmem:[%s3 + $0x68] sm:$0xff]
    %v97 = vld [vmem:[%s3 + $0x70] sm:$0xff]
    %v98 = vld [vmem:[%s3 + $0x78] sm:$0xff]
    %v115 = vunpack.c.l.b16 %v83
    %v116 = vunpack.c.h.b16 %v83
    %v117 = vunpack.c.l.b16 %v84
    %v118 = vunpack.c.h.b16 %v84
    %v119 = vunpack.c.l.b16 %v85
    %v120 = vunpack.c.h.b16 %v85
    %v121 = vunpack.c.l.b16 %v86
    %v122 = vunpack.c.h.b16 %v86
    %v123 = vunpack.c.l.b16 %v87
    %v124 = vunpack.c.h.b16 %v87
    %v125 = vunpack.c.l.b16 %v88
    %v126 = vunpack.c.h.b16 %v88
    %v127 = vunpack.c.l.b16 %v89
    %v128 = vunpack.c.h.b16 %v89
    %v129 = vunpack.c.l.b16 %v90
    %v130 = vunpack.c.h.b16 %v90
    %v131 = vunpack.c.l.b16 %v91
    %v132 = vunpack.c.h.b16 %v91
    %v133 = vunpack.c.l.b16 %v92
    %v134 = vunpack.c.h.b16 %v92
    %v135 = vunpack.c.l.b16 %v93
    %v136 = vunpack.c.h.b16 %v93
    %v137 = vunpack.c.l.b16 %v94
    %v138 = vunpack.c.h.b16 %v94
    %v139 = vunpack.c.l.b16 %v95
    %v140 = vunpack.c.h.b16 %v95
    %v141 = vunpack.c.l.b16 %v96
    %v142 = vunpack.c.h.b16 %v96
    %v143 = vunpack.c.l.b16 %v97
    %v144 = vunpack.c.h.b16 %v97
    %v145 = vunpack.c.l.b16 %v98
    %v146 = vunpack.c.h.b16 %v98
    %v147 = vpack.c.b16 %v117, %v115
    %v148 = vpack.c.b16 %v118, %v116
    %v149 = vpack.c.b16 %v121, %v119
    %v150 = vpack.c.b16 %v122, %v120
    %v151 = vpack.c.b16 %v125, %v123
    %v152 = vpack.c.b16 %v126, %v124
    %v153 = vpack.c.b16 %v129, %v127
    %v154 = vpack.c.b16 %v130, %v128
    %v155 = vpack.c.b16 %v133, %v131
    %v156 = vpack.c.b16 %v134, %v132
    %v157 = vpack.c.b16 %v137, %v135
    %v158 = vpack.c.b16 %v138, %v136
    %v159 = vpack.c.b16 %v141, %v139
    %v160 = vpack.c.b16 %v142, %v140
    %v161 = vpack.c.b16 %v145, %v143
    %v162 = vpack.c.b16 %v146, %v144
    %179 = vmatprep.subr.bf16.mxu0 %v148
    %180 = vmatpush1.bf16.msra.mxu0 %v147
    %181 = vmatprep.subr.bf16.mxu0 %v150
    %182 = vmatpush1.bf16.msra.mxu0 %v149
    %183 = vmatprep.subr.bf16.mxu0 %v152
    %184 = vmatpush1.bf16.msra.mxu0 %v151
    %185 = vmatprep.subr.bf16.mxu0 %v154
    %186 = vmatpush1.bf16.msra.mxu0 %v153
    %187 = vmatprep.subr.bf16.mxu0 %v156
    %188 = vmatpush1.bf16.msra.mxu0 %v155
    %189 = vmatprep.subr.bf16.mxu0 %v158
    %190 = vmatpush1.bf16.msra.mxu0 %v157
    %191 = vmatprep.subr.bf16.mxu0 %v160
    %192 = vmatpush1.bf16.msra.mxu0 %v159
    %193 = vmatprep.subr.bf16.mxu0 %v162
    %194 = vmatpush1.bf16.msra.mxu0 %v161
    %195 = vmatprep.subr.bf16.mxu0 0
    %196 = vmatpush1.bf16.msra.mxu0 0
    %197 = vmatprep.subr.bf16.mxu0 0
    %198 = vmatpush1.bf16.msra.mxu0 0
    %199 = vmatprep.subr.bf16.mxu0 0
    %200 = vmatpush1.bf16.msra.mxu0 0
    %201 = vmatprep.subr.bf16.mxu0 0
    %202 = vmatpush1.bf16.msra.mxu0 0
    %203 = vmatprep.subr.bf16.mxu0 0
    %204 = vmatpush1.bf16.msra.mxu0 0
    %205 = vmatprep.subr.bf16.mxu0 0
    %206 = vmatpush1.bf16.msra.mxu0 0
    %207 = vmatprep.subr.bf16.mxu0 0
    %208 = vmatpush1.bf16.msra.mxu0 0
    %209 = vmatprep.subr.bf16.mxu0 0
    %210 = vmatpush1.bf16.msra.mxu0 0
    %211 = vmatprep.mubr.bf16.mxu0 0
    %212 = vmatmul.mubr.bf16.gmra.mrb[0].mxu0 %v82
    %v213 = vpop.f32.mrb[0].mxu0
    %v214 = vadd.f32 0.0, %v213
    %v215 = vpop.f32.mrb[0].mxu0
    %v216 = vadd.f32 0.0, %v215
    %v217 = vpop.f32.mrb[0].mxu0
    %v218 = vadd.f32 0.0, %v217
    %v219 = vpop.f32.mrb[0].mxu0
    %v220 = vadd.f32 0.0, %v219
    %221 = vdwg.mxu0
    %222 = vst [vmem:[#allocation6] sm:$0xff] %v214
    %223 = vst [vmem:[#allocation6 + $0x8] sm:$0xff] %v216
    %224 = vst [vmem:[#allocation6 + $0x10] sm:$0xff] %v218
    %225 = vst [vmem:[#allocation6 + $0x18] sm:$0xff] %v220
    %v226 = vld [vmem:[%s4] sm:$0xff]
    %v227 = vld [vmem:[%s4 + $0x8] sm:$0xff]
    %v228 = vlaneseq
    %v229 = vand.u32 %v228, 127
    %v230 = vadd.s32 %v229, 128
    %s231 = smul.u32 0, 256
    %v232 = vstv %s231
    %v233 = vadd.s32 %v229, %v232
    %v234 = vadd.s32 %v230, %v232
    %vm235 = vcmp.lt.s32.totalorder %v233, 256
    %vm236 = vcmp.lt.s32.totalorder %v234, 256
    %v237 = vsel %vm235, %v214, -1e+30
    %v238 = vsel %vm236, %v216, -1e+30
    %v239 = vsel %vm235, %v218, -1e+30
    %v240 = vsel %vm236, %v220, -1e+30
    %v241 = vld [vmem:[#allocation3] sm:$0xff]
    %v242 = vld [vmem:[#allocation3 + $0x8] sm:$0xff]
    %v243 = vmax.f32 %v237, %v238
    %244 = vmax.xlane.f32.xlu0 %v243
    %v245 = vpop.xlane.xlu0 %244
    %v246 = vmax.f32 %v239, %v240
    %247 = vmax.xlane.f32.xlu0 %v246
    %v248 = vpop.xlane.xlu0 %247
    %v249 = vmax.f32 %v241, %v245
    %v250 = vmax.f32 %v242, %v248
    %v251 = vld [vmem:[#allocation4] sm:$0xff]
    %v252 = vld [vmem:[#allocation4 + $0x8] sm:$0xff]
    %v253 = vsub.f32 %v241, %v249
    %v254 = vsub.f32 %v242, %v250
    %v255 = vmul.f32 %v253, 1.442695
    %v256 = vpow.pop %v255
    %v257 = vmul.f32 %v254, 1.442695
    %v258 = vpow.pop %v257
    %v259 = vmul.f32 %v251, %v256
    %v260 = vmul.f32 %v252, %v258
    %262 = vset.pattern.permute.xlu0 0
    %263 = vperm.xlu0 %262, %v249
    %v264 = vpop.permute.xlu0 %263
    %267 = vset.pattern.permute.xlu0 0
    %268 = vperm.xlu0 %267, %v250
    %v269 = vpop.permute.xlu0 %268
    %v271 = vsub.f32 %v237, %v264
    %v272 = vsub.f32 %v238, %v264
    %v273 = vsub.f32 %v239, %v269
    %v274 = vsub.f32 %v240, %v269
    %v275 = vmul.f32 %v271, 1.442695
    %v276 = vpow.pop %v275
    %v277 = vmul.f32 %v272, 1.442695
    %v278 = vpow.pop %v277
    %v279 = vmul.f32 %v273, 1.442695
    %v280 = vpow.pop %v279
    %v281 = vmul.f32 %v274, 1.442695
    %v282 = vpow.pop %v281
    %v283 = vadd.f32 %v276, %v278
    %284 = vadd.xlane.f32.xlu0 %v283
    %v285 = vpop.xlane.xlu0 %284
    %v286 = vadd.f32 %v280, %v282
    %287 = vadd.xlane.f32.xlu0 %v286
    %v288 = vpop.xlane.xlu0 %287
    %v289 = vadd.f32 %v259, %v285
    %v290 = vadd.f32 %v260, %v288
    %vm291 = vcmask 7168
    %292 = vst.msk [vmem:[#allocation4] sm:$0xff] %vm291, %v289
    %293 = vst.msk [vmem:[#allocation4 + $0x8] sm:$0xff] %vm291, %v290
    %294 = vst.msk [vmem:[#allocation3] sm:$0xff] %vm291, %v249
    %295 = vst.msk [vmem:[#allocation3 + $0x8] sm:$0xff] %vm291, %v250
    %296 = vset.pattern.permute.xlu0 0
    %297 = vperm.xlu0 %296, %v226
    %v298 = vpop.permute.xlu0 %297
    %299 = vset.pattern.permute.xlu0 0
    %300 = vperm.xlu0 %299, %v227
    %v301 = vpop.permute.xlu0 %300
    %vm302 = vcmp.eq.s32.totalorder %v233, %v298
    %vm303 = vcmp.eq.s32.totalorder %v234, %v298
    %vm304 = vcmp.eq.s32.totalorder %v233, %v301
    %vm305 = vcmp.eq.s32.totalorder %v234, %v301
    %v306 = vsel %vm302, 1, 0
    %v307 = vsel %vm303, 1, 0
    %v308 = vsel %vm304, 1, 0
    %v309 = vsel %vm305, 1, 0
    %v310 = vcvt.s32.f32 %v306
    %v311 = vcvt.s32.f32 %v307
    %v312 = vcvt.s32.f32 %v308
    %v313 = vcvt.s32.f32 %v309
    %v314 = vld [vmem:[#allocation5] sm:$0xff]
    %v315 = vld [vmem:[#allocation5 + $0x8] sm:$0xff]
    %v316 = vmul.f32 %v214, %v310
    %v317 = vmul.f32 %v216, %v311
    %v318 = vmul.f32 %v218, %v312
    %v319 = vmul.f32 %v220, %v313
    %v320 = vadd.f32 %v316, %v317
    %321 = vadd.xlane.f32.xlu0 %v320
    %v322 = vpop.xlane.xlu0 %321
    %v323 = vadd.f32 %v318, %v319
    %324 = vadd.xlane.f32.xlu0 %v323
    %v325 = vpop.xlane.xlu0 %324
    %v326 = vadd.f32 %v314, %v322
    %v327 = vadd.f32 %v315, %v325
    %328 = vst.msk [vmem:[#allocation5] sm:$0xff] %vm291, %v326
    %329 = vst.msk [vmem:[#allocation5 + $0x8] sm:$0xff] %vm291, %v327
    // Predicated region
    $region26: #{gpt2_forward.21} parent=1 // pred_check
      %p330 = pneg %p24
    $region27: #{gpt2_forward.21} parent=1 // pred_check_branch
      %332 = sbr.rel (%p330) target = $region29
    $region28: #{gpt2_forward.21} parent=1 // pred_region
      %v333 = vld [vmem:[#allocation3] sm:$0xff]
      %v334 = vld [vmem:[#allocation3 + $0x8] sm:$0xff]
      %v335 = vld [vmem:[#allocation4] sm:$0xff]
      %v336 = vld [vmem:[#allocation4 + $0x8] sm:$0xff]
      %v337 = vlog2.pop %v335
      %v338 = vmul.f32 %v337, 0.6931472
      %v339 = vlog2.pop %v336
      %v340 = vmul.f32 %v339, 0.6931472
      %v341 = vadd.f32 %v333, %v338
      %v342 = vadd.f32 %v334, %v340
      %vm343 = vcmp.ne.s32.totalorder %v226, 4294967196
      %vm344 = vcmp.ne.s32.totalorder %v227, 4294967196
      %v345 = vsel %vm343, 1, 0
      %v346 = vsel %vm344, 1, 0
      %v347 = vcvt.s32.f32 %v345
      %v348 = vcvt.s32.f32 %v346
      %v349 = vld [vmem:[#allocation5] sm:$0xff]
      %v350 = vld [vmem:[#allocation5 + $0x8] sm:$0xff]
      %v351 = vsub.f32 %v341, %v349
      %v352 = vsub.f32 %v342, %v350
      %v353 = vmul.f32 %v351, %v347
      %v354 = vmul.f32 %v352, %v348
      %355 = vst.msk [vmem:[%s6] sm:$0xff] %vm291, %v353
      %356 = vst.msk [vmem:[%s6 + $0x8] sm:$0xff] %vm291, %v354
    $region29: #{gpt2_forward.21} parent=1 // pred_fallthru
      _
    // Predicated region
    $region30: #{gpt2_forward.21} parent=1 // pred_check
      _
    $region31: #{gpt2_forward.21} parent=1 // pred_check_branch
      %358 = sbr.rel (0) target = $region33
    $region32: #{gpt2_forward.21} parent=1 // pred_region
      %s360 = ssub.s32 512, 512
      %361 = vsyncadd [#allocation7], %s360
      %s362 = sshll.u32 [#allocation6], 4
      %s363 = int_to_ptr.vmem [resolvable:$true] %s362
      %368 = dma.vmem_to_hbm [thread:$0]  %s363, 512, %s5, [#allocation7], 256, 256, 16
    $region33: #{gpt2_forward.21} parent=1 // pred_fallthru
      _
    // Predicated region
    $region34: #{gpt2_forward.21} parent=1 // pred_check
      _
    $region35: #{gpt2_forward.21} parent=1 // pred_check_branch
      %370 = sbr.rel (0) target = $region37
    $region36: #{gpt2_forward.21} parent=1 // pred_region
      _
    $region37: #{gpt2_forward.21} parent=1 // pred_fallthru
      _
    // Predicated region
    $region38: #{gpt2_forward.21} parent=1 // pred_check
      _
    $region39: #{gpt2_forward.21} parent=1 // pred_check_branch
      %372 = sbr.rel (0) target = $region41
    $region40: #{gpt2_forward.21} parent=1 // pred_region
      %373 = dma.done [#allocation7], 512
    $region41: #{gpt2_forward.21} parent=1 // pred_fallthru
      _
    // Predicated region
    $region42: #{gpt2_forward.21} parent=1 // pred_check
      _
    $region43: #{gpt2_forward.21} parent=1 // pred_check_branch
      %375 = sbr.rel (0) target = $region45
    $region44: #{gpt2_forward.21} parent=1 // pred_region
      _
    $region45: #{gpt2_forward.21} parent=1 // pred_fallthru
      _
    %376 = vsyncpa [#allocation7], 1

</llo_original>
